<compile_context>
chip_gen: v7x
topology: tpu7x:2x2x1
jax: 0.10.0
libtpu: 0.0.40
codegen_flags: <defaults>
</compile_context>

<pallas_src>
import jax
import jax.numpy as jnp
import numpy as np
from jax.experimental import pallas as pl
from jax.experimental.pallas import tpu as pltpu

BN_EPS = 1e-5
NCLS = 10                      # output classes
RROWS = 24                     # rows carrying the 20-feature stages (mult. of 8)
OROWS = 16                     # rows carrying the 10-feature stages / output
TILE_B = 512                   # batch (lane) columns per grid step
VMEM_LIMIT = 32 * 1024 * 1024  # per-step live set is <1 MiB; default-sized cap


def bn_stats_kernel(nb_ref, x_ref, p_ref, aff_ref, a_sc, s1_sc, s2_sc, c_sc):
    """Pass L: accumulate batch stats of layer L's pre-BN activation; at the
    last batch tile write the folded BN affine (scale | shift) columns."""
    L = pl.program_id(0)
    t = pl.program_id(1)
    nt = pl.num_programs(1)
    n = nb_ref[0]

    vec = p_ref[4]                       # (32, 32) packed per-feature vectors

    def col(j):                          # (RROWS, 1) column, broadcasts over lanes
        return vec[:RROWS, j:j + 1]

    @pl.when(t == 0)
    def _():
        s1_sc[...] = jnp.zeros_like(s1_sc)
        s2_sc[...] = jnp.zeros_like(s2_sc)

    # Recompute layer L's pre-BN activation from the input tile using the
    # already-finalized affines of layers 0..L-1 (all at 24 rows; padded rows
    # stay exactly 0 thanks to zero-padded weights / biases / gammas).
    a_sc[...] = x_ref[...]
    aff = aff_ref[...]                   # (RROWS, 8): cols 0-3 scale, 4-7 shift

    for j in range(3):
        @pl.when(L >= j + 1)
        def _(j=j):
            y = jnp.maximum(a_sc[...] * aff[:, j:j + 1] + aff[:, 4 + j:5 + j], 0.0)
            w = p_ref[j][:RROWS, :RROWS]
            a_sc[...] = jnp.dot(w, y, preferred_element_type=jnp.float32) + col(j)

    a = a_sc[...]

    # Shifted one-pass statistics: c = first valid column of tile 0.
    @pl.when(t == 0)
    def _():
        c_sc[...] = a[:, 0:1]
    c = c_sc[...]

    colmask = (t * TILE_B
               + jax.lax.broadcasted_iota(jnp.int32, (1, TILE_B), 1)) < n
    d = jnp.where(colmask, a - c, 0.0)
    s1_sc[...] += jnp.sum(d, axis=1, keepdims=True)
    s2_sc[...] += jnp.sum(d * d, axis=1, keepdims=True)

    @pl.when(t == nt - 1)
    def _():
        inv_n = 1.0 / n.astype(jnp.float32)
        m1 = s1_sc[...] * inv_n
        mean = c_sc[...] + m1
        var = jnp.maximum(s2_sc[...] * inv_n - m1 * m1, 0.0)
        rstd = jax.lax.rsqrt(var + BN_EPS)
        for j in range(4):
            @pl.when(L == j)
            def _(j=j):
                scale = col(4 + j) * rstd                    # gamma * rstd
                aff_ref[:, j:j + 1] = scale
                aff_ref[:, 4 + j:5 + j] = col(8 + j) - mean * scale  # beta - mean*scale


def apply_kernel(x_ref, p_ref, aff_ref, o_ref):
    """Batch-tiled apply: 4x (affine-BN -> ReLU -> fc) + 16-row log-softmax."""
    aff = aff_ref[...]                   # (RROWS, 8)
    vec = p_ref[4]

    def bn_relu(a, j, rows):
        return jnp.maximum(a * aff[:rows, j:j + 1] + aff[:rows, 4 + j:5 + j], 0.0)

    h = x_ref[...]                                                      # (24, T)
    h = jnp.dot(p_ref[0][:RROWS, :RROWS], bn_relu(h, 0, RROWS),
                preferred_element_type=jnp.float32) + vec[:RROWS, 0:1]  # fc1 20->20
    h = jnp.dot(p_ref[1][:OROWS, :RROWS], bn_relu(h, 1, RROWS),
                preferred_element_type=jnp.float32) + vec[:OROWS, 1:2]  # fc2 20->10
    h = jnp.dot(p_ref[2][:OROWS, :OROWS], bn_relu(h, 2, OROWS),
                preferred_element_type=jnp.float32) + vec[:OROWS, 2:3]  # fc3 10->10
    h = jnp.dot(p_ref[3][:OROWS, :OROWS], bn_relu(h, 3, OROWS),
                preferred_element_type=jnp.float32) + vec[:OROWS, 3:4]  # fc4 10->10

    # log_softmax over the first NCLS rows, on the 16-row slab only.
    row_mask = jax.lax.broadcasted_iota(jnp.int32, (OROWS, 1), 0) < NCLS
    zm = jnp.where(row_mask, h, jnp.float32(-1e30))   # mask BEFORE exp
    m = jnp.max(zm, axis=0, keepdims=True)
    e = jnp.exp(zm - m)                                # padded rows underflow to 0
    lse = jnp.log(jnp.sum(e, axis=0, keepdims=True))
    o_ref[...] = (h - m) - lse                         # lane-dense (16, T) store


@jax.jit
def top_model_forward(xa, xb, pstack):
    B = xa.shape[0]
    nt = pl.next_power_of_2(pl.cdiv(B, TILE_B))        # bucketed tile count
    bp = nt * TILE_B

    # (F, B) lane-dense layout; features padded 20 -> 24, batch padded/bucketed.
    x = jnp.concatenate([xa.T, xb.T], axis=0).astype(jnp.float32)   # (20, B)
    x = jnp.pad(x, ((0, RROWS - x.shape[0]), (0, bp - B)))          # (24, bp)
    nb = jnp.array([B], jnp.int32)

    # ---- pass 1: per-layer BN statistics -> folded affine (24, 8) ----------
    stats_cost = pl.CostEstimate(
        flops=4 * nt * (3 * 2 * RROWS * RROWS * TILE_B + 12 * RROWS * TILE_B),
        transcendentals=4 * RROWS,
        bytes_accessed=4 * nt * RROWS * TILE_B * 4 + 5 * 32 * 32 * 4 + RROWS * 8 * 4,
    )
    aff = pl.pallas_call(
        bn_stats_kernel,
        out_shape=jax.ShapeDtypeStruct((RROWS, 8), jnp.float32),
        grid_spec=pltpu.PrefetchScalarGridSpec(
            num_scalar_prefetch=1,
            grid=(4, nt),
            in_specs=[
                pl.BlockSpec((RROWS, TILE_B), lambda l, t, nbs: (0, t)),
                pl.BlockSpec((5, 32, 32), lambda l, t, nbs: (0, 0, 0)),
            ],
            out_specs=pl.BlockSpec((RROWS, 8), lambda l, t, nbs: (0, 0)),
            scratch_shapes=[
                pltpu.VMEM((RROWS, TILE_B), jnp.float32),   # recompute buffer
                pltpu.VMEM((RROWS, 1), jnp.float32),        # s1
                pltpu.VMEM((RROWS, 1), jnp.float32),        # s2
                pltpu.VMEM((RROWS, 1), jnp.float32),        # variance shift c
            ],
        ),
        compiler_params=pltpu.CompilerParams(
            dimension_semantics=("arbitrary", "arbitrary"),
            vmem_limit_bytes=VMEM_LIMIT),
        cost_estimate=stats_cost,
    )(nb, x, pstack)

    # ---- pass 2: batch-tiled, megacore-parallel apply -----------------------
    apply_cost = pl.CostEstimate(
        flops=nt * TILE_B * (2 * (RROWS * RROWS + OROWS * RROWS
                                  + 2 * OROWS * OROWS) + 200),
        transcendentals=nt * TILE_B * (OROWS + 1),
        bytes_accessed=nt * TILE_B * (RROWS + OROWS) * 4
                       + 5 * 32 * 32 * 4 + RROWS * 8 * 4,
    )
    out = pl.pallas_call(
        apply_kernel,
        out_shape=jax.ShapeDtypeStruct((OROWS, bp), jnp.float32),
        grid=(nt,),
        in_specs=[
            pl.BlockSpec((RROWS, TILE_B), lambda t: (0, t)),
            pl.BlockSpec((5, 32, 32), lambda t: (0, 0, 0)),
            pl.BlockSpec((RROWS, 8), lambda t: (0, 0)),
        ],
        out_specs=pl.BlockSpec((OROWS, TILE_B), lambda t: (0, t)),
        compiler_params=pltpu.CompilerParams(
            dimension_semantics=("parallel",),
            vmem_limit_bytes=VMEM_LIMIT),
        cost_estimate=apply_cost,
    )(x, pstack, aff)

    return out[:NCLS, :B].T              # back to PyTorch's (B, 10) layout


def init_params(key):
    """Mirror the PyTorch module: Linear weights kaiming-normal (stored as
    (out, in)), biases uniform +/- 1/sqrt(fan_in); BN gamma=1, beta=0."""
    dims = [(20, 20), (20, 10), (10, 10), (10, 10)]   # (in, out)
    params = {}
    keys = jax.random.split(key, 2 * len(dims))
    for i, (fan_in, fan_out) in enumerate(dims):
        std = np.sqrt(2.0 / fan_in)
        w = std * jax.random.normal(keys[2 * i], (fan_out, fan_in), jnp.float32)
        bound = 1.0 / np.sqrt(fan_in)
        b = jax.random.uniform(keys[2 * i + 1], (fan_out,), jnp.float32,
                               minval=-bound, maxval=bound)
        params[f"w{i + 1}"] = w
        params[f"b{i + 1}"] = b
    for i, d in enumerate([20, 20, 10, 10]):
        params[f"g{i}"] = jnp.ones((d,), jnp.float32)
        params[f"be{i}"] = jnp.zeros((d,), jnp.float32)
    return params


def pack_params(params):
    """Pack all 16 tensors into one zero-padded (5, 32, 32) buffer:
    slots 0..3 = weights (out, in); slot 4 = biases/gammas/betas as columns."""
    p = np.zeros((5, 32, 32), np.float32)
    for k in range(4):
        w = np.asarray(params[f"w{k + 1}"])            # (out, in)
        p[k, :w.shape[0], :w.shape[1]] = w
    vec_names = ["b1", "b2", "b3", "b4",
                 "g0", "g1", "g2", "g3",
                 "be0", "be1", "be2", "be3"]
    for j, name in enumerate(vec_names):
        v = np.asarray(params[name]).reshape(-1)
        p[4, :v.shape[0], j] = v
    return jnp.asarray(p)


def reference_forward(xa, xb, params):
    """Pure-JAX reference matching the PyTorch forward (training-mode BN)."""
    x = jnp.concatenate([xa, xb], axis=1)
    for i in range(4):
        mean = jnp.mean(x, axis=0, keepdims=True)
        var = jnp.mean((x - mean) ** 2, axis=0, keepdims=True)
        h = (x - mean) * jax.lax.rsqrt(var + BN_EPS) * params[f"g{i}"] + params[f"be{i}"]
        h = jnp.maximum(h, 0.0)
        x = h @ params[f"w{i + 1}"].T + params[f"b{i + 1}"]
    return jax.nn.log_softmax(x, axis=1)


if __name__ == "__main__":
    key = jax.random.PRNGKey(0)
    kp, ka, kb = jax.random.split(key, 3)

    B = 8  # BatchNorm1d training mode needs B > 1
    xa = jax.random.normal(ka, (B, 10), jnp.float32)
    xb = jax.random.normal(kb, (B, 10), jnp.float32)

    params = init_params(kp)
    pstack = pack_params(params)

    out = jax.block_until_ready(top_model_forward(xa, xb, pstack))
    ref = jax.block_until_ready(reference_forward(xa, xb, params))

    assert out.shape == (B, NCLS)
    assert np.allclose(np.asarray(out), np.asarray(ref), atol=1e-4, rtol=1e-4)
    # log_softmax rows should sum to ~1 in probability space
    assert np.allclose(np.exp(np.asarray(out)).sum(axis=1), 1.0, atol=1e-4)

    print("KERNEL_OK")
</pallas_src>

<mosaic_0001>
module attributes {stable_mosaic.version = 11 : i64} {
  func.func @bn_stats_kernel(%arg0: i32, %arg1: i32, %arg2: memref<1xi32, #tpu.memory_space<smem>>, %arg3: memref<24x512xf32, #tpu.memory_space<vmem>>, %arg4: memref<5x32x32xf32, #tpu.memory_space<vmem>>, %arg5: memref<24x8xf32, #tpu.memory_space<vmem>>, %arg6: memref<24x512xf32, #tpu.memory_space<vmem>>, %arg7: memref<24x1xf32, #tpu.memory_space<vmem>>, %arg8: memref<24x1xf32, #tpu.memory_space<vmem>>, %arg9: memref<24x1xf32, #tpu.memory_space<vmem>>) attributes {dimension_semantics = [#tpu.dimension_semantics<arbitrary>, #tpu.dimension_semantics<arbitrary>], iteration_bounds = array<i64: 4, 1>, scalar_prefetch = 1 : i64, scratch_operands = 4 : i64, tpu.core_type = #tpu.core_type<tc>, window_params = [{transform_indices = @transform_0, window_bounds = array<i64: 24, 512>}, {pipeline_mode = #tpu.pipeline_mode<synchronous>, transform_indices = @transform_1, window_bounds = array<i64: 5, 32, 32>}, {pipeline_mode = #tpu.pipeline_mode<synchronous>, transform_indices = @transform_2, window_bounds = array<i64: 24, 8>}]} {
    %c0 = arith.constant 0 : index
    %0 = memref.load %arg2[%c0] : memref<1xi32, #tpu.memory_space<smem>>
    %c4 = arith.constant 4 : index
    %c0_0 = arith.constant 0 : index
    %c0_1 = arith.constant 0 : index
    %1 = vector.load %arg4[%c4, %c0_0, %c0_1] : memref<5x32x32xf32, #tpu.memory_space<vmem>>, vector<1x32x32xf32>
    %2 = vector.shape_cast %1 : vector<1x32x32xf32> to vector<32x32xf32>
    %c0_i32 = arith.constant 0 : i32
    %3 = arith.cmpi eq, %arg1, %c0_i32 : i32
    %4 = arith.extui %3 : i1 to i32
    %c0_i32_2 = arith.constant 0 : i32
    %5 = arith.cmpi ne, %4, %c0_i32_2 : i32
    scf.if %5 {
      %cst_30 = arith.constant 0.000000e+00 : f32
      %49 = vector.broadcast %cst_30 : f32 to vector<24x1xf32>
      %c0_31 = arith.constant 0 : index
      %c0_32 = arith.constant 0 : index
      %50 = vector.load %arg7[%c0_31, %c0_32] : memref<24x1xf32, #tpu.memory_space<vmem>>, vector<24x1xf32>
      tpu.vector_store %arg7[%c0_31, %c0_32], %49 {strides = array<i32>} : memref<24x1xf32, #tpu.memory_space<vmem>>, vector<24x1xf32>,
      %cst_33 = arith.constant 0.000000e+00 : f32
      %51 = vector.broadcast %cst_33 : f32 to vector<24x1xf32>
      %c0_34 = arith.constant 0 : index
      %c0_35 = arith.constant 0 : index
      %52 = vector.load %arg8[%c0_34, %c0_35] : memref<24x1xf32, #tpu.memory_space<vmem>>, vector<24x1xf32>
      tpu.vector_store %arg8[%c0_34, %c0_35], %51 {strides = array<i32>} : memref<24x1xf32, #tpu.memory_space<vmem>>, vector<24x1xf32>,
    } else {
    }
    %c0_3 = arith.constant 0 : index
    %c0_4 = arith.constant 0 : index
    %6 = vector.load %arg3[%c0_3, %c0_4] : memref<24x512xf32, #tpu.memory_space<vmem>>, vector<24x512xf32>
    %c0_5 = arith.constant 0 : index
    %c0_6 = arith.constant 0 : index
    %7 = vector.load %arg6[%c0_5, %c0_6] : memref<24x512xf32, #tpu.memory_space<vmem>>, vector<24x512xf32>
    tpu.vector_store %arg6[%c0_5, %c0_6], %6 {strides = array<i32>} : memref<24x512xf32, #tpu.memory_space<vmem>>, vector<24x512xf32>,
    %c0_7 = arith.constant 0 : index
    %c0_8 = arith.constant 0 : index
    %8 = vector.load %arg5[%c0_7, %c0_8] : memref<24x8xf32, #tpu.memory_space<vmem>>, vector<24x8xf32>
    %c1_i32 = arith.constant 1 : i32
    %9 = arith.cmpi sge, %arg0, %c1_i32 : i32
    %10 = arith.extui %9 : i1 to i32
    %c0_i32_9 = arith.constant 0 : i32
    %11 = arith.cmpi ne, %10, %c0_i32_9 : i32
    scf.if %11 {
      %c0_30 = arith.constant 0 : index
      %c0_31 = arith.constant 0 : index
      %49 = vector.load %arg6[%c0_30, %c0_31] : memref<24x512xf32, #tpu.memory_space<vmem>>, vector<24x512xf32>
      %50 = vector.extract_strided_slice %8 {offsets = [0, 0], sizes = [24, 1], strides = [1, 1]} : vector<24x8xf32> to vector<24x1xf32>
      %51 = vector.broadcast %50 : vector<24x1xf32> to vector<24x512xf32>
      %52 = arith.mulf %49, %51 : vector<24x512xf32>
      %53 = vector.extract_strided_slice %8 {offsets = [0, 4], sizes = [24, 1], strides = [1, 1]} : vector<24x8xf32> to vector<24x1xf32>
      %54 = vector.broadcast %53 : vector<24x1xf32> to vector<24x512xf32>
      %55 = arith.addf %52, %54 : vector<24x512xf32>
      %cst_32 = arith.constant 0.000000e+00 : f32
      %56 = vector.broadcast %cst_32 : f32 to vector<24x512xf32>
      %57 = arith.maximumf %55, %56 : vector<24x512xf32>
      %c0_33 = arith.constant 0 : index
      %c0_34 = arith.constant 0 : index
      %c0_35 = arith.constant 0 : index
      %58 = vector.load %arg4[%c0_33, %c0_34, %c0_35] : memref<5x32x32xf32, #tpu.memory_space<vmem>>, vector<1x32x32xf32>
      %59 = vector.shape_cast %58 : vector<1x32x32xf32> to vector<32x32xf32>
      %60 = vector.extract_strided_slice %59 {offsets = [0, 0], sizes = [24, 24], strides = [1, 1]} : vector<32x32xf32> to vector<24x24xf32>
      %cst_36 = arith.constant dense<0.000000e+00> : vector<24x512xf32>
      %61 = tpu.matmul %60, %57, %cst_36 {dimension_numbers = #tpu.dot_dimension_numbers<[1], [0], [0], [1], [0, 0, 1, 1], [], []>} : vector<24x24xf32>, vector<24x512xf32>, vector<24x512xf32> -> vector<24x512xf32>
      %62 = vector.extract_strided_slice %2 {offsets = [0, 0], sizes = [24, 1], strides = [1, 1]} : vector<32x32xf32> to vector<24x1xf32>
      %63 = vector.broadcast %62 : vector<24x1xf32> to vector<24x512xf32>
      %64 = arith.addf %61, %63 : vector<24x512xf32>
      %c0_37 = arith.constant 0 : index
      %c0_38 = arith.constant 0 : index
      %65 = vector.load %arg6[%c0_37, %c0_38] : memref<24x512xf32, #tpu.memory_space<vmem>>, vector<24x512xf32>
      tpu.vector_store %arg6[%c0_37, %c0_38], %64 {strides = array<i32>} : memref<24x512xf32, #tpu.memory_space<vmem>>, vector<24x512xf32>,
    } else {
    }
    %c2_i32 = arith.constant 2 : i32
    %12 = arith.cmpi sge, %arg0, %c2_i32 : i32
    %13 = arith.extui %12 : i1 to i32
    %c0_i32_10 = arith.constant 0 : i32
    %14 = arith.cmpi ne, %13, %c0_i32_10 : i32
    scf.if %14 {
      %c0_30 = arith.constant 0 : index
      %c0_31 = arith.constant 0 : index
      %49 = vector.load %arg6[%c0_30, %c0_31] : memref<24x512xf32, #tpu.memory_space<vmem>>, vector<24x512xf32>
      %50 = vector.extract_strided_slice %8 {offsets = [0, 1], sizes = [24, 1], strides = [1, 1]} : vector<24x8xf32> to vector<24x1xf32>
      %51 = vector.broadcast %50 : vector<24x1xf32> to vector<24x512xf32>
      %52 = arith.mulf %49, %51 : vector<24x512xf32>
      %53 = vector.extract_strided_slice %8 {offsets = [0, 5], sizes = [24, 1], strides = [1, 1]} : vector<24x8xf32> to vector<24x1xf32>
      %54 = vector.broadcast %53 : vector<24x1xf32> to vector<24x512xf32>
      %55 = arith.addf %52, %54 : vector<24x512xf32>
      %cst_32 = arith.constant 0.000000e+00 : f32
      %56 = vector.broadcast %cst_32 : f32 to vector<24x512xf32>
      %57 = arith.maximumf %55, %56 : vector<24x512xf32>
      %c1 = arith.constant 1 : index
      %c0_33 = arith.constant 0 : index
      %c0_34 = arith.constant 0 : index
      %58 = vector.load %arg4[%c1, %c0_33, %c0_34] : memref<5x32x32xf32, #tpu.memory_space<vmem>>, vector<1x32x32xf32>
      %59 = vector.shape_cast %58 : vector<1x32x32xf32> to vector<32x32xf32>
      %60 = vector.extract_strided_slice %59 {offsets = [0, 0], sizes = [24, 24], strides = [1, 1]} : vector<32x32xf32> to vector<24x24xf32>
      %cst_35 = arith.constant dense<0.000000e+00> : vector<24x512xf32>
      %61 = tpu.matmul %60, %57, %cst_35 {dimension_numbers = #tpu.dot_dimension_numbers<[1], [0], [0], [1], [0, 0, 1, 1], [], []>} : vector<24x24xf32>, vector<24x512xf32>, vector<24x512xf32> -> vector<24x512xf32>
      %62 = vector.extract_strided_slice %2 {offsets = [0, 1], sizes = [24, 1], strides = [1, 1]} : vector<32x32xf32> to vector<24x1xf32>
      %63 = vector.broadcast %62 : vector<24x1xf32> to vector<24x512xf32>
      %64 = arith.addf %61, %63 : vector<24x512xf32>
      %c0_36 = arith.constant 0 : index
      %c0_37 = arith.constant 0 : index
      %65 = vector.load %arg6[%c0_36, %c0_37] : memref<24x512xf32, #tpu.memory_space<vmem>>, vector<24x512xf32>
      tpu.vector_store %arg6[%c0_36, %c0_37], %64 {strides = array<i32>} : memref<24x512xf32, #tpu.memory_space<vmem>>, vector<24x512xf32>,
    } else {
    }
    %c3_i32 = arith.constant 3 : i32
    %15 = arith.cmpi sge, %arg0, %c3_i32 : i32
    %16 = arith.extui %15 : i1 to i32
    %c0_i32_11 = arith.constant 0 : i32
    %17 = arith.cmpi ne, %16, %c0_i32_11 : i32
    scf.if %17 {
      %c0_30 = arith.constant 0 : index
      %c0_31 = arith.constant 0 : index
      %49 = vector.load %arg6[%c0_30, %c0_31] : memref<24x512xf32, #tpu.memory_space<vmem>>, vector<24x512xf32>
      %50 = vector.extract_strided_slice %8 {offsets = [0, 2], sizes = [24, 1], strides = [1, 1]} : vector<24x8xf32> to vector<24x1xf32>
      %51 = vector.broadcast %50 : vector<24x1xf32> to vector<24x512xf32>
      %52 = arith.mulf %49, %51 : vector<24x512xf32>
      %53 = vector.extract_strided_slice %8 {offsets = [0, 6], sizes = [24, 1], strides = [1, 1]} : vector<24x8xf32> to vector<24x1xf32>
      %54 = vector.broadcast %53 : vector<24x1xf32> to vector<24x512xf32>
      %55 = arith.addf %52, %54 : vector<24x512xf32>
      %cst_32 = arith.constant 0.000000e+00 : f32
      %56 = vector.broadcast %cst_32 : f32 to vector<24x512xf32>
      %57 = arith.maximumf %55, %56 : vector<24x512xf32>
      %c2 = arith.constant 2 : index
      %c0_33 = arith.constant 0 : index
      %c0_34 = arith.constant 0 : index
      %58 = vector.load %arg4[%c2, %c0_33, %c0_34] : memref<5x32x32xf32, #tpu.memory_space<vmem>>, vector<1x32x32xf32>
      %59 = vector.shape_cast %58 : vector<1x32x32xf32> to vector<32x32xf32>
      %60 = vector.extract_strided_slice %59 {offsets = [0, 0], sizes = [24, 24], strides = [1, 1]} : vector<32x32xf32> to vector<24x24xf32>
      %cst_35 = arith.constant dense<0.000000e+00> : vector<24x512xf32>
      %61 = tpu.matmul %60, %57, %cst_35 {dimension_numbers = #tpu.dot_dimension_numbers<[1], [0], [0], [1], [0, 0, 1, 1], [], []>} : vector<24x24xf32>, vector<24x512xf32>, vector<24x512xf32> -> vector<24x512xf32>
      %62 = vector.extract_strided_slice %2 {offsets = [0, 2], sizes = [24, 1], strides = [1, 1]} : vector<32x32xf32> to vector<24x1xf32>
      %63 = vector.broadcast %62 : vector<24x1xf32> to vector<24x512xf32>
      %64 = arith.addf %61, %63 : vector<24x512xf32>
      %c0_36 = arith.constant 0 : index
      %c0_37 = arith.constant 0 : index
      %65 = vector.load %arg6[%c0_36, %c0_37] : memref<24x512xf32, #tpu.memory_space<vmem>>, vector<24x512xf32>
      tpu.vector_store %arg6[%c0_36, %c0_37], %64 {strides = array<i32>} : memref<24x512xf32, #tpu.memory_space<vmem>>, vector<24x512xf32>,
    } else {
    }
    %c0_12 = arith.constant 0 : index
    %c0_13 = arith.constant 0 : index
    %18 = vector.load %arg6[%c0_12, %c0_13] : memref<24x512xf32, #tpu.memory_space<vmem>>, vector<24x512xf32>
    %c0_i32_14 = arith.constant 0 : i32
    %19 = arith.cmpi eq, %arg1, %c0_i32_14 : i32
    %20 = arith.extui %19 : i1 to i32
    %c0_i32_15 = arith.constant 0 : i32
    %21 = arith.cmpi ne, %20, %c0_i32_15 : i32
    scf.if %21 {
      %49 = vector.extract_strided_slice %18 {offsets = [0, 0], sizes = [24, 1], strides = [1, 1]} : vector<24x512xf32> to vector<24x1xf32>
      %c0_30 = arith.constant 0 : index
      %c0_31 = arith.constant 0 : index
      %50 = vector.load %arg9[%c0_30, %c0_31] : memref<24x1xf32, #tpu.memory_space<vmem>>, vector<24x1xf32>
      tpu.vector_store %arg9[%c0_30, %c0_31], %49 {strides = array<i32>} : memref<24x1xf32, #tpu.memory_space<vmem>>, vector<24x1xf32>,
    } else {
    }
    %c0_16 = arith.constant 0 : index
    %c0_17 = arith.constant 0 : index
    %22 = vector.load %arg9[%c0_16, %c0_17] : memref<24x1xf32, #tpu.memory_space<vmem>>, vector<24x1xf32>
    %c512_i32 = arith.constant 512 : i32
    %23 = arith.muli %arg1, %c512_i32 : i32
    %24 = tpu.iota {dimensions = array<i32: 1>} : vector<1x512xi32>
    %25 = vector.broadcast %23 : i32 to vector<1x512xi32>
    %26 = arith.addi %25, %24 : vector<1x512xi32>
    %27 = vector.broadcast %0 : i32 to vector<1x512xi32>
    %28 = arith.cmpi slt, %26, %27 : vector<1x512xi32>
    %29 = vector.broadcast %22 : vector<24x1xf32> to vector<24x512xf32>
    %30 = arith.subf %18, %29 : vector<24x512xf32>
    %cst = arith.constant 0.000000e+00 : f32
    %31 = vector.shape_cast %28 : vector<1x512xi1> to vector<1x512xi1>
    %32 = vector.broadcast %31 : vector<1x512xi1> to vector<24x512xi1>
    %33 = vector.broadcast %cst : f32 to vector<24x512xf32>
    %34 = arith.select %32, %30, %33 : vector<24x512xi1>, vector<24x512xf32>
    %c0_18 = arith.constant 0 : index
    %c0_19 = arith.constant 0 : index
    %35 = vector.load %arg7[%c0_18, %c0_19] : memref<24x1xf32, #tpu.memory_space<vmem>>, vector<24x1xf32>
    %cst_20 = arith.constant dense<0.000000e+00> : vector<24xf32>
    %36 = vector.multi_reduction <add>, %34, %cst_20 [1] : vector<24x512xf32> to vector<24xf32>
    %37 = vector.shape_cast %36 : vector<24xf32> to vector<24x1xf32>
    %38 = arith.addf %35, %37 : vector<24x1xf32>
    %c0_21 = arith.constant 0 : index
    %c0_22 = arith.constant 0 : index
    %39 = vector.load %arg7[%c0_21, %c0_22] : memref<24x1xf32, #tpu.memory_space<vmem>>, vector<24x1xf32>
    tpu.vector_store %arg7[%c0_21, %c0_22], %38 {strides = array<i32>} : memref<24x1xf32, #tpu.memory_space<vmem>>, vector<24x1xf32>,
    %c0_23 = arith.constant 0 : index
    %c0_24 = arith.constant 0 : index
    %40 = vector.load %arg8[%c0_23, %c0_24] : memref<24x1xf32, #tpu.memory_space<vmem>>, vector<24x1xf32>
    %41 = arith.mulf %34, %34 : vector<24x512xf32>
    %cst_25 = arith.constant dense<0.000000e+00> : vector<24xf32>
    %42 = vector.multi_reduction <add>, %41, %cst_25 [1] : vector<24x512xf32> to vector<24xf32>
    %43 = vector.shape_cast %42 : vector<24xf32> to vector<24x1xf32>
    %44 = arith.addf %40, %43 : vector<24x1xf32>
    %c0_26 = arith.constant 0 : index
    %c0_27 = arith.constant 0 : index
    %45 = vector.load %arg8[%c0_26, %c0_27] : memref<24x1xf32, #tpu.memory_space<vmem>>, vector<24x1xf32>
    tpu.vector_store %arg8[%c0_26, %c0_27], %44 {strides = array<i32>} : memref<24x1xf32, #tpu.memory_space<vmem>>, vector<24x1xf32>,
    %c0_i32_28 = arith.constant 0 : i32
    %46 = arith.cmpi eq, %arg1, %c0_i32_28 : i32
    %47 = arith.extui %46 : i1 to i32
    %c0_i32_29 = arith.constant 0 : i32
    %48 = arith.cmpi ne, %47, %c0_i32_29 : i32
    scf.if %48 {
      %49 = arith.sitofp %0 : i32 to f32
      %cst_30 = arith.constant 1.000000e+00 : f32
      %50 = arith.divf %cst_30, %49 : f32
      %c0_31 = arith.constant 0 : index
      %c0_32 = arith.constant 0 : index
      %51 = vector.load %arg7[%c0_31, %c0_32] : memref<24x1xf32, #tpu.memory_space<vmem>>, vector<24x1xf32>
      %52 = vector.broadcast %50 : f32 to vector<24x1xf32>
      %53 = arith.mulf %51, %52 : vector<24x1xf32>
      %c0_33 = arith.constant 0 : index
      %c0_34 = arith.constant 0 : index
      %54 = vector.load %arg9[%c0_33, %c0_34] : memref<24x1xf32, #tpu.memory_space<vmem>>, vector<24x1xf32>
      %55 = arith.addf %54, %53 : vector<24x1xf32>
      %c0_35 = arith.constant 0 : index
      %c0_36 = arith.constant 0 : index
      %56 = vector.load %arg8[%c0_35, %c0_36] : memref<24x1xf32, #tpu.memory_space<vmem>>, vector<24x1xf32>
      %57 = vector.broadcast %50 : f32 to vector<24x1xf32>
      %58 = arith.mulf %56, %57 : vector<24x1xf32>
      %59 = arith.mulf %53, %53 : vector<24x1xf32>
      %60 = arith.subf %58, %59 : vector<24x1xf32>
      %cst_37 = arith.constant 0.000000e+00 : f32
      %61 = vector.broadcast %cst_37 : f32 to vector<24x1xf32>
      %62 = arith.maximumf %60, %61 : vector<24x1xf32>
      %cst_38 = arith.constant 9.99999974E-6 : f32
      %63 = vector.broadcast %cst_38 : f32 to vector<24x1xf32>
      %64 = arith.addf %62, %63 : vector<24x1xf32>
      %65 = math.rsqrt %64 : vector<24x1xf32>
      %c0_i32_39 = arith.constant 0 : i32
      %66 = arith.cmpi eq, %arg0, %c0_i32_39 : i32
      %67 = arith.extui %66 : i1 to i32
      %c0_i32_40 = arith.constant 0 : i32
      %68 = arith.cmpi ne, %67, %c0_i32_40 : i32
      scf.if %68 {
        %78 = vector.extract_strided_slice %2 {offsets = [0, 4], sizes = [24, 1], strides = [1, 1]} : vector<32x32xf32> to vector<24x1xf32>
        %79 = arith.mulf %78, %65 : vector<24x1xf32>
        %c0_47 = arith.constant 0 : index
        %c0_48 = arith.constant 0 : index
        %80 = vector.load %arg5[%c0_47, %c0_48] : memref<24x8xf32, #tpu.memory_space<vmem>>, vector<24x1xf32>
        tpu.vector_store %arg5[%c0_47, %c0_48], %79 {strides = array<i32>} : memref<24x8xf32, #tpu.memory_space<vmem>>, vector<24x1xf32>,
        %81 = vector.extract_strided_slice %2 {offsets = [0, 8], sizes = [24, 1], strides = [1, 1]} : vector<32x32xf32> to vector<24x1xf32>
        %82 = arith.mulf %55, %79 : vector<24x1xf32>
        %83 = arith.subf %81, %82 : vector<24x1xf32>
        %c0_49 = arith.constant 0 : index
        %c4_50 = arith.constant 4 : index
        %84 = vector.load %arg5[%c0_49, %c4_50] : memref<24x8xf32, #tpu.memory_space<vmem>>, vector<24x1xf32>
        tpu.vector_store %arg5[%c0_49, %c4_50], %83 {strides = array<i32>} : memref<24x8xf32, #tpu.memory_space<vmem>>, vector<24x1xf32>,
      } else {
      }
      %c1_i32_41 = arith.constant 1 : i32
      %69 = arith.cmpi eq, %arg0, %c1_i32_41 : i32
      %70 = arith.extui %69 : i1 to i32
      %c0_i32_42 = arith.constant 0 : i32
      %71 = arith.cmpi ne, %70, %c0_i32_42 : i32
      scf.if %71 {
        %78 = vector.extract_strided_slice %2 {offsets = [0, 5], sizes = [24, 1], strides = [1, 1]} : vector<32x32xf32> to vector<24x1xf32>
        %79 = arith.mulf %78, %65 : vector<24x1xf32>
        %c0_47 = arith.constant 0 : index
        %c1 = arith.constant 1 : index
        %80 = vector.load %arg5[%c0_47, %c1] : memref<24x8xf32, #tpu.memory_space<vmem>>, vector<24x1xf32>
        tpu.vector_store %arg5[%c0_47, %c1], %79 {strides = array<i32>} : memref<24x8xf32, #tpu.memory_space<vmem>>, vector<24x1xf32>,
        %81 = vector.extract_strided_slice %2 {offsets = [0, 9], sizes = [24, 1], strides = [1, 1]} : vector<32x32xf32> to vector<24x1xf32>
        %82 = arith.mulf %55, %79 : vector<24x1xf32>
        %83 = arith.subf %81, %82 : vector<24x1xf32>
        %c0_48 = arith.constant 0 : index
        %c5 = arith.constant 5 : index
        %84 = vector.load %arg5[%c0_48, %c5] : memref<24x8xf32, #tpu.memory_space<vmem>>, vector<24x1xf32>
        tpu.vector_store %arg5[%c0_48, %c5], %83 {strides = array<i32>} : memref<24x8xf32, #tpu.memory_space<vmem>>, vector<24x1xf32>,
      } else {
      }
      %c2_i32_43 = arith.constant 2 : i32
      %72 = arith.cmpi eq, %arg0, %c2_i32_43 : i32
      %73 = arith.extui %72 : i1 to i32
      %c0_i32_44 = arith.constant 0 : i32
      %74 = arith.cmpi ne, %73, %c0_i32_44 : i32
      scf.if %74 {
        %78 = vector.extract_strided_slice %2 {offsets = [0, 6], sizes = [24, 1], strides = [1, 1]} : vector<32x32xf32> to vector<24x1xf32>
        %79 = arith.mulf %78, %65 : vector<24x1xf32>
        %c0_47 = arith.constant 0 : index
        %c2 = arith.constant 2 : index
        %80 = vector.load %arg5[%c0_47, %c2] : memref<24x8xf32, #tpu.memory_space<vmem>>, vector<24x1xf32>
        tpu.vector_store %arg5[%c0_47, %c2], %79 {strides = array<i32>} : memref<24x8xf32, #tpu.memory_space<vmem>>, vector<24x1xf32>,
        %81 = vector.extract_strided_slice %2 {offsets = [0, 10], sizes = [24, 1], strides = [1, 1]} : vector<32x32xf32> to vector<24x1xf32>
        %82 = arith.mulf %55, %79 : vector<24x1xf32>
        %83 = arith.subf %81, %82 : vector<24x1xf32>
        %c0_48 = arith.constant 0 : index
        %c6 = arith.constant 6 : index
        %84 = vector.load %arg5[%c0_48, %c6] : memref<24x8xf32, #tpu.memory_space<vmem>>, vector<24x1xf32>
        tpu.vector_store %arg5[%c0_48, %c6], %83 {strides = array<i32>} : memref<24x8xf32, #tpu.memory_space<vmem>>, vector<24x1xf32>,
      } else {
      }
      %c3_i32_45 = arith.constant 3 : i32
      %75 = arith.cmpi eq, %arg0, %c3_i32_45 : i32
      %76 = arith.extui %75 : i1 to i32
      %c0_i32_46 = arith.constant 0 : i32
      %77 = arith.cmpi ne, %76, %c0_i32_46 : i32
      scf.if %77 {
        %78 = vector.extract_strided_slice %2 {offsets = [0, 7], sizes = [24, 1], strides = [1, 1]} : vector<32x32xf32> to vector<24x1xf32>
        %79 = arith.mulf %78, %65 : vector<24x1xf32>
        %c0_47 = arith.constant 0 : index
        %c3 = arith.constant 3 : index
        %80 = vector.load %arg5[%c0_47, %c3] : memref<24x8xf32, #tpu.memory_space<vmem>>, vector<24x1xf32>
        tpu.vector_store %arg5[%c0_47, %c3], %79 {strides = array<i32>} : memref<24x8xf32, #tpu.memory_space<vmem>>, vector<24x1xf32>,
        %81 = vector.extract_strided_slice %2 {offsets = [0, 11], sizes = [24, 1], strides = [1, 1]} : vector<32x32xf32> to vector<24x1xf32>
        %82 = arith.mulf %55, %79 : vector<24x1xf32>
        %83 = arith.subf %81, %82 : vector<24x1xf32>
        %c0_48 = arith.constant 0 : index
        %c7 = arith.constant 7 : index
        %84 = vector.load %arg5[%c0_48, %c7] : memref<24x8xf32, #tpu.memory_space<vmem>>, vector<24x1xf32>
        tpu.vector_store %arg5[%c0_48, %c7], %83 {strides = array<i32>} : memref<24x8xf32, #tpu.memory_space<vmem>>, vector<24x1xf32>,
      } else {
      }
    } else {
    }
    return
  }
  func.func @transform_0(%arg0: i32, %arg1: i32, %arg2: memref<1xi32, #tpu.memory_space<smem>>) -> (i32, i32) {
    %c0_i32 = arith.constant 0 : i32
    %c0_i32_0 = arith.constant 0 : i32
    return %c0_i32, %arg1 : i32, i32
  }
  func.func @transform_1(%arg0: i32, %arg1: i32, %arg2: memref<1xi32, #tpu.memory_space<smem>>) -> (i32, i32, i32) {
    %c0_i32 = arith.constant 0 : i32
    %c0_i32_0 = arith.constant 0 : i32
    %c0_i32_1 = arith.constant 0 : i32
    %c0_i32_2 = arith.constant 0 : i32
    return %c0_i32, %c0_i32_0, %c0_i32_1 : i32, i32, i32
  }
  func.func @transform_2(%arg0: i32, %arg1: i32, %arg2: memref<1xi32, #tpu.memory_space<smem>>) -> (i32, i32) {
    %c0_i32 = arith.constant 0 : i32
    %c0_i32_0 = arith.constant 0 : i32
    %c0_i32_1 = arith.constant 0 : i32
    return %c0_i32, %c0_i32_0 : i32, i32
  }
}

module attributes {stable_mosaic.version = 11 : i64} {
  func.func @apply_kernel(%arg0: i32, %arg1: memref<24x512xf32, #tpu.memory_space<vmem>>, %arg2: memref<5x32x32xf32, #tpu.memory_space<vmem>>, %arg3: memref<24x8xf32, #tpu.memory_space<vmem>>, %arg4: memref<16x512xf32, #tpu.memory_space<vmem>>) attributes {dimension_semantics = [#tpu.dimension_semantics<parallel>], iteration_bounds = array<i64: 1>, scalar_prefetch = 0 : i64, scratch_operands = 0 : i64, tpu.core_type = #tpu.core_type<tc>, window_params = [{transform_indices = @transform_0, window_bounds = array<i64: 24, 512>}, {pipeline_mode = #tpu.pipeline_mode<synchronous>, transform_indices = @transform_1, window_bounds = array<i64: 5, 32, 32>}, {pipeline_mode = #tpu.pipeline_mode<synchronous>, transform_indices = @transform_2, window_bounds = array<i64: 24, 8>}, {transform_indices = @transform_3, window_bounds = array<i64: 16, 512>}]} {
    %c0 = arith.constant 0 : index
    %c0_0 = arith.constant 0 : index
    %0 = vector.load %arg3[%c0, %c0_0] : memref<24x8xf32, #tpu.memory_space<vmem>>, vector<24x8xf32>
    %c4 = arith.constant 4 : index
    %c0_1 = arith.constant 0 : index
    %c0_2 = arith.constant 0 : index
    %1 = vector.load %arg2[%c4, %c0_1, %c0_2] : memref<5x32x32xf32, #tpu.memory_space<vmem>>, vector<1x32x32xf32>
    %2 = vector.shape_cast %1 : vector<1x32x32xf32> to vector<32x32xf32>
    %c0_3 = arith.constant 0 : index
    %c0_4 = arith.constant 0 : index
    %3 = vector.load %arg1[%c0_3, %c0_4] : memref<24x512xf32, #tpu.memory_space<vmem>>, vector<24x512xf32>
    %c0_5 = arith.constant 0 : index
    %c0_6 = arith.constant 0 : index
    %c0_7 = arith.constant 0 : index
    %4 = vector.load %arg2[%c0_5, %c0_6, %c0_7] : memref<5x32x32xf32, #tpu.memory_space<vmem>>, vector<1x32x32xf32>
    %5 = vector.shape_cast %4 : vector<1x32x32xf32> to vector<32x32xf32>
    %6 = vector.extract_strided_slice %5 {offsets = [0, 0], sizes = [24, 24], strides = [1, 1]} : vector<32x32xf32> to vector<24x24xf32>
    %7 = vector.extract_strided_slice %0 {offsets = [0, 0], sizes = [24, 1], strides = [1, 1]} : vector<24x8xf32> to vector<24x1xf32>
    %8 = vector.broadcast %7 : vector<24x1xf32> to vector<24x512xf32>
    %9 = arith.mulf %3, %8 : vector<24x512xf32>
    %10 = vector.extract_strided_slice %0 {offsets = [0, 4], sizes = [24, 1], strides = [1, 1]} : vector<24x8xf32> to vector<24x1xf32>
    %11 = vector.broadcast %10 : vector<24x1xf32> to vector<24x512xf32>
    %12 = arith.addf %9, %11 : vector<24x512xf32>
    %cst = arith.constant 0.000000e+00 : f32
    %13 = vector.broadcast %cst : f32 to vector<24x512xf32>
    %14 = arith.maximumf %12, %13 : vector<24x512xf32>
    %cst_8 = arith.constant dense<0.000000e+00> : vector<24x512xf32>
    %15 = tpu.matmul %6, %14, %cst_8 {dimension_numbers = #tpu.dot_dimension_numbers<[1], [0], [0], [1], [0, 0, 1, 1], [], []>} : vector<24x24xf32>, vector<24x512xf32>, vector<24x512xf32> -> vector<24x512xf32>
    %16 = vector.extract_strided_slice %2 {offsets = [0, 0], sizes = [24, 1], strides = [1, 1]} : vector<32x32xf32> to vector<24x1xf32>
    %17 = vector.broadcast %16 : vector<24x1xf32> to vector<24x512xf32>
    %18 = arith.addf %15, %17 : vector<24x512xf32>
    %c1 = arith.constant 1 : index
    %c0_9 = arith.constant 0 : index
    %c0_10 = arith.constant 0 : index
    %19 = vector.load %arg2[%c1, %c0_9, %c0_10] : memref<5x32x32xf32, #tpu.memory_space<vmem>>, vector<1x32x32xf32>
    %20 = vector.shape_cast %19 : vector<1x32x32xf32> to vector<32x32xf32>
    %21 = vector.extract_strided_slice %20 {offsets = [0, 0], sizes = [16, 24], strides = [1, 1]} : vector<32x32xf32> to vector<16x24xf32>
    %22 = vector.extract_strided_slice %0 {offsets = [0, 1], sizes = [24, 1], strides = [1, 1]} : vector<24x8xf32> to vector<24x1xf32>
    %23 = vector.broadcast %22 : vector<24x1xf32> to vector<24x512xf32>
    %24 = arith.mulf %18, %23 : vector<24x512xf32>
    %25 = vector.extract_strided_slice %0 {offsets = [0, 5], sizes = [24, 1], strides = [1, 1]} : vector<24x8xf32> to vector<24x1xf32>
    %26 = vector.broadcast %25 : vector<24x1xf32> to vector<24x512xf32>
    %27 = arith.addf %24, %26 : vector<24x512xf32>
    %cst_11 = arith.constant 0.000000e+00 : f32
    %28 = vector.broadcast %cst_11 : f32 to vector<24x512xf32>
    %29 = arith.maximumf %27, %28 : vector<24x512xf32>
    %cst_12 = arith.constant dense<0.000000e+00> : vector<16x512xf32>
    %30 = tpu.matmul %21, %29, %cst_12 {dimension_numbers = #tpu.dot_dimension_numbers<[1], [0], [0], [1], [0, 0, 1, 1], [], []>} : vector<16x24xf32>, vector<24x512xf32>, vector<16x512xf32> -> vector<16x512xf32>
    %31 = vector.extract_strided_slice %2 {offsets = [0, 1], sizes = [16, 1], strides = [1, 1]} : vector<32x32xf32> to vector<16x1xf32>
    %32 = vector.broadcast %31 : vector<16x1xf32> to vector<16x512xf32>
    %33 = arith.addf %30, %32 : vector<16x512xf32>
    %c2 = arith.constant 2 : index
    %c0_13 = arith.constant 0 : index
    %c0_14 = arith.constant 0 : index
    %34 = vector.load %arg2[%c2, %c0_13, %c0_14] : memref<5x32x32xf32, #tpu.memory_space<vmem>>, vector<1x32x32xf32>
    %35 = vector.shape_cast %34 : vector<1x32x32xf32> to vector<32x32xf32>
    %36 = vector.extract_strided_slice %35 {offsets = [0, 0], sizes = [16, 16], strides = [1, 1]} : vector<32x32xf32> to vector<16x16xf32>
    %37 = vector.extract_strided_slice %0 {offsets = [0, 2], sizes = [16, 1], strides = [1, 1]} : vector<24x8xf32> to vector<16x1xf32>
    %38 = vector.broadcast %37 : vector<16x1xf32> to vector<16x512xf32>
    %39 = arith.mulf %33, %38 : vector<16x512xf32>
    %40 = vector.extract_strided_slice %0 {offsets = [0, 6], sizes = [16, 1], strides = [1, 1]} : vector<24x8xf32> to vector<16x1xf32>
    %41 = vector.broadcast %40 : vector<16x1xf32> to vector<16x512xf32>
    %42 = arith.addf %39, %41 : vector<16x512xf32>
    %cst_15 = arith.constant 0.000000e+00 : f32
    %43 = vector.broadcast %cst_15 : f32 to vector<16x512xf32>
    %44 = arith.maximumf %42, %43 : vector<16x512xf32>
    %cst_16 = arith.constant dense<0.000000e+00> : vector<16x512xf32>
    %45 = tpu.matmul %36, %44, %cst_16 {dimension_numbers = #tpu.dot_dimension_numbers<[1], [0], [0], [1], [0, 0, 1, 1], [], []>} : vector<16x16xf32>, vector<16x512xf32>, vector<16x512xf32> -> vector<16x512xf32>
    %46 = vector.extract_strided_slice %2 {offsets = [0, 2], sizes = [16, 1], strides = [1, 1]} : vector<32x32xf32> to vector<16x1xf32>
    %47 = vector.broadcast %46 : vector<16x1xf32> to vector<16x512xf32>
    %48 = arith.addf %45, %47 : vector<16x512xf32>
    %c3 = arith.constant 3 : index
    %c0_17 = arith.constant 0 : index
    %c0_18 = arith.constant 0 : index
    %49 = vector.load %arg2[%c3, %c0_17, %c0_18] : memref<5x32x32xf32, #tpu.memory_space<vmem>>, vector<1x32x32xf32>
    %50 = vector.shape_cast %49 : vector<1x32x32xf32> to vector<32x32xf32>
    %51 = vector.extract_strided_slice %50 {offsets = [0, 0], sizes = [16, 16], strides = [1, 1]} : vector<32x32xf32> to vector<16x16xf32>
    %52 = vector.extract_strided_slice %0 {offsets = [0, 3], sizes = [16, 1], strides = [1, 1]} : vector<24x8xf32> to vector<16x1xf32>
    %53 = vector.broadcast %52 : vector<16x1xf32> to vector<16x512xf32>
    %54 = arith.mulf %48, %53 : vector<16x512xf32>
    %55 = vector.extract_strided_slice %0 {offsets = [0, 7], sizes = [16, 1], strides = [1, 1]} : vector<24x8xf32> to vector<16x1xf32>
    %56 = vector.broadcast %55 : vector<16x1xf32> to vector<16x512xf32>
    %57 = arith.addf %54, %56 : vector<16x512xf32>
    %cst_19 = arith.constant 0.000000e+00 : f32
    %58 = vector.broadcast %cst_19 : f32 to vector<16x512xf32>
    %59 = arith.maximumf %57, %58 : vector<16x512xf32>
    %cst_20 = arith.constant dense<0.000000e+00> : vector<16x512xf32>
    %60 = tpu.matmul %51, %59, %cst_20 {dimension_numbers = #tpu.dot_dimension_numbers<[1], [0], [0], [1], [0, 0, 1, 1], [], []>} : vector<16x16xf32>, vector<16x512xf32>, vector<16x512xf32> -> vector<16x512xf32>
    %61 = vector.extract_strided_slice %2 {offsets = [0, 3], sizes = [16, 1], strides = [1, 1]} : vector<32x32xf32> to vector<16x1xf32>
    %62 = vector.broadcast %61 : vector<16x1xf32> to vector<16x512xf32>
    %63 = arith.addf %60, %62 : vector<16x512xf32>
    %64 = tpu.iota {dimensions = array<i32: 0>} : vector<16x1xi32>
    %c10_i32 = arith.constant 10 : i32
    %65 = vector.broadcast %c10_i32 : i32 to vector<16x1xi32>
    %66 = arith.cmpi slt, %64, %65 : vector<16x1xi32>
    %cst_21 = arith.constant -1.000000e+30 : f32
    %67 = vector.shape_cast %66 : vector<16x1xi1> to vector<16x1xi1>
    %68 = vector.broadcast %67 : vector<16x1xi1> to vector<16x512xi1>
    %69 = vector.broadcast %cst_21 : f32 to vector<16x512xf32>
    %70 = arith.select %68, %63, %69 : vector<16x512xi1>, vector<16x512xf32>
    %cst_22 = arith.constant dense<0xFF800000> : vector<512xf32>
    %71 = vector.multi_reduction <maximumf>, %70, %cst_22 [0] : vector<16x512xf32> to vector<512xf32>
    %72 = vector.shape_cast %71 : vector<512xf32> to vector<1x512xf32>
    %73 = vector.broadcast %72 : vector<1x512xf32> to vector<16x512xf32>
    %74 = arith.subf %70, %73 : vector<16x512xf32>
    %75 = math.exp %74 : vector<16x512xf32>
    %cst_23 = arith.constant dense<0.000000e+00> : vector<512xf32>
    %76 = vector.multi_reduction <add>, %75, %cst_23 [0] : vector<16x512xf32> to vector<512xf32>
    %77 = vector.shape_cast %76 : vector<512xf32> to vector<1x512xf32>
    %78 = math.log %77 : vector<1x512xf32>
    %79 = vector.broadcast %72 : vector<1x512xf32> to vector<16x512xf32>
    %80 = arith.subf %63, %79 : vector<16x512xf32>
    %81 = vector.broadcast %78 : vector<1x512xf32> to vector<16x512xf32>
    %82 = arith.subf %80, %81 : vector<16x512xf32>
    %c0_24 = arith.constant 0 : index
    %c0_25 = arith.constant 0 : index
    %83 = vector.load %arg4[%c0_24, %c0_25] : memref<16x512xf32, #tpu.memory_space<vmem>>, vector<16x512xf32>
    tpu.vector_store %arg4[%c0_24, %c0_25], %82 {strides = array<i32>} : memref<16x512xf32, #tpu.memory_space<vmem>>, vector<16x512xf32>,
    return
  }
  func.func @transform_0(%arg0: i32) -> (i32, i32) {
    %c0_i32 = arith.constant 0 : i32
    %c0_i32_0 = arith.constant 0 : i32
    return %c0_i32, %arg0 : i32, i32
  }
  func.func @transform_1(%arg0: i32) -> (i32, i32, i32) {
    %c0_i32 = arith.constant 0 : i32
    %c0_i32_0 = arith.constant 0 : i32
    %c0_i32_1 = arith.constant 0 : i32
    %c0_i32_2 = arith.constant 0 : i32
    return %c0_i32, %c0_i32_0, %c0_i32_1 : i32, i32, i32
  }
  func.func @transform_2(%arg0: i32) -> (i32, i32) {
    %c0_i32 = arith.constant 0 : i32
    %c0_i32_0 = arith.constant 0 : i32
    %c0_i32_1 = arith.constant 0 : i32
    return %c0_i32, %c0_i32_0 : i32, i32
  }
  func.func @transform_3(%arg0: i32) -> (i32, i32) {
    %c0_i32 = arith.constant 0 : i32
    %c0_i32_0 = arith.constant 0 : i32
    return %c0_i32, %arg0 : i32, i32
  }
}

</mosaic_0001>

<llo_original>
// kernel: top_model_forward.3
$region0: #{top_model_forward.3}
  #allocation0 [shape = 'u32[]', space=smem, size = 0x4, offset = 0x4, fixed_abs, tag = 'smem constant byte address 0x4 - core index']
  #allocation1 [shape = 'u32[144,128]{1,0:T(1,128)}', space=vmem, size = 0x12000, scoped, tag = 'internal scratch']
  %s0 = inlined_call_operand.vmem [shape: f32[24,512], index: 0, kind: input, shape index: {}]
  %s1 = inlined_call_operand.vmem [shape: f32[5,32,32], index: 1, kind: input, shape index: {}]
  %s2 = inlined_call_operand.vmem [shape: f32[24,8], index: 2, kind: input, shape index: {}]
  %s3 = inlined_call_operand.vmem [shape: f32[16,512], index: 3, kind: output, shape index: {}]
  %s4 = sld [smem:[#allocation0]]
  $region22: #{top_model_forward.3} parent=0
    _
  %s6 = ssub.s32 1, %s4
  %s7 = scalar_select 0, %s6, %s4
  // Predicated region
  $region2: #{top_model_forward.3} parent=0 // pred_check
    _
  $region3: #{top_model_forward.3} parent=0 // pred_check_branch
    %9 = sbr.rel (0) target = $region5
  $region4: #{top_model_forward.3} parent=0 // pred_region
    _
  $region5: #{top_model_forward.3} parent=0 // pred_fallthru
    _
  // Predicated region
  $region6: #{top_model_forward.3} parent=0 // pred_check
    _
  $region7: #{top_model_forward.3} parent=0 // pred_check_branch
    %11 = sbr.rel (0) target = $region9
  $region8: #{top_model_forward.3} parent=0 // pred_region
    _
  $region9: #{top_model_forward.3} parent=0 // pred_fallthru
    _
  // Predicated region
  $region10: #{top_model_forward.3} parent=0 // pred_check
    _
  $region11: #{top_model_forward.3} parent=0 // pred_check_branch
    %13 = sbr.rel (0) target = $region13
  $region12: #{top_model_forward.3} parent=0 // pred_region
    _
  $region13: #{top_model_forward.3} parent=0 // pred_fallthru
    _
  %v14 = vld [vmem:[%s2] sm:$0xff]
  %v15 = vld [vmem:[%s2 + $0x8] sm:$0xff]
  %v16 = vld [vmem:[%s2 + $0x10] sm:$0xff]
  %s17 = scalar_lea.vmem %s1, 128
  %v18 = vld [vmem:[%s17] sm:$0xff]
  %v19 = vld [vmem:[%s17 + $0x8] sm:$0xff]
  %v20 = vld [vmem:[%s17 + $0x10] sm:$0xff]
  %v21 = vld [vmem:[%s0] sm:$0xff]
  %v22 = vld [vmem:[%s0 + $0x8] sm:$0xff]
  %v23 = vld [vmem:[%s0 + $0x10] sm:$0xff]
  %v24 = vld [vmem:[%s0 + $0x18] sm:$0xff]
  %v25 = vld [vmem:[%s0 + $0x20] sm:$0xff]
  %v26 = vld [vmem:[%s0 + $0x28] sm:$0xff]
  %v27 = vld [vmem:[%s0 + $0x30] sm:$0xff]
  %v28 = vld [vmem:[%s0 + $0x38] sm:$0xff]
  %v29 = vld [vmem:[%s0 + $0x40] sm:$0xff]
  %v30 = vld [vmem:[%s0 + $0x48] sm:$0xff]
  %v31 = vld [vmem:[%s0 + $0x50] sm:$0xff]
  %v32 = vld [vmem:[%s0 + $0x58] sm:$0xff]
  %v33 = vld [vmem:[%s1] sm:$0xff]
  %v34 = vld [vmem:[%s1 + $0x8] sm:$0xff]
  %v35 = vld [vmem:[%s1 + $0x10] sm:$0xff]
  %37 = vset.pattern.permute.xlu0 0
  %38 = vperm.xlu0 %37, %v14
  %v39 = vpop.permute.xlu0 %38
  %42 = vset.pattern.permute.xlu0 0
  %43 = vperm.xlu0 %42, %v15
  %v44 = vpop.permute.xlu0 %43
  %47 = vset.pattern.permute.xlu0 0
  %48 = vperm.xlu0 %47, %v16
  %v49 = vpop.permute.xlu0 %48
  %v51 = vmul.f32 %v21, %v39
  %v52 = vmul.f32 %v22, %v39
  %v53 = vmul.f32 %v23, %v39
  %v54 = vmul.f32 %v24, %v39
  %v55 = vmul.f32 %v25, %v44
  %v56 = vmul.f32 %v26, %v44
  %v57 = vmul.f32 %v27, %v44
  %v58 = vmul.f32 %v28, %v44
  %v59 = vmul.f32 %v29, %v49
  %v60 = vmul.f32 %v30, %v49
  %v61 = vmul.f32 %v31, %v49
  %v62 = vmul.f32 %v32, %v49
  %63 = vset.pattern.permute.xlu0 4
  %64 = vperm.xlu0 %63, %v14
  %v65 = vpop.permute.xlu0 %64
  %67 = vset.pattern.permute.xlu0 4
  %68 = vperm.xlu0 %67, %v15
  %v69 = vpop.permute.xlu0 %68
  %71 = vset.pattern.permute.xlu0 4
  %72 = vperm.xlu0 %71, %v16
  %v73 = vpop.permute.xlu0 %72
  %v75 = vadd.f32 %v51, %v65
  %v76 = vadd.f32 %v52, %v65
  %v77 = vadd.f32 %v53, %v65
  %v78 = vadd.f32 %v54, %v65
  %v79 = vadd.f32 %v55, %v69
  %v80 = vadd.f32 %v56, %v69
  %v81 = vadd.f32 %v57, %v69
  %v82 = vadd.f32 %v58, %v69
  %v83 = vadd.f32 %v59, %v73
  %v84 = vadd.f32 %v60, %v73
  %v85 = vadd.f32 %v61, %v73
  %v86 = vadd.f32 %v62, %v73
  %v87 = vmax.f32 %v75, 0.0
  %v88 = vmax.f32 %v76, 0.0
  %v89 = vmax.f32 %v77, 0.0
  %v90 = vmax.f32 %v78, 0.0
  %v91 = vmax.f32 %v79, 0.0
  %v92 = vmax.f32 %v80, 0.0
  %v93 = vmax.f32 %v81, 0.0
  %v94 = vmax.f32 %v82, 0.0
  %v95 = vmax.f32 %v83, 0.0
  %v96 = vmax.f32 %v84, 0.0
  %v97 = vmax.f32 %v85, 0.0
  %v98 = vmax.f32 %v86, 0.0
  %100 = vset.pattern.permute.xlu0 0
  %101 = vperm.xlu0 %100, %v18
  %v102 = vpop.permute.xlu0 %101
  %105 = vset.pattern.permute.xlu0 0
  %106 = vperm.xlu0 %105, %v19
  %v107 = vpop.permute.xlu0 %106
  %110 = vset.pattern.permute.xlu0 0
  %111 = vperm.xlu0 %110, %v20
  %v112 = vpop.permute.xlu0 %111
  %vm114 = vcmask 195584
  %v116 = vsel %vm114, %v33, 0
  %v119 = vsel %vm114, %v34, 0
  %v122 = vsel %vm114, %v35, 0
  %124 = vmatprep.subr.mxu0 %v88
  %125 = vmatpush1.msra.mxu0 %v87
  %126 = vmatprep.subr.mxu0 %v92
  %127 = vmatpush1.msra.mxu0 %v91
  %128 = vmatprep.subr.mxu0 %v96
  %129 = vmatpush1.msra.mxu0 %v95
  %130 = vmatprep.subr.mxu0 0.0
  %131 = vmatpush1.msra.mxu0 0.0
  %132 = vmatprep.subr.mxu0 0.0
  %133 = vmatpush1.msra.mxu0 0.0
  %134 = vmatprep.subr.mxu0 0.0
  %135 = vmatpush1.msra.mxu0 0.0
  %136 = vmatprep.subr.mxu0 0.0
  %137 = vmatpush1.msra.mxu0 0.0
  %138 = vmatprep.subr.mxu0 0.0
  %139 = vmatpush1.msra.mxu0 0.0
  %140 = vmatprep.subr.mxu0 0.0
  %141 = vmatpush1.msra.mxu0 0.0
  %142 = vmatprep.subr.mxu0 0.0
  %143 = vmatpush1.msra.mxu0 0.0
  %144 = vmatprep.subr.mxu0 0.0
  %145 = vmatpush1.msra.mxu0 0.0
  %146 = vmatprep.subr.mxu0 0.0
  %147 = vmatpush1.msra.mxu0 0.0
  %148 = vmatprep.subr.mxu0 0.0
  %149 = vmatpush1.msra.mxu0 0.0
  %150 = vmatprep.subr.mxu0 0.0
  %151 = vmatpush1.msra.mxu0 0.0
  %152 = vmatprep.subr.mxu0 0.0
  %153 = vmatpush1.msra.mxu0 0.0
  %154 = vmatprep.subr.mxu0 0.0
  %155 = vmatpush1.msra.mxu0 0.0
  %156 = vmatprep.subr.mxu0 0.0
  %157 = vmatpush1.msra.mxu0 0.0
  %158 = vmatprep.subr.mxu0 0.0
  %159 = vmatpush1.msra.mxu0 0.0
  %160 = vmatprep.subr.mxu0 0.0
  %161 = vmatpush1.msra.mxu0 0.0
  %162 = vmatprep.subr.mxu0 0.0
  %163 = vmatpush1.msra.mxu0 0.0
  %164 = vmatprep.subr.mxu0 0.0
  %165 = vmatpush1.msra.mxu0 0.0
  %166 = vmatprep.subr.mxu0 0.0
  %167 = vmatpush1.msra.mxu0 0.0
  %168 = vmatprep.subr.mxu0 0.0
  %169 = vmatpush1.msra.mxu0 0.0
  %170 = vmatprep.subr.mxu0 0.0
  %171 = vmatpush1.msra.mxu0 0.0
  %172 = vmatprep.subr.mxu0 0.0
  %173 = vmatpush1.msra.mxu0 0.0
  %174 = vmatprep.subr.mxu0 0.0
  %175 = vmatpush1.msra.mxu0 0.0
  %176 = vmatprep.subr.mxu0 0.0
  %177 = vmatpush1.msra.mxu0 0.0
  %178 = vmatprep.subr.mxu0 0.0
  %179 = vmatpush1.msra.mxu0 0.0
  %180 = vmatprep.subr.mxu0 0.0
  %181 = vmatpush1.msra.mxu0 0.0
  %182 = vmatprep.subr.mxu0 0.0
  %183 = vmatpush1.msra.mxu0 0.0
  %184 = vmatprep.subr.mxu0 0.0
  %185 = vmatpush1.msra.mxu0 0.0
  %186 = vmatprep.subr.mxu0 0.0
  %187 = vmatpush1.msra.mxu0 0.0
  %188 = vmatprep.mubr.f32.mxu0 0.0
  %189 = vmatmul.mubr.f32.gmra.mrb[0].mxu0 %v116
  %v190 = vpop.f32.mrb[0].mxu0
  %v191 = vadd.f32 %v102, %v190
  %v192 = vpop.f32.mrb[0].mxu0
  %v193 = vadd.f32 %v102, %v192
  %194 = vmatprep.mubr.f32.mxu0 0.0
  %195 = vmatmul.mubr.f32.gmra.mrb[0].mxu0 %v119
  %v196 = vpop.f32.mrb[0].mxu0
  %v197 = vadd.f32 %v107, %v196
  %v198 = vpop.f32.mrb[0].mxu0
  %v199 = vadd.f32 %v107, %v198
  %200 = vmatprep.mubr.f32.mxu0 0.0
  %201 = vmatmul.mubr.f32.gmra.mrb[0].mxu0 %v122
  %v202 = vpop.f32.mrb[0].mxu0
  %v203 = vadd.f32 %v112, %v202
  %v204 = vpop.f32.mrb[0].mxu0
  %v205 = vadd.f32 %v112, %v204
  %206 = vdwg.mxu0
  %207 = vmatprep.subr.mxu0 %v90
  %208 = vmatpush1.msra.mxu0 %v89
  %209 = vmatprep.subr.mxu0 %v94
  %210 = vmatpush1.msra.mxu0 %v93
  %211 = vmatprep.subr.mxu0 %v98
  %212 = vmatpush1.msra.mxu0 %v97
  %213 = vmatprep.subr.mxu0 0.0
  %214 = vmatpush1.msra.mxu0 0.0
  %215 = vmatprep.subr.mxu0 0.0
  %216 = vmatpush1.msra.mxu0 0.0
  %217 = vmatprep.subr.mxu0 0.0
  %218 = vmatpush1.msra.mxu0 0.0
  %219 = vmatprep.subr.mxu0 0.0
  %220 = vmatpush1.msra.mxu0 0.0
  %221 = vmatprep.subr.mxu0 0.0
  %222 = vmatpush1.msra.mxu0 0.0
  %223 = vmatprep.subr.mxu0 0.0
  %224 = vmatpush1.msra.mxu0 0.0
  %225 = vmatprep.subr.mxu0 0.0
  %226 = vmatpush1.msra.mxu0 0.0
  %227 = vmatprep.subr.mxu0 0.0
  %228 = vmatpush1.msra.mxu0 0.0
  %229 = vmatprep.subr.mxu0 0.0
  %230 = vmatpush1.msra.mxu0 0.0
  %231 = vmatprep.subr.mxu0 0.0
  %232 = vmatpush1.msra.mxu0 0.0
  %233 = vmatprep.subr.mxu0 0.0
  %234 = vmatpush1.msra.mxu0 0.0
  %235 = vmatprep.subr.mxu0 0.0
  %236 = vmatpush1.msra.mxu0 0.0
  %237 = vmatprep.subr.mxu0 0.0
  %238 = vmatpush1.msra.mxu0 0.0
  %239 = vmatprep.subr.mxu0 0.0
  %240 = vmatpush1.msra.mxu0 0.0
  %241 = vmatprep.subr.mxu0 0.0
  %242 = vmatpush1.msra.mxu0 0.0
  %243 = vmatprep.subr.mxu0 0.0
  %244 = vmatpush1.msra.mxu0 0.0
  %245 = vmatprep.subr.mxu0 0.0
  %246 = vmatpush1.msra.mxu0 0.0
  %247 = vmatprep.subr.mxu0 0.0
  %248 = vmatpush1.msra.mxu0 0.0
  %249 = vmatprep.subr.mxu0 0.0
  %250 = vmatpush1.msra.mxu0 0.0
  %251 = vmatprep.subr.mxu0 0.0
  %252 = vmatpush1.msra.mxu0 0.0
  %253 = vmatprep.subr.mxu0 0.0
  %254 = vmatpush1.msra.mxu0 0.0
  %255 = vmatprep.subr.mxu0 0.0
  %256 = vmatpush1.msra.mxu0 0.0
  %257 = vmatprep.subr.mxu0 0.0
  %258 = vmatpush1.msra.mxu0 0.0
  %259 = vmatprep.subr.mxu0 0.0
  %260 = vmatpush1.msra.mxu0 0.0
  %261 = vmatprep.subr.mxu0 0.0
  %262 = vmatpush1.msra.mxu0 0.0
  %263 = vmatprep.subr.mxu0 0.0
  %264 = vmatpush1.msra.mxu0 0.0
  %265 = vmatprep.subr.mxu0 0.0
  %266 = vmatpush1.msra.mxu0 0.0
  %267 = vmatprep.subr.mxu0 0.0
  %268 = vmatpush1.msra.mxu0 0.0
  %269 = vmatprep.subr.mxu0 0.0
  %270 = vmatpush1.msra.mxu0 0.0
  %271 = vmatprep.mubr.f32.mxu0 0.0
  %272 = vmatmul.mubr.f32.gmra.mrb[0].mxu0 %v116
  %v273 = vpop.f32.mrb[0].mxu0
  %v274 = vadd.f32 %v102, %v273
  %v275 = vpop.f32.mrb[0].mxu0
  %v276 = vadd.f32 %v102, %v275
  %277 = vmatprep.mubr.f32.mxu0 0.0
  %278 = vmatmul.mubr.f32.gmra.mrb[0].mxu0 %v119
  %v279 = vpop.f32.mrb[0].mxu0
  %v280 = vadd.f32 %v107, %v279
  %v281 = vpop.f32.mrb[0].mxu0
  %v282 = vadd.f32 %v107, %v281
  %283 = vmatprep.mubr.f32.mxu0 0.0
  %284 = vmatmul.mubr.f32.gmra.mrb[0].mxu0 %v122
  %v285 = vpop.f32.mrb[0].mxu0
  %v286 = vadd.f32 %v112, %v285
  %v287 = vpop.f32.mrb[0].mxu0
  %v288 = vadd.f32 %v112, %v287
  %289 = vdwg.mxu0
  %s290 = scalar_lea.vmem %s1, 32
  %v291 = vld [vmem:[%s290] sm:$0xff]
  %v292 = vld [vmem:[%s290 + $0x8] sm:$0xff]
  %293 = vset.pattern.permute.xlu0 1
  %294 = vperm.xlu0 %293, %v14
  %v295 = vpop.permute.xlu0 %294
  %297 = vset.pattern.permute.xlu0 1
  %298 = vperm.xlu0 %297, %v15
  %v299 = vpop.permute.xlu0 %298
  %301 = vset.pattern.permute.xlu0 1
  %302 = vperm.xlu0 %301, %v16
  %v303 = vpop.permute.xlu0 %302
  %v305 = vmul.f32 %v191, %v295
  %v306 = vmul.f32 %v193, %v295
  %v307 = vmul.f32 %v274, %v295
  %v308 = vmul.f32 %v276, %v295
  %v309 = vmul.f32 %v197, %v299
  %v310 = vmul.f32 %v199, %v299
  %v311 = vmul.f32 %v280, %v299
  %v312 = vmul.f32 %v282, %v299
  %v313 = vmul.f32 %v203, %v303
  %v314 = vmul.f32 %v205, %v303
  %v315 = vmul.f32 %v286, %v303
  %v316 = vmul.f32 %v288, %v303
  %317 = vset.pattern.permute.xlu0 5
  %318 = vperm.xlu0 %317, %v14
  %v319 = vpop.permute.xlu0 %318
  %321 = vset.pattern.permute.xlu0 5
  %322 = vperm.xlu0 %321, %v15
  %v323 = vpop.permute.xlu0 %322
  %325 = vset.pattern.permute.xlu0 5
  %326 = vperm.xlu0 %325, %v16
  %v327 = vpop.permute.xlu0 %326
  %v329 = vadd.f32 %v305, %v319
  %v330 = vadd.f32 %v306, %v319
  %v331 = vadd.f32 %v307, %v319
  %v332 = vadd.f32 %v308, %v319
  %v333 = vadd.f32 %v309, %v323
  %v334 = vadd.f32 %v310, %v323
  %v335 = vadd.f32 %v311, %v323
  %v336 = vadd.f32 %v312, %v323
  %v337 = vadd.f32 %v313, %v327
  %v338 = vadd.f32 %v314, %v327
  %v339 = vadd.f32 %v315, %v327
  %v340 = vadd.f32 %v316, %v327
  %v341 = vmax.f32 %v329, 0.0
  %v342 = vmax.f32 %v330, 0.0
  %v343 = vmax.f32 %v331, 0.0
  %v344 = vmax.f32 %v332, 0.0
  %v345 = vmax.f32 %v333, 0.0
  %v346 = vmax.f32 %v334, 0.0
  %v347 = vmax.f32 %v335, 0.0
  %v348 = vmax.f32 %v336, 0.0
  %v349 = vmax.f32 %v337, 0.0
  %v350 = vmax.f32 %v338, 0.0
  %v351 = vmax.f32 %v339, 0.0
  %v352 = vmax.f32 %v340, 0.0
  %353 = vset.pattern.permute.xlu0 1
  %354 = vperm.xlu0 %353, %v18
  %v355 = vpop.permute.xlu0 %354
  %357 = vset.pattern.permute.xlu0 1
  %358 = vperm.xlu0 %357, %v19
  %v359 = vpop.permute.xlu0 %358
  %v362 = vsel %vm114, %v291, 0
  %v365 = vsel %vm114, %v292, 0
  %367 = vmatprep.subr.mxu0 %v342
  %368 = vmatpush1.msra.mxu0 %v341
  %369 = vmatprep.subr.mxu0 %v346
  %370 = vmatpush1.msra.mxu0 %v345
  %371 = vmatprep.subr.mxu0 %v350
  %372 = vmatpush1.msra.mxu0 %v349
  %373 = vmatprep.subr.mxu0 0.0
  %374 = vmatpush1.msra.mxu0 0.0
  %375 = vmatprep.subr.mxu0 0.0
  %376 = vmatpush1.msra.mxu0 0.0
  %377 = vmatprep.subr.mxu0 0.0
  %378 = vmatpush1.msra.mxu0 0.0
  %379 = vmatprep.subr.mxu0 0.0
  %380 = vmatpush1.msra.mxu0 0.0
  %381 = vmatprep.subr.mxu0 0.0
  %382 = vmatpush1.msra.mxu0 0.0
  %383 = vmatprep.subr.mxu0 0.0
  %384 = vmatpush1.msra.mxu0 0.0
  %385 = vmatprep.subr.mxu0 0.0
  %386 = vmatpush1.msra.mxu0 0.0
  %387 = vmatprep.subr.mxu0 0.0
  %388 = vmatpush1.msra.mxu0 0.0
  %389 = vmatprep.subr.mxu0 0.0
  %390 = vmatpush1.msra.mxu0 0.0
  %391 = vmatprep.subr.mxu0 0.0
  %392 = vmatpush1.msra.mxu0 0.0
  %393 = vmatprep.subr.mxu0 0.0
  %394 = vmatpush1.msra.mxu0 0.0
  %395 = vmatprep.subr.mxu0 0.0
  %396 = vmatpush1.msra.mxu0 0.0
  %397 = vmatprep.subr.mxu0 0.0
  %398 = vmatpush1.msra.mxu0 0.0
  %399 = vmatprep.subr.mxu0 0.0
  %400 = vmatpush1.msra.mxu0 0.0
  %401 = vmatprep.subr.mxu0 0.0
  %402 = vmatpush1.msra.mxu0 0.0
  %403 = vmatprep.subr.mxu0 0.0
  %404 = vmatpush1.msra.mxu0 0.0
  %405 = vmatprep.subr.mxu0 0.0
  %406 = vmatpush1.msra.mxu0 0.0
  %407 = vmatprep.subr.mxu0 0.0
  %408 = vmatpush1.msra.mxu0 0.0
  %409 = vmatprep.subr.mxu0 0.0
  %410 = vmatpush1.msra.mxu0 0.0
  %411 = vmatprep.subr.mxu0 0.0
  %412 = vmatpush1.msra.mxu0 0.0
  %413 = vmatprep.subr.mxu0 0.0
  %414 = vmatpush1.msra.mxu0 0.0
  %415 = vmatprep.subr.mxu0 0.0
  %416 = vmatpush1.msra.mxu0 0.0
  %417 = vmatprep.subr.mxu0 0.0
  %418 = vmatpush1.msra.mxu0 0.0
  %419 = vmatprep.subr.mxu0 0.0
  %420 = vmatpush1.msra.mxu0 0.0
  %421 = vmatprep.subr.mxu0 0.0
  %422 = vmatpush1.msra.mxu0 0.0
  %423 = vmatprep.subr.mxu0 0.0
  %424 = vmatpush1.msra.mxu0 0.0
  %425 = vmatprep.subr.mxu0 0.0
  %426 = vmatpush1.msra.mxu0 0.0
  %427 = vmatprep.subr.mxu0 0.0
  %428 = vmatpush1.msra.mxu0 0.0
  %429 = vmatprep.subr.mxu0 0.0
  %430 = vmatpush1.msra.mxu0 0.0
  %431 = vmatprep.mubr.f32.mxu0 0.0
  %432 = vmatmul.mubr.f32.gmra.mrb[0].mxu0 %v362
  %v433 = vpop.f32.mrb[0].mxu0
  %v434 = vadd.f32 %v355, %v433
  %v435 = vpop.f32.mrb[0].mxu0
  %v436 = vadd.f32 %v355, %v435
  %437 = vmatprep.mubr.f32.mxu0 0.0
  %438 = vmatmul.mubr.f32.gmra.mrb[0].mxu0 %v365
  %v439 = vpop.f32.mrb[0].mxu0
  %v440 = vadd.f32 %v359, %v439
  %v441 = vpop.f32.mrb[0].mxu0
  %v442 = vadd.f32 %v359, %v441
  %443 = vdwg.mxu0
  %444 = vmatprep.subr.mxu0 %v344
  %445 = vmatpush1.msra.mxu0 %v343
  %446 = vmatprep.subr.mxu0 %v348
  %447 = vmatpush1.msra.mxu0 %v347
  %448 = vmatprep.subr.mxu0 %v352
  %449 = vmatpush1.msra.mxu0 %v351
  %450 = vmatprep.subr.mxu0 0.0
  %451 = vmatpush1.msra.mxu0 0.0
  %452 = vmatprep.subr.mxu0 0.0
  %453 = vmatpush1.msra.mxu0 0.0
  %454 = vmatprep.subr.mxu0 0.0
  %455 = vmatpush1.msra.mxu0 0.0
  %456 = vmatprep.subr.mxu0 0.0
  %457 = vmatpush1.msra.mxu0 0.0
  %458 = vmatprep.subr.mxu0 0.0
  %459 = vmatpush1.msra.mxu0 0.0
  %460 = vmatprep.subr.mxu0 0.0
  %461 = vmatpush1.msra.mxu0 0.0
  %462 = vmatprep.subr.mxu0 0.0
  %463 = vmatpush1.msra.mxu0 0.0
  %464 = vmatprep.subr.mxu0 0.0
  %465 = vmatpush1.msra.mxu0 0.0
  %466 = vmatprep.subr.mxu0 0.0
  %467 = vmatpush1.msra.mxu0 0.0
  %468 = vmatprep.subr.mxu0 0.0
  %469 = vmatpush1.msra.mxu0 0.0
  %470 = vmatprep.subr.mxu0 0.0
  %471 = vmatpush1.msra.mxu0 0.0
  %472 = vmatprep.subr.mxu0 0.0
  %473 = vmatpush1.msra.mxu0 0.0
  %474 = vmatprep.subr.mxu0 0.0
  %475 = vmatpush1.msra.mxu0 0.0
  %476 = vmatprep.subr.mxu0 0.0
  %477 = vmatpush1.msra.mxu0 0.0
  %478 = vmatprep.subr.mxu0 0.0
  %479 = vmatpush1.msra.mxu0 0.0
  %480 = vmatprep.subr.mxu0 0.0
  %481 = vmatpush1.msra.mxu0 0.0
  %482 = vmatprep.subr.mxu0 0.0
  %483 = vmatpush1.msra.mxu0 0.0
  %484 = vmatprep.subr.mxu0 0.0
  %485 = vmatpush1.msra.mxu0 0.0
  %486 = vmatprep.subr.mxu0 0.0
  %487 = vmatpush1.msra.mxu0 0.0
  %488 = vmatprep.subr.mxu0 0.0
  %489 = vmatpush1.msra.mxu0 0.0
  %490 = vmatprep.subr.mxu0 0.0
  %491 = vmatpush1.msra.mxu0 0.0
  %492 = vmatprep.subr.mxu0 0.0
  %493 = vmatpush1.msra.mxu0 0.0
  %494 = vmatprep.subr.mxu0 0.0
  %495 = vmatpush1.msra.mxu0 0.0
  %496 = vmatprep.subr.mxu0 0.0
  %497 = vmatpush1.msra.mxu0 0.0
  %498 = vmatprep.subr.mxu0 0.0
  %499 = vmatpush1.msra.mxu0 0.0
  %500 = vmatprep.subr.mxu0 0.0
  %501 = vmatpush1.msra.mxu0 0.0
  %502 = vmatprep.subr.mxu0 0.0
  %503 = vmatpush1.msra.mxu0 0.0
  %504 = vmatprep.subr.mxu0 0.0
  %505 = vmatpush1.msra.mxu0 0.0
  %506 = vmatprep.subr.mxu0 0.0
  %507 = vmatpush1.msra.mxu0 0.0
  %508 = vmatprep.mubr.f32.mxu0 0.0
  %509 = vmatmul.mubr.f32.gmra.mrb[0].mxu0 %v362
  %v510 = vpop.f32.mrb[0].mxu0
  %v511 = vadd.f32 %v355, %v510
  %v512 = vpop.f32.mrb[0].mxu0
  %v513 = vadd.f32 %v355, %v512
  %514 = vmatprep.mubr.f32.mxu0 0.0
  %515 = vmatmul.mubr.f32.gmra.mrb[0].mxu0 %v365
  %v516 = vpop.f32.mrb[0].mxu0
  %v517 = vadd.f32 %v359, %v516
  %v518 = vpop.f32.mrb[0].mxu0
  %v519 = vadd.f32 %v359, %v518
  %520 = vdwg.mxu0
  %s521 = scalar_lea.vmem %s1, 64
  %v522 = vld [vmem:[%s521] sm:$0xff]
  %v523 = vld [vmem:[%s521 + $0x8] sm:$0xff]
  %524 = vset.pattern.permute.xlu0 2
  %525 = vperm.xlu0 %524, %v14
  %v526 = vpop.permute.xlu0 %525
  %528 = vset.pattern.permute.xlu0 2
  %529 = vperm.xlu0 %528, %v15
  %v530 = vpop.permute.xlu0 %529
  %v532 = vmul.f32 %v434, %v526
  %v533 = vmul.f32 %v436, %v526
  %v534 = vmul.f32 %v511, %v526
  %v535 = vmul.f32 %v513, %v526
  %v536 = vmul.f32 %v440, %v530
  %v537 = vmul.f32 %v442, %v530
  %v538 = vmul.f32 %v517, %v530
  %v539 = vmul.f32 %v519, %v530
  %540 = vset.pattern.permute.xlu0 6
  %541 = vperm.xlu0 %540, %v14
  %v542 = vpop.permute.xlu0 %541
  %544 = vset.pattern.permute.xlu0 6
  %545 = vperm.xlu0 %544, %v15
  %v546 = vpop.permute.xlu0 %545
  %v548 = vadd.f32 %v532, %v542
  %v549 = vadd.f32 %v533, %v542
  %v550 = vadd.f32 %v534, %v542
  %v551 = vadd.f32 %v535, %v542
  %v552 = vadd.f32 %v536, %v546
  %v553 = vadd.f32 %v537, %v546
  %v554 = vadd.f32 %v538, %v546
  %v555 = vadd.f32 %v539, %v546
  %v556 = vmax.f32 %v548, 0.0
  %v557 = vmax.f32 %v549, 0.0
  %v558 = vmax.f32 %v550, 0.0
  %v559 = vmax.f32 %v551, 0.0
  %v560 = vmax.f32 %v552, 0.0
  %v561 = vmax.f32 %v553, 0.0
  %v562 = vmax.f32 %v554, 0.0
  %v563 = vmax.f32 %v555, 0.0
  %564 = vset.pattern.permute.xlu0 2
  %565 = vperm.xlu0 %564, %v18
  %v566 = vpop.permute.xlu0 %565
  %568 = vset.pattern.permute.xlu0 2
  %569 = vperm.xlu0 %568, %v19
  %v570 = vpop.permute.xlu0 %569
  %vm572 = vcmask 130048
  %v574 = vsel %vm572, %v522, 0
  %v577 = vsel %vm572, %v523, 0
  %579 = vmatprep.subr.mxu0 %v557
  %580 = vmatpush1.msra.mxu0 %v556
  %581 = vmatprep.subr.mxu0 %v561
  %582 = vmatpush1.msra.mxu0 %v560
  %583 = vmatprep.subr.mxu0 0.0
  %584 = vmatpush1.msra.mxu0 0.0
  %585 = vmatprep.subr.mxu0 0.0
  %586 = vmatpush1.msra.mxu0 0.0
  %587 = vmatprep.subr.mxu0 0.0
  %588 = vmatpush1.msra.mxu0 0.0
  %589 = vmatprep.subr.mxu0 0.0
  %590 = vmatpush1.msra.mxu0 0.0
  %591 = vmatprep.subr.mxu0 0.0
  %592 = vmatpush1.msra.mxu0 0.0
  %593 = vmatprep.subr.mxu0 0.0
  %594 = vmatpush1.msra.mxu0 0.0
  %595 = vmatprep.subr.mxu0 0.0
  %596 = vmatpush1.msra.mxu0 0.0
  %597 = vmatprep.subr.mxu0 0.0
  %598 = vmatpush1.msra.mxu0 0.0
  %599 = vmatprep.subr.mxu0 0.0
  %600 = vmatpush1.msra.mxu0 0.0
  %601 = vmatprep.subr.mxu0 0.0
  %602 = vmatpush1.msra.mxu0 0.0
  %603 = vmatprep.subr.mxu0 0.0
  %604 = vmatpush1.msra.mxu0 0.0
  %605 = vmatprep.subr.mxu0 0.0
  %606 = vmatpush1.msra.mxu0 0.0
  %607 = vmatprep.subr.mxu0 0.0
  %608 = vmatpush1.msra.mxu0 0.0
  %609 = vmatprep.subr.mxu0 0.0
  %610 = vmatpush1.msra.mxu0 0.0
  %611 = vmatprep.subr.mxu0 0.0
  %612 = vmatpush1.msra.mxu0 0.0
  %613 = vmatprep.subr.mxu0 0.0
  %614 = vmatpush1.msra.mxu0 0.0
  %615 = vmatprep.subr.mxu0 0.0
  %616 = vmatpush1.msra.mxu0 0.0
  %617 = vmatprep.subr.mxu0 0.0
  %618 = vmatpush1.msra.mxu0 0.0
  %619 = vmatprep.subr.mxu0 0.0
  %620 = vmatpush1.msra.mxu0 0.0
  %621 = vmatprep.subr.mxu0 0.0
  %622 = vmatpush1.msra.mxu0 0.0
  %623 = vmatprep.subr.mxu0 0.0
  %624 = vmatpush1.msra.mxu0 0.0
  %625 = vmatprep.subr.mxu0 0.0
  %626 = vmatpush1.msra.mxu0 0.0
  %627 = vmatprep.subr.mxu0 0.0
  %628 = vmatpush1.msra.mxu0 0.0
  %629 = vmatprep.subr.mxu0 0.0
  %630 = vmatpush1.msra.mxu0 0.0
  %631 = vmatprep.subr.mxu0 0.0
  %632 = vmatpush1.msra.mxu0 0.0
  %633 = vmatprep.subr.mxu0 0.0
  %634 = vmatpush1.msra.mxu0 0.0
  %635 = vmatprep.subr.mxu0 0.0
  %636 = vmatpush1.msra.mxu0 0.0
  %637 = vmatprep.subr.mxu0 0.0
  %638 = vmatpush1.msra.mxu0 0.0
  %639 = vmatprep.subr.mxu0 0.0
  %640 = vmatpush1.msra.mxu0 0.0
  %641 = vmatprep.subr.mxu0 0.0
  %642 = vmatpush1.msra.mxu0 0.0
  %643 = vmatprep.mubr.f32.mxu0 0.0
  %644 = vmatmul.mubr.f32.gmra.mrb[0].mxu0 %v574
  %v645 = vpop.f32.mrb[0].mxu0
  %v646 = vadd.f32 %v566, %v645
  %v647 = vpop.f32.mrb[0].mxu0
  %v648 = vadd.f32 %v566, %v647
  %649 = vmatprep.mubr.f32.mxu0 0.0
  %650 = vmatmul.mubr.f32.gmra.mrb[0].mxu0 %v577
  %v651 = vpop.f32.mrb[0].mxu0
  %v652 = vadd.f32 %v570, %v651
  %v653 = vpop.f32.mrb[0].mxu0
  %v654 = vadd.f32 %v570, %v653
  %655 = vdwg.mxu0
  %656 = vmatprep.subr.mxu0 %v559
  %657 = vmatpush1.msra.mxu0 %v558
  %658 = vmatprep.subr.mxu0 %v563
  %659 = vmatpush1.msra.mxu0 %v562
  %660 = vmatprep.subr.mxu0 0.0
  %661 = vmatpush1.msra.mxu0 0.0
  %662 = vmatprep.subr.mxu0 0.0
  %663 = vmatpush1.msra.mxu0 0.0
  %664 = vmatprep.subr.mxu0 0.0
  %665 = vmatpush1.msra.mxu0 0.0
  %666 = vmatprep.subr.mxu0 0.0
  %667 = vmatpush1.msra.mxu0 0.0
  %668 = vmatprep.subr.mxu0 0.0
  %669 = vmatpush1.msra.mxu0 0.0
  %670 = vmatprep.subr.mxu0 0.0
  %671 = vmatpush1.msra.mxu0 0.0
  %672 = vmatprep.subr.mxu0 0.0
  %673 = vmatpush1.msra.mxu0 0.0
  %674 = vmatprep.subr.mxu0 0.0
  %675 = vmatpush1.msra.mxu0 0.0
  %676 = vmatprep.subr.mxu0 0.0
  %677 = vmatpush1.msra.mxu0 0.0
  %678 = vmatprep.subr.mxu0 0.0
  %679 = vmatpush1.msra.mxu0 0.0
  %680 = vmatprep.subr.mxu0 0.0
  %681 = vmatpush1.msra.mxu0 0.0
  %682 = vmatprep.subr.mxu0 0.0
  %683 = vmatpush1.msra.mxu0 0.0
  %684 = vmatprep.subr.mxu0 0.0
  %685 = vmatpush1.msra.mxu0 0.0
  %686 = vmatprep.subr.mxu0 0.0
  %687 = vmatpush1.msra.mxu0 0.0
  %688 = vmatprep.subr.mxu0 0.0
  %689 = vmatpush1.msra.mxu0 0.0
  %690 = vmatprep.subr.mxu0 0.0
  %691 = vmatpush1.msra.mxu0 0.0
  %692 = vmatprep.subr.mxu0 0.0
  %693 = vmatpush1.msra.mxu0 0.0
  %694 = vmatprep.subr.mxu0 0.0
  %695 = vmatpush1.msra.mxu0 0.0
  %696 = vmatprep.subr.mxu0 0.0
  %697 = vmatpush1.msra.mxu0 0.0
  %698 = vmatprep.subr.mxu0 0.0
  %699 = vmatpush1.msra.mxu0 0.0
  %700 = vmatprep.subr.mxu0 0.0
  %701 = vmatpush1.msra.mxu0 0.0
  %702 = vmatprep.subr.mxu0 0.0
  %703 = vmatpush1.msra.mxu0 0.0
  %704 = vmatprep.subr.mxu0 0.0
  %705 = vmatpush1.msra.mxu0 0.0
  %706 = vmatprep.subr.mxu0 0.0
  %707 = vmatpush1.msra.mxu0 0.0
  %708 = vmatprep.subr.mxu0 0.0
  %709 = vmatpush1.msra.mxu0 0.0
  %710 = vmatprep.subr.mxu0 0.0
  %711 = vmatpush1.msra.mxu0 0.0
  %712 = vmatprep.subr.mxu0 0.0
  %713 = vmatpush1.msra.mxu0 0.0
  %714 = vmatprep.subr.mxu0 0.0
  %715 = vmatpush1.msra.mxu0 0.0
  %716 = vmatprep.subr.mxu0 0.0
  %717 = vmatpush1.msra.mxu0 0.0
  %718 = vmatprep.subr.mxu0 0.0
  %719 = vmatpush1.msra.mxu0 0.0
  %720 = vmatprep.mubr.f32.mxu0 0.0
  %721 = vmatmul.mubr.f32.gmra.mrb[0].mxu0 %v574
  %v722 = vpop.f32.mrb[0].mxu0
  %v723 = vadd.f32 %v566, %v722
  %v724 = vpop.f32.mrb[0].mxu0
  %v725 = vadd.f32 %v566, %v724
  %726 = vmatprep.mubr.f32.mxu0 0.0
  %727 = vmatmul.mubr.f32.gmra.mrb[0].mxu0 %v577
  %v728 = vpop.f32.mrb[0].mxu0
  %v729 = vadd.f32 %v570, %v728
  %v730 = vpop.f32.mrb[0].mxu0
  %v731 = vadd.f32 %v570, %v730
  %732 = vdwg.mxu0
  %s733 = scalar_lea.vmem %s1, 96
  %v734 = vld [vmem:[%s733] sm:$0xff]
  %v735 = vld [vmem:[%s733 + $0x8] sm:$0xff]
  %736 = vset.pattern.permute.xlu0 3
  %737 = vperm.xlu0 %736, %v14
  %v738 = vpop.permute.xlu0 %737
  %740 = vset.pattern.permute.xlu0 3
  %741 = vperm.xlu0 %740, %v15
  %v742 = vpop.permute.xlu0 %741
  %v744 = vmul.f32 %v646, %v738
  %v745 = vmul.f32 %v648, %v738
  %v746 = vmul.f32 %v723, %v738
  %v747 = vmul.f32 %v725, %v738
  %v748 = vmul.f32 %v652, %v742
  %v749 = vmul.f32 %v654, %v742
  %v750 = vmul.f32 %v729, %v742
  %v751 = vmul.f32 %v731, %v742
  %752 = vset.pattern.permute.xlu0 7
  %753 = vperm.xlu0 %752, %v14
  %v754 = vpop.permute.xlu0 %753
  %756 = vset.pattern.permute.xlu0 7
  %757 = vperm.xlu0 %756, %v15
  %v758 = vpop.permute.xlu0 %757
  %v760 = vadd.f32 %v744, %v754
  %v761 = vadd.f32 %v745, %v754
  %v762 = vadd.f32 %v746, %v754
  %v763 = vadd.f32 %v747, %v754
  %v764 = vadd.f32 %v748, %v758
  %v765 = vadd.f32 %v749, %v758
  %v766 = vadd.f32 %v750, %v758
  %v767 = vadd.f32 %v751, %v758
  %v768 = vmax.f32 %v760, 0.0
  %v769 = vmax.f32 %v761, 0.0
  %v770 = vmax.f32 %v762, 0.0
  %v771 = vmax.f32 %v763, 0.0
  %v772 = vmax.f32 %v764, 0.0
  %v773 = vmax.f32 %v765, 0.0
  %v774 = vmax.f32 %v766, 0.0
  %v775 = vmax.f32 %v767, 0.0
  %776 = vset.pattern.permute.xlu0 3
  %777 = vperm.xlu0 %776, %v18
  %v778 = vpop.permute.xlu0 %777
  %780 = vset.pattern.permute.xlu0 3
  %781 = vperm.xlu0 %780, %v19
  %v782 = vpop.permute.xlu0 %781
  %v785 = vsel %vm572, %v734, 0
  %v788 = vsel %vm572, %v735, 0
  %790 = vmatprep.subr.mxu0 %v769
  %791 = vmatpush1.msra.mxu0 %v768
  %792 = vmatprep.subr.mxu0 %v773
  %793 = vmatpush1.msra.mxu0 %v772
  %794 = vmatprep.subr.mxu0 0.0
  %795 = vmatpush1.msra.mxu0 0.0
  %796 = vmatprep.subr.mxu0 0.0
  %797 = vmatpush1.msra.mxu0 0.0
  %798 = vmatprep.subr.mxu0 0.0
  %799 = vmatpush1.msra.mxu0 0.0
  %800 = vmatprep.subr.mxu0 0.0
  %801 = vmatpush1.msra.mxu0 0.0
  %802 = vmatprep.subr.mxu0 0.0
  %803 = vmatpush1.msra.mxu0 0.0
  %804 = vmatprep.subr.mxu0 0.0
  %805 = vmatpush1.msra.mxu0 0.0
  %806 = vmatprep.subr.mxu0 0.0
  %807 = vmatpush1.msra.mxu0 0.0
  %808 = vmatprep.subr.mxu0 0.0
  %809 = vmatpush1.msra.mxu0 0.0
  %810 = vmatprep.subr.mxu0 0.0
  %811 = vmatpush1.msra.mxu0 0.0
  %812 = vmatprep.subr.mxu0 0.0
  %813 = vmatpush1.msra.mxu0 0.0
  %814 = vmatprep.subr.mxu0 0.0
  %815 = vmatpush1.msra.mxu0 0.0
  %816 = vmatprep.subr.mxu0 0.0
  %817 = vmatpush1.msra.mxu0 0.0
  %818 = vmatprep.subr.mxu0 0.0
  %819 = vmatpush1.msra.mxu0 0.0
  %820 = vmatprep.subr.mxu0 0.0
  %821 = vmatpush1.msra.mxu0 0.0
  %822 = vmatprep.subr.mxu0 0.0
  %823 = vmatpush1.msra.mxu0 0.0
  %824 = vmatprep.subr.mxu0 0.0
  %825 = vmatpush1.msra.mxu0 0.0
  %826 = vmatprep.subr.mxu0 0.0
  %827 = vmatpush1.msra.mxu0 0.0
  %828 = vmatprep.subr.mxu0 0.0
  %829 = vmatpush1.msra.mxu0 0.0
  %830 = vmatprep.subr.mxu0 0.0
  %831 = vmatpush1.msra.mxu0 0.0
  %832 = vmatprep.subr.mxu0 0.0
  %833 = vmatpush1.msra.mxu0 0.0
  %834 = vmatprep.subr.mxu0 0.0
  %835 = vmatpush1.msra.mxu0 0.0
  %836 = vmatprep.subr.mxu0 0.0
  %837 = vmatpush1.msra.mxu0 0.0
  %838 = vmatprep.subr.mxu0 0.0
  %839 = vmatpush1.msra.mxu0 0.0
  %840 = vmatprep.subr.mxu0 0.0
  %841 = vmatpush1.msra.mxu0 0.0
  %842 = vmatprep.subr.mxu0 0.0
  %843 = vmatpush1.msra.mxu0 0.0
  %844 = vmatprep.subr.mxu0 0.0
  %845 = vmatpush1.msra.mxu0 0.0
  %846 = vmatprep.subr.mxu0 0.0
  %847 = vmatpush1.msra.mxu0 0.0
  %848 = vmatprep.subr.mxu0 0.0
  %849 = vmatpush1.msra.mxu0 0.0
  %850 = vmatprep.subr.mxu0 0.0
  %851 = vmatpush1.msra.mxu0 0.0
  %852 = vmatprep.subr.mxu0 0.0
  %853 = vmatpush1.msra.mxu0 0.0
  %854 = vmatprep.mubr.f32.mxu0 0.0
  %855 = vmatmul.mubr.f32.gmra.mrb[0].mxu0 %v785
  %v856 = vpop.f32.mrb[0].mxu0
  %v857 = vadd.f32 %v778, %v856
  %v858 = vpop.f32.mrb[0].mxu0
  %v859 = vadd.f32 %v778, %v858
  %860 = vmatprep.mubr.f32.mxu0 0.0
  %861 = vmatmul.mubr.f32.gmra.mrb[0].mxu0 %v788
  %v862 = vpop.f32.mrb[0].mxu0
  %v863 = vadd.f32 %v782, %v862
  %v864 = vpop.f32.mrb[0].mxu0
  %v865 = vadd.f32 %v782, %v864
  %866 = vdwg.mxu0
  %867 = vmatprep.subr.mxu0 %v771
  %868 = vmatpush1.msra.mxu0 %v770
  %869 = vmatprep.subr.mxu0 %v775
  %870 = vmatpush1.msra.mxu0 %v774
  %871 = vmatprep.subr.mxu0 0.0
  %872 = vmatpush1.msra.mxu0 0.0
  %873 = vmatprep.subr.mxu0 0.0
  %874 = vmatpush1.msra.mxu0 0.0
  %875 = vmatprep.subr.mxu0 0.0
  %876 = vmatpush1.msra.mxu0 0.0
  %877 = vmatprep.subr.mxu0 0.0
  %878 = vmatpush1.msra.mxu0 0.0
  %879 = vmatprep.subr.mxu0 0.0
  %880 = vmatpush1.msra.mxu0 0.0
  %881 = vmatprep.subr.mxu0 0.0
  %882 = vmatpush1.msra.mxu0 0.0
  %883 = vmatprep.subr.mxu0 0.0
  %884 = vmatpush1.msra.mxu0 0.0
  %885 = vmatprep.subr.mxu0 0.0
  %886 = vmatpush1.msra.mxu0 0.0
  %887 = vmatprep.subr.mxu0 0.0
  %888 = vmatpush1.msra.mxu0 0.0
  %889 = vmatprep.subr.mxu0 0.0
  %890 = vmatpush1.msra.mxu0 0.0
  %891 = vmatprep.subr.mxu0 0.0
  %892 = vmatpush1.msra.mxu0 0.0
  %893 = vmatprep.subr.mxu0 0.0
  %894 = vmatpush1.msra.mxu0 0.0
  %895 = vmatprep.subr.mxu0 0.0
  %896 = vmatpush1.msra.mxu0 0.0
  %897 = vmatprep.subr.mxu0 0.0
  %898 = vmatpush1.msra.mxu0 0.0
  %899 = vmatprep.subr.mxu0 0.0
  %900 = vmatpush1.msra.mxu0 0.0
  %901 = vmatprep.subr.mxu0 0.0
  %902 = vmatpush1.msra.mxu0 0.0
  %903 = vmatprep.subr.mxu0 0.0
  %904 = vmatpush1.msra.mxu0 0.0
  %905 = vmatprep.subr.mxu0 0.0
  %906 = vmatpush1.msra.mxu0 0.0
  %907 = vmatprep.subr.mxu0 0.0
  %908 = vmatpush1.msra.mxu0 0.0
  %909 = vmatprep.subr.mxu0 0.0
  %910 = vmatpush1.msra.mxu0 0.0
  %911 = vmatprep.subr.mxu0 0.0
  %912 = vmatpush1.msra.mxu0 0.0
  %913 = vmatprep.subr.mxu0 0.0
  %914 = vmatpush1.msra.mxu0 0.0
  %915 = vmatprep.subr.mxu0 0.0
  %916 = vmatpush1.msra.mxu0 0.0
  %917 = vmatprep.subr.mxu0 0.0
  %918 = vmatpush1.msra.mxu0 0.0
  %919 = vmatprep.subr.mxu0 0.0
  %920 = vmatpush1.msra.mxu0 0.0
  %921 = vmatprep.subr.mxu0 0.0
  %922 = vmatpush1.msra.mxu0 0.0
  %923 = vmatprep.subr.mxu0 0.0
  %924 = vmatpush1.msra.mxu0 0.0
  %925 = vmatprep.subr.mxu0 0.0
  %926 = vmatpush1.msra.mxu0 0.0
  %927 = vmatprep.subr.mxu0 0.0
  %928 = vmatpush1.msra.mxu0 0.0
  %929 = vmatprep.subr.mxu0 0.0
  %930 = vmatpush1.msra.mxu0 0.0
  %931 = vmatprep.mubr.f32.mxu0 0.0
  %932 = vmatmul.mubr.f32.gmra.mrb[0].mxu0 %v785
  %v933 = vpop.f32.mrb[0].mxu0
  %v934 = vadd.f32 %v778, %v933
  %v935 = vpop.f32.mrb[0].mxu0
  %v936 = vadd.f32 %v778, %v935
  %937 = vmatprep.mubr.f32.mxu0 0.0
  %938 = vmatmul.mubr.f32.gmra.mrb[0].mxu0 %v788
  %v939 = vpop.f32.mrb[0].mxu0
  %v940 = vadd.f32 %v782, %v939
  %v941 = vpop.f32.mrb[0].mxu0
  %v942 = vadd.f32 %v782, %v941
  %943 = vdwg.mxu0
  %v944 = vlaneseq
  %v945 = vshrl.u32 %v944, 7
  %v946 = vadd.s32 %v945, 8
  %vm947 = vcmp.lt.s32.totalorder %v945, 10
  %vm948 = vcmp.lt.s32.totalorder %v946, 10
  %v949 = vsel %vm947, 1, 0
  %v950 = vsel %vm948, 1, 0
  %vm951 = vcmp.eq.s32.totalorder %v949, 1
  %vm952 = vcmp.eq.s32.totalorder %v950, 1
  %v953 = vsel %vm951, %v857, -1e+30
  %v954 = vsel %vm951, %v859, -1e+30
  %v955 = vsel %vm951, %v934, -1e+30
  %v956 = vsel %vm951, %v936, -1e+30
  %v957 = vsel %vm952, %v863, -1e+30
  %v958 = vsel %vm952, %v865, -1e+30
  %v959 = vsel %vm952, %v940, -1e+30
  %v960 = vsel %vm952, %v942, -1e+30
  %v961 = vmax.f32 %v953, %v957
  %v962 = vrot.slane %v961, 4
  %v963 = vmax.f32 %v961, %v962
  %v964 = vrot.slane %v963, 2
  %v965 = vmax.f32 %v963, %v964
  %v966 = vrot.slane %v965, 1
  %v967 = vmax.f32 %v965, %v966
  %v968 = vmax.f32 %v954, %v958
  %v969 = vrot.slane %v968, 4
  %v970 = vmax.f32 %v968, %v969
  %v971 = vrot.slane %v970, 2
  %v972 = vmax.f32 %v970, %v971
  %v973 = vrot.slane %v972, 1
  %v974 = vmax.f32 %v972, %v973
  %v975 = vmax.f32 %v955, %v959
  %v976 = vrot.slane %v975, 4
  %v977 = vmax.f32 %v975, %v976
  %v978 = vrot.slane %v977, 2
  %v979 = vmax.f32 %v977, %v978
  %v980 = vrot.slane %v979, 1
  %v981 = vmax.f32 %v979, %v980
  %v982 = vmax.f32 %v956, %v960
  %v983 = vrot.slane %v982, 4
  %v984 = vmax.f32 %v982, %v983
  %v985 = vrot.slane %v984, 2
  %v986 = vmax.f32 %v984, %v985
  %v987 = vrot.slane %v986, 1
  %v988 = vmax.f32 %v986, %v987
  %v989 = vsub.f32 %v953, %v967
  %v990 = vsub.f32 %v954, %v974
  %v991 = vsub.f32 %v955, %v981
  %v992 = vsub.f32 %v956, %v988
  %v993 = vsub.f32 %v957, %v967
  %v994 = vsub.f32 %v958, %v974
  %v995 = vsub.f32 %v959, %v981
  %v996 = vsub.f32 %v960, %v988
  %v997 = vmul.f32 %v989, 1.442695
  %v998 = vpow.pop %v997
  %v999 = vmul.f32 %v990, 1.442695
  %v1000 = vpow.pop %v999
  %v1001 = vmul.f32 %v991, 1.442695
  %v1002 = vpow.pop %v1001
  %v1003 = vmul.f32 %v992, 1.442695
  %v1004 = vpow.pop %v1003
  %v1005 = vmul.f32 %v993, 1.442695
  %v1006 = vpow.pop %v1005
  %v1007 = vmul.f32 %v994, 1.442695
  %v1008 = vpow.pop %v1007
  %v1009 = vmul.f32 %v995, 1.442695
  %v1010 = vpow.pop %v1009
  %v1011 = vmul.f32 %v996, 1.442695
  %v1012 = vpow.pop %v1011
  %v1013 = vadd.f32 %v998, %v1006
  %v1014 = vrot.slane %v1013, 4
  %v1015 = vadd.f32 %v1013, %v1014
  %v1016 = vrot.slane %v1015, 2
  %v1017 = vadd.f32 %v1015, %v1016
  %v1018 = vrot.slane %v1017, 1
  %v1019 = vadd.f32 %v1017, %v1018
  %v1020 = vadd.f32 %v1000, %v1008
  %v1021 = vrot.slane %v1020, 4
  %v1022 = vadd.f32 %v1020, %v1021
  %v1023 = vrot.slane %v1022, 2
  %v1024 = vadd.f32 %v1022, %v1023
  %v1025 = vrot.slane %v1024, 1
  %v1026 = vadd.f32 %v1024, %v1025
  %v1027 = vadd.f32 %v1002, %v1010
  %v1028 = vrot.slane %v1027, 4
  %v1029 = vadd.f32 %v1027, %v1028
  %v1030 = vrot.slane %v1029, 2
  %v1031 = vadd.f32 %v1029, %v1030
  %v1032 = vrot.slane %v1031, 1
  %v1033 = vadd.f32 %v1031, %v1032
  %v1034 = vadd.f32 %v1004, %v1012
  %v1035 = vrot.slane %v1034, 4
  %v1036 = vadd.f32 %v1034, %v1035
  %v1037 = vrot.slane %v1036, 2
  %v1038 = vadd.f32 %v1036, %v1037
  %v1039 = vrot.slane %v1038, 1
  %v1040 = vadd.f32 %v1038, %v1039
  %v1041 = vlog2.pop %v1019
  %v1042 = vmul.f32 %v1041, 0.6931472
  %v1043 = vlog2.pop %v1026
  %v1044 = vmul.f32 %v1043, 0.6931472
  %v1045 = vlog2.pop %v1033
  %v1046 = vmul.f32 %v1045, 0.6931472
  %v1047 = vlog2.pop %v1040
  %v1048 = vmul.f32 %v1047, 0.6931472
  %v1049 = vsub.f32 %v857, %v967
  %v1050 = vsub.f32 %v859, %v974
  %v1051 = vsub.f32 %v934, %v981
  %v1052 = vsub.f32 %v936, %v988
  %v1053 = vsub.f32 %v863, %v967
  %v1054 = vsub.f32 %v865, %v974
  %v1055 = vsub.f32 %v940, %v981
  %v1056 = vsub.f32 %v942, %v988
  %v1057 = vsub.f32 %v1049, %v1042
  %v1058 = vsub.f32 %v1050, %v1044
  %v1059 = vsub.f32 %v1051, %v1046
  %v1060 = vsub.f32 %v1052, %v1048
  %v1061 = vsub.f32 %v1053, %v1042
  %v1062 = vsub.f32 %v1054, %v1044
  %v1063 = vsub.f32 %v1055, %v1046
  %v1064 = vsub.f32 %v1056, %v1048
  %1065 = vst [vmem:[%s3] sm:$0xff] %v1057
  %1066 = vst [vmem:[%s3 + $0x8] sm:$0xff] %v1058
  %1067 = vst [vmem:[%s3 + $0x10] sm:$0xff] %v1059
  %1068 = vst [vmem:[%s3 + $0x18] sm:$0xff] %v1060
  %1069 = vst [vmem:[%s3 + $0x20] sm:$0xff] %v1061
  %1070 = vst [vmem:[%s3 + $0x28] sm:$0xff] %v1062
  %1071 = vst [vmem:[%s3 + $0x30] sm:$0xff] %v1063
  %1072 = vst [vmem:[%s3 + $0x38] sm:$0xff] %v1064
  // Predicated region
  $region14: #{top_model_forward.3} parent=0 // pred_check
    _
  $region15: #{top_model_forward.3} parent=0 // pred_check_branch
    %1074 = sbr.rel (0) target = $region17
  $region16: #{top_model_forward.3} parent=0 // pred_region
    _
  $region17: #{top_model_forward.3} parent=0 // pred_fallthru
    _
  // Predicated region
  $region18: #{top_model_forward.3} parent=0 // pred_check
    _
  $region19: #{top_model_forward.3} parent=0 // pred_check_branch
    %1076 = sbr.rel (0) target = $region21
  $region20: #{top_model_forward.3} parent=0 // pred_region
    _
  $region21: #{top_model_forward.3} parent=0 // pred_fallthru
    _

// kernel: top_model_forward.2
$region0: #{top_model_forward.2}
  #allocation0 [shape = 'u32[]', space=smem, size = 0x4, offset = 0x4, fixed_abs, tag = 'smem constant byte address 0x4 - core index']
  #allocation1 [shape = 'u32[144,128]{1,0:T(1,128)}', space=vmem, size = 0x12000, scoped, tag = 'internal scratch']
  #allocation2 [shape = 'f32[24,512]{1,0:T(8,128)}', space=vmem, size = 0xc000, scoped, tag = 'scratch operand']
  #allocation3 [shape = 'f32[24,1]{1,0:T(8,128)}', space=vmem, size = 0x3000, scoped, tag = 'scratch operand']
  #allocation4 [shape = 'f32[24,1]{1,0:T(8,128)}', space=vmem, size = 0x3000, scoped, tag = 'scratch operand']
  #allocation5 [shape = 'f32[24,1]{1,0:T(8,128)}', space=vmem, size = 0x3000, scoped, tag = 'scratch operand']
  #allocation6 [shape = 's32[1]{0}', space=sflag, size = 0x4, scoped, tag = 'scoped memory for top_model_forward.2']
  #allocation7 [shape = 's32[1]{0:T(128)S(6)}', space=smem, size = 0x200, scoped, tag = 'prefetched SMEM operand 0']
  %s0 = inlined_call_operand.<no memory space> [shape: s32[1], index: 0, kind: input, shape index: {}]
  %s1 = inlined_call_operand.vmem [shape: f32[24,512], index: 1, kind: input, shape index: {}]
  %s2 = inlined_call_operand.vmem [shape: f32[5,32,32], index: 2, kind: input, shape index: {}]
  %s3 = inlined_call_operand.vmem [shape: f32[24,8], index: 3, kind: output, shape index: {}]
  %s4 = sld [smem:[#allocation0]]
  $region81: #{top_model_forward.2} parent=0
    _
  %s6 = ssub.s32 1, %s4
  %s7 = scalar_select 0, %s6, %s4
  %8 = sst [smem:[#allocation7]] %s0
  loop: start=0, step=1, limit=6
  $region2: #{top_model_forward.2} parent=0 // loop_pre_header
    _
  $region3: #{top_model_forward.2} parent=0 // loop_header
    %s10 = sphi 0, %s14
    %p11 = scmp.ge.s32.totalorder %s10, 6
    %s17 = sphi 0, %s29
    %s18 = sphi 0, %s25
    %s19 = sphi 0, %s17
    %s20 = sphi 0, %s18
    %s21 = sphi 0, %s19
    %s22 = sphi 0, %s20
    %s32 = sphi 0, %s34
    %s35 = sphi 0, %s32
    %s36 = sphi 0, %s35
    %s52 = sphi 0, %s36
    %s56 = sphi 0, %s56
    %s58 = sphi 0, %s56
    %s59 = sphi 0, %s58
    %s73 = sphi 0, %s59
    %s77 = sphi 0, %s77
    %s79 = sphi 0, %s77
    %s80 = sphi 0, %s79
    %s94 = sphi 0, %s80
  $region4: #{top_model_forward.2} parent=0 // loop_header_branch
    %13 = sbr.rel (%p11) target = $region8
  $region5: #{top_model_forward.2} parent=0 // loop_body
    %s15 = ssub.s32 %s10, 1
    %s16 = ssub.s32 %s10, 2
    %s23 = sadd.s32 1, %s18
    %p24 = scmp.ge.s32.totalorder %s23, 1
    %s25 = scalar_select %p24, 0, %s23
    %s26 = sadd.s32 1, %s17
    %s27 = scalar_select %p24, %s26, %s17
    %p28 = scmp.ge.s32.totalorder %s27, 4
    %s29 = scalar_select %p28, 0, %s27
    %s30 = ssub.s32 %s18, %s25
    %p31 = scmp.eq.s32.totalorder %s30, 0
    %s33 = sadd.s32 %s32, 1
    %s34 = scalar_select %p31, %s32, %s33
    %p37 = pneg %p31
    %p38 = scmp.eq.s32.totalorder %s10, 3
    %p39 = por %p37, %p38
    %p40 = scmp.ne.s32.totalorder %s32, %s35
    %p41 = scmp.eq.s32.totalorder %s10, 0
    %p42 = por %p40, %p41
    %p43 = scmp.ne.s32.totalorder %s32, %s35
    %p44 = scmp.eq.s32.totalorder %s15, 3
    %p45 = por %p43, %p44
    %p46 = scmp.ne.s32.totalorder %s35, %s36
    %p47 = scmp.eq.s32.totalorder %s15, 0
    %p48 = por %p46, %p47
    %p49 = scmp.ne.s32.totalorder %s35, %s36
    %p50 = scmp.eq.s32.totalorder %s16, 3
    %p51 = por %p49, %p50
    %p53 = scmp.ne.s32.totalorder %s36, %s52
    %p54 = scmp.eq.s32.totalorder %s16, 0
    %p55 = por %p53, %p54
    %s57 = sadd.s32 %s56, 1
    %p60 = scmp.eq.s32.totalorder %s10, 3
    %p61 = scmp.ne.s32.totalorder %s56, %s58
    %p62 = scmp.eq.s32.totalorder %s10, 0
    %p63 = por %p61, %p62
    %p64 = scmp.ne.s32.totalorder %s56, %s58
    %p65 = scmp.eq.s32.totalorder %s15, 3
    %p66 = por %p64, %p65
    %p67 = scmp.ne.s32.totalorder %s58, %s59
    %p68 = scmp.eq.s32.totalorder %s15, 0
    %p69 = por %p67, %p68
    %p70 = scmp.ne.s32.totalorder %s58, %s59
    %p71 = scmp.eq.s32.totalorder %s16, 3
    %p72 = por %p70, %p71
    %p74 = scmp.ne.s32.totalorder %s59, %s73
    %p75 = scmp.eq.s32.totalorder %s16, 0
    %p76 = por %p74, %p75
    %s78 = sadd.s32 %s77, 1
    %p81 = scmp.eq.s32.totalorder %s10, 3
    %p82 = scmp.ne.s32.totalorder %s77, %s79
    %p83 = scmp.eq.s32.totalorder %s10, 0
    %p84 = por %p82, %p83
    %p85 = scmp.ne.s32.totalorder %s77, %s79
    %p86 = scmp.eq.s32.totalorder %s15, 3
    %p87 = por %p85, %p86
    %p88 = scmp.ne.s32.totalorder %s79, %s80
    %p89 = scmp.eq.s32.totalorder %s15, 0
    %p90 = por %p88, %p89
    %p91 = scmp.ne.s32.totalorder %s79, %s80
    %p92 = scmp.eq.s32.totalorder %s16, 3
    %p93 = por %p91, %p92
    %p95 = scmp.ne.s32.totalorder %s80, %s94
    %p96 = scmp.eq.s32.totalorder %s16, 0
    %p97 = por %p95, %p96
    %p98 = scmp.le.s32.totalorder 1, %s10
    %p99 = scmp.lt.s32.totalorder %s10, 5
    %p100 = pnand %p98, %p99
    %p101 = pneg %p100
    // Predicated region
    $region9: #{top_model_forward.2} parent=5 // pred_check
      _
    $region10: #{top_model_forward.2} parent=5 // pred_check_branch
      %103 = sbr.rel (%p100) target = $region12
    $region11: #{top_model_forward.2} parent=5 // pred_region
      %s104 = ssub.s32 %s10, 1
      // Predicated region
      $region13: #{top_model_forward.2} parent=11 // pred_check
        %p105 = pneg %p48
      $region14: #{top_model_forward.2} parent=11 // pred_check_branch
        %107 = sbr.rel (%p105) target = $region16
      $region15: #{top_model_forward.2} parent=11 // pred_region
        %s108 = smul.u32 4, %s20
        %p109 = scmp.lt.s32.totalorder %s108, 3
        %s110 = scalar_select %p109, %s108, 3
        %s111 = smul.addr %s110, 8
        %s112 = scalar_lea.vmem %s1, %s111
        %s113 = smul.u32 4, %s20
      $region16: #{top_model_forward.2} parent=11 // pred_fallthru
        _
      // Predicated region
      $region17: #{top_model_forward.2} parent=11 // pred_check
        %p114 = pneg %p69
      $region18: #{top_model_forward.2} parent=11 // pred_check_branch
        %116 = sbr.rel (%p114) target = $region20
      $region19: #{top_model_forward.2} parent=11 // pred_region
        _
      $region20: #{top_model_forward.2} parent=11 // pred_fallthru
        _
    $region12: #{top_model_forward.2} parent=5 // pred_fallthru
      _
    %p117 = scmp.lt.s32.totalorder %s10, 4
    // Predicated region
    $region21: #{top_model_forward.2} parent=5 // pred_check
      %p118 = pneg %p117
    $region22: #{top_model_forward.2} parent=5 // pred_check_branch
      %120 = sbr.rel (%p118) target = $region24
    $region23: #{top_model_forward.2} parent=5 // pred_region
      _
    $region24: #{top_model_forward.2} parent=5 // pred_fallthru
      _
    %p121 = scmp.le.s32.totalorder 1, %s10
    %p122 = scmp.lt.s32.totalorder %s10, 5
    %p123 = pnand %p121, %p122
    %p124 = pneg %p123
    // Predicated region
    $region25: #{top_model_forward.2} parent=5 // pred_check
      _
    $region26: #{top_model_forward.2} parent=5 // pred_check_branch
      %126 = sbr.rel (%p123) target = $region28
    $region27: #{top_model_forward.2} parent=5 // pred_region
      %s127 = ssub.s32 %s10, 1
      %s128 = smul.u32 4, %s20
      %p129 = scmp.lt.s32.totalorder %s128, 3
      %s130 = scalar_select %p129, %s128, 3
      %s131 = smul.addr %s130, 8
      %s132 = scalar_lea.vmem %s1, %s131
      %p133 = pneg %p48
      %p134 = pneg %p45
      %p135 = pneg %p69
      %p136 = pneg %p66
      %p137 = pneg %p90
      %p138 = pneg %p87
      %s139 = smul.u32 4, %s20
      %p140 = scmp.lt.s32.totalorder %s139, 3
      %s141 = scalar_select %p140, %s139, 3
      %s142 = smul.addr %s141, 8
      %s143 = scalar_lea.vmem %s1, %s142
      %s144 = smul.u32 4, %s20
      %s145 = sld [smem:[#allocation7]]
      %s146 = scalar_lea.vmem %s2, 128
      %v147 = vld [vmem:[%s146] sm:$0xff]
      %v148 = vld [vmem:[%s146 + $0x8] sm:$0xff]
      %v149 = vld [vmem:[%s146 + $0x10] sm:$0xff]
      %p150 = scmp.eq.s32.totalorder %s20, 0
      // Predicated region
      $region29: #{top_model_forward.2} parent=27 // pred_check
        %p151 = pneg %p150
      $region30: #{top_model_forward.2} parent=27 // pred_check_branch
        %153 = sbr.rel (%p151) target = $region32
      $region31: #{top_model_forward.2} parent=27 // pred_region
        %vm154 = vcmask 7168
        %155 = vst.msk [vmem:[#allocation3] sm:$0xff] %vm154, 0.0
        %156 = vst.msk [vmem:[#allocation3 + $0x8] sm:$0xff] %vm154, 0.0
        %157 = vst.msk [vmem:[#allocation3 + $0x10] sm:$0xff] %vm154, 0.0
        %158 = vst.msk [vmem:[#allocation4] sm:$0xff] %vm154, 0.0
        %159 = vst.msk [vmem:[#allocation4 + $0x8] sm:$0xff] %vm154, 0.0
        %160 = vst.msk [vmem:[#allocation4 + $0x10] sm:$0xff] %vm154, 0.0
      $region32: #{top_model_forward.2} parent=27 // pred_fallthru
        _
      %v161 = vld [vmem:[%s143] sm:$0xff]
      %v162 = vld [vmem:[%s143 + $0x8] sm:$0xff]
      %v163 = vld [vmem:[%s143 + $0x10] sm:$0xff]
      %v164 = vld [vmem:[%s143 + $0x18] sm:$0xff]
      %v165 = vld [vmem:[%s143 + $0x20] sm:$0xff]
      %v166 = vld [vmem:[%s143 + $0x28] sm:$0xff]
      %v167 = vld [vmem:[%s143 + $0x30] sm:$0xff]
      %v168 = vld [vmem:[%s143 + $0x38] sm:$0xff]
      %v169 = vld [vmem:[%s143 + $0x40] sm:$0xff]
      %v170 = vld [vmem:[%s143 + $0x48] sm:$0xff]
      %v171 = vld [vmem:[%s143 + $0x50] sm:$0xff]
      %v172 = vld [vmem:[%s143 + $0x58] sm:$0xff]
      %173 = vst [vmem:[#allocation2] sm:$0xff] %v161
      %174 = vst [vmem:[#allocation2 + $0x8] sm:$0xff] %v162
      %175 = vst [vmem:[#allocation2 + $0x10] sm:$0xff] %v163
      %176 = vst [vmem:[#allocation2 + $0x18] sm:$0xff] %v164
      %177 = vst [vmem:[#allocation2 + $0x20] sm:$0xff] %v165
      %178 = vst [vmem:[#allocation2 + $0x28] sm:$0xff] %v166
      %179 = vst [vmem:[#allocation2 + $0x30] sm:$0xff] %v167
      %180 = vst [vmem:[#allocation2 + $0x38] sm:$0xff] %v168
      %181 = vst [vmem:[#allocation2 + $0x40] sm:$0xff] %v169
      %182 = vst [vmem:[#allocation2 + $0x48] sm:$0xff] %v170
      %183 = vst [vmem:[#allocation2 + $0x50] sm:$0xff] %v171
      %184 = vst [vmem:[#allocation2 + $0x58] sm:$0xff] %v172
      %v185 = vld [vmem:[%s3] sm:$0xff]
      %v186 = vld [vmem:[%s3 + $0x8] sm:$0xff]
      %v187 = vld [vmem:[%s3 + $0x10] sm:$0xff]
      %p188 = scmp.ge.s32.totalorder %s19, 1
      // Predicated region
      $region33: #{top_model_forward.2} parent=27 // pred_check
        %p189 = pneg %p188
      $region34: #{top_model_forward.2} parent=27 // pred_check_branch
        %191 = sbr.rel (%p189) target = $region36
      $region35: #{top_model_forward.2} parent=27 // pred_region
        %v192 = vld [vmem:[#allocation2] sm:$0xff]
        %v193 = vld [vmem:[#allocation2 + $0x8] sm:$0xff]
        %v194 = vld [vmem:[#allocation2 + $0x10] sm:$0xff]
        %v195 = vld [vmem:[#allocation2 + $0x18] sm:$0xff]
        %v196 = vld [vmem:[#allocation2 + $0x20] sm:$0xff]
        %v197 = vld [vmem:[#allocation2 + $0x28] sm:$0xff]
        %v198 = vld [vmem:[#allocation2 + $0x30] sm:$0xff]
        %v199 = vld [vmem:[#allocation2 + $0x38] sm:$0xff]
        %v200 = vld [vmem:[#allocation2 + $0x40] sm:$0xff]
        %v201 = vld [vmem:[#allocation2 + $0x48] sm:$0xff]
        %v202 = vld [vmem:[#allocation2 + $0x50] sm:$0xff]
        %v203 = vld [vmem:[#allocation2 + $0x58] sm:$0xff]
        %205 = vset.pattern.permute.xlu0 0
        %206 = vperm.xlu0 %205, %v185
        %v207 = vpop.permute.xlu0 %206
        %210 = vset.pattern.permute.xlu0 0
        %211 = vperm.xlu0 %210, %v186
        %v212 = vpop.permute.xlu0 %211
        %215 = vset.pattern.permute.xlu0 0
        %216 = vperm.xlu0 %215, %v187
        %v217 = vpop.permute.xlu0 %216
        %v219 = vmul.f32 %v192, %v207
        %v220 = vmul.f32 %v193, %v207
        %v221 = vmul.f32 %v194, %v207
        %v222 = vmul.f32 %v195, %v207
        %v223 = vmul.f32 %v196, %v212
        %v224 = vmul.f32 %v197, %v212
        %v225 = vmul.f32 %v198, %v212
        %v226 = vmul.f32 %v199, %v212
        %v227 = vmul.f32 %v200, %v217
        %v228 = vmul.f32 %v201, %v217
        %v229 = vmul.f32 %v202, %v217
        %v230 = vmul.f32 %v203, %v217
        %231 = vset.pattern.permute.xlu0 4
        %232 = vperm.xlu0 %231, %v185
        %v233 = vpop.permute.xlu0 %232
        %235 = vset.pattern.permute.xlu0 4
        %236 = vperm.xlu0 %235, %v186
        %v237 = vpop.permute.xlu0 %236
        %239 = vset.pattern.permute.xlu0 4
        %240 = vperm.xlu0 %239, %v187
        %v241 = vpop.permute.xlu0 %240
        %v243 = vadd.f32 %v219, %v233
        %v244 = vadd.f32 %v220, %v233
        %v245 = vadd.f32 %v221, %v233
        %v246 = vadd.f32 %v222, %v233
        %v247 = vadd.f32 %v223, %v237
        %v248 = vadd.f32 %v224, %v237
        %v249 = vadd.f32 %v225, %v237
        %v250 = vadd.f32 %v226, %v237
        %v251 = vadd.f32 %v227, %v241
        %v252 = vadd.f32 %v228, %v241
        %v253 = vadd.f32 %v229, %v241
        %v254 = vadd.f32 %v230, %v241
        %v255 = vmax.f32 %v243, 0.0
        %v256 = vmax.f32 %v244, 0.0
        %v257 = vmax.f32 %v245, 0.0
        %v258 = vmax.f32 %v246, 0.0
        %v259 = vmax.f32 %v247, 0.0
        %v260 = vmax.f32 %v248, 0.0
        %v261 = vmax.f32 %v249, 0.0
        %v262 = vmax.f32 %v250, 0.0
        %v263 = vmax.f32 %v251, 0.0
        %v264 = vmax.f32 %v252, 0.0
        %v265 = vmax.f32 %v253, 0.0
        %v266 = vmax.f32 %v254, 0.0
        %v267 = vld [vmem:[%s2] sm:$0xff]
        %v268 = vld [vmem:[%s2 + $0x8] sm:$0xff]
        %v269 = vld [vmem:[%s2 + $0x10] sm:$0xff]
        %271 = vset.pattern.permute.xlu0 0
        %272 = vperm.xlu0 %271, %v147
        %v273 = vpop.permute.xlu0 %272
        %276 = vset.pattern.permute.xlu0 0
        %277 = vperm.xlu0 %276, %v148
        %v278 = vpop.permute.xlu0 %277
        %281 = vset.pattern.permute.xlu0 0
        %282 = vperm.xlu0 %281, %v149
        %v283 = vpop.permute.xlu0 %282
        %vm285 = vcmask 195584
        %v287 = vsel %vm285, %v267, 0
        %v290 = vsel %vm285, %v268, 0
        %v293 = vsel %vm285, %v269, 0
        %295 = vmatprep.subr.mxu0 %v256
        %296 = vmatpush1.msra.mxu0 %v255
        %297 = vmatprep.subr.mxu0 %v260
        %298 = vmatpush1.msra.mxu0 %v259
        %299 = vmatprep.subr.mxu0 %v264
        %300 = vmatpush1.msra.mxu0 %v263
        %301 = vmatprep.subr.mxu0 0.0
        %302 = vmatpush1.msra.mxu0 0.0
        %303 = vmatprep.subr.mxu0 0.0
        %304 = vmatpush1.msra.mxu0 0.0
        %305 = vmatprep.subr.mxu0 0.0
        %306 = vmatpush1.msra.mxu0 0.0
        %307 = vmatprep.subr.mxu0 0.0
        %308 = vmatpush1.msra.mxu0 0.0
        %309 = vmatprep.subr.mxu0 0.0
        %310 = vmatpush1.msra.mxu0 0.0
        %311 = vmatprep.subr.mxu0 0.0
        %312 = vmatpush1.msra.mxu0 0.0
        %313 = vmatprep.subr.mxu0 0.0
        %314 = vmatpush1.msra.mxu0 0.0
        %315 = vmatprep.subr.mxu0 0.0
        %316 = vmatpush1.msra.mxu0 0.0
        %317 = vmatprep.subr.mxu0 0.0
        %318 = vmatpush1.msra.mxu0 0.0
        %319 = vmatprep.subr.mxu0 0.0
        %320 = vmatpush1.msra.mxu0 0.0
        %321 = vmatprep.subr.mxu0 0.0
        %322 = vmatpush1.msra.mxu0 0.0
        %323 = vmatprep.subr.mxu0 0.0
        %324 = vmatpush1.msra.mxu0 0.0
        %325 = vmatprep.subr.mxu0 0.0
        %326 = vmatpush1.msra.mxu0 0.0
        %327 = vmatprep.subr.mxu0 0.0
        %328 = vmatpush1.msra.mxu0 0.0
        %329 = vmatprep.subr.mxu0 0.0
        %330 = vmatpush1.msra.mxu0 0.0
        %331 = vmatprep.subr.mxu0 0.0
        %332 = vmatpush1.msra.mxu0 0.0
        %333 = vmatprep.subr.mxu0 0.0
        %334 = vmatpush1.msra.mxu0 0.0
        %335 = vmatprep.subr.mxu0 0.0
        %336 = vmatpush1.msra.mxu0 0.0
        %337 = vmatprep.subr.mxu0 0.0
        %338 = vmatpush1.msra.mxu0 0.0
        %339 = vmatprep.subr.mxu0 0.0
        %340 = vmatpush1.msra.mxu0 0.0
        %341 = vmatprep.subr.mxu0 0.0
        %342 = vmatpush1.msra.mxu0 0.0
        %343 = vmatprep.subr.mxu0 0.0
        %344 = vmatpush1.msra.mxu0 0.0
        %345 = vmatprep.subr.mxu0 0.0
        %346 = vmatpush1.msra.mxu0 0.0
        %347 = vmatprep.subr.mxu0 0.0
        %348 = vmatpush1.msra.mxu0 0.0
        %349 = vmatprep.subr.mxu0 0.0
        %350 = vmatpush1.msra.mxu0 0.0
        %351 = vmatprep.subr.mxu0 0.0
        %352 = vmatpush1.msra.mxu0 0.0
        %353 = vmatprep.subr.mxu0 0.0
        %354 = vmatpush1.msra.mxu0 0.0
        %355 = vmatprep.subr.mxu0 0.0
        %356 = vmatpush1.msra.mxu0 0.0
        %357 = vmatprep.subr.mxu0 0.0
        %358 = vmatpush1.msra.mxu0 0.0
        %359 = vmatprep.mubr.f32.mxu0 0.0
        %360 = vmatmul.mubr.f32.gmra.mrb[0].mxu0 %v287
        %v361 = vpop.f32.mrb[0].mxu0
        %v362 = vadd.f32 %v273, %v361
        %v363 = vpop.f32.mrb[0].mxu0
        %v364 = vadd.f32 %v273, %v363
        %365 = vmatprep.mubr.f32.mxu0 0.0
        %366 = vmatmul.mubr.f32.gmra.mrb[0].mxu0 %v290
        %v367 = vpop.f32.mrb[0].mxu0
        %v368 = vadd.f32 %v278, %v367
        %v369 = vpop.f32.mrb[0].mxu0
        %v370 = vadd.f32 %v278, %v369
        %371 = vmatprep.mubr.f32.mxu0 0.0
        %372 = vmatmul.mubr.f32.gmra.mrb[0].mxu0 %v293
        %v373 = vpop.f32.mrb[0].mxu0
        %v374 = vadd.f32 %v283, %v373
        %v375 = vpop.f32.mrb[0].mxu0
        %v376 = vadd.f32 %v283, %v375
        %377 = vdwg.mxu0
        %378 = vmatprep.subr.mxu0 %v258
        %379 = vmatpush1.msra.mxu0 %v257
        %380 = vmatprep.subr.mxu0 %v262
        %381 = vmatpush1.msra.mxu0 %v261
        %382 = vmatprep.subr.mxu0 %v266
        %383 = vmatpush1.msra.mxu0 %v265
        %384 = vmatprep.subr.mxu0 0.0
        %385 = vmatpush1.msra.mxu0 0.0
        %386 = vmatprep.subr.mxu0 0.0
        %387 = vmatpush1.msra.mxu0 0.0
        %388 = vmatprep.subr.mxu0 0.0
        %389 = vmatpush1.msra.mxu0 0.0
        %390 = vmatprep.subr.mxu0 0.0
        %391 = vmatpush1.msra.mxu0 0.0
        %392 = vmatprep.subr.mxu0 0.0
        %393 = vmatpush1.msra.mxu0 0.0
        %394 = vmatprep.subr.mxu0 0.0
        %395 = vmatpush1.msra.mxu0 0.0
        %396 = vmatprep.subr.mxu0 0.0
        %397 = vmatpush1.msra.mxu0 0.0
        %398 = vmatprep.subr.mxu0 0.0
        %399 = vmatpush1.msra.mxu0 0.0
        %400 = vmatprep.subr.mxu0 0.0
        %401 = vmatpush1.msra.mxu0 0.0
        %402 = vmatprep.subr.mxu0 0.0
        %403 = vmatpush1.msra.mxu0 0.0
        %404 = vmatprep.subr.mxu0 0.0
        %405 = vmatpush1.msra.mxu0 0.0
        %406 = vmatprep.subr.mxu0 0.0
        %407 = vmatpush1.msra.mxu0 0.0
        %408 = vmatprep.subr.mxu0 0.0
        %409 = vmatpush1.msra.mxu0 0.0
        %410 = vmatprep.subr.mxu0 0.0
        %411 = vmatpush1.msra.mxu0 0.0
        %412 = vmatprep.subr.mxu0 0.0
        %413 = vmatpush1.msra.mxu0 0.0
        %414 = vmatprep.subr.mxu0 0.0
        %415 = vmatpush1.msra.mxu0 0.0
        %416 = vmatprep.subr.mxu0 0.0
        %417 = vmatpush1.msra.mxu0 0.0
        %418 = vmatprep.subr.mxu0 0.0
        %419 = vmatpush1.msra.mxu0 0.0
        %420 = vmatprep.subr.mxu0 0.0
        %421 = vmatpush1.msra.mxu0 0.0
        %422 = vmatprep.subr.mxu0 0.0
        %423 = vmatpush1.msra.mxu0 0.0
        %424 = vmatprep.subr.mxu0 0.0
        %425 = vmatpush1.msra.mxu0 0.0
        %426 = vmatprep.subr.mxu0 0.0
        %427 = vmatpush1.msra.mxu0 0.0
        %428 = vmatprep.subr.mxu0 0.0
        %429 = vmatpush1.msra.mxu0 0.0
        %430 = vmatprep.subr.mxu0 0.0
        %431 = vmatpush1.msra.mxu0 0.0
        %432 = vmatprep.subr.mxu0 0.0
        %433 = vmatpush1.msra.mxu0 0.0
        %434 = vmatprep.subr.mxu0 0.0
        %435 = vmatpush1.msra.mxu0 0.0
        %436 = vmatprep.subr.mxu0 0.0
        %437 = vmatpush1.msra.mxu0 0.0
        %438 = vmatprep.subr.mxu0 0.0
        %439 = vmatpush1.msra.mxu0 0.0
        %440 = vmatprep.subr.mxu0 0.0
        %441 = vmatpush1.msra.mxu0 0.0
        %442 = vmatprep.mubr.f32.mxu0 0.0
        %443 = vmatmul.mubr.f32.gmra.mrb[0].mxu0 %v287
        %v444 = vpop.f32.mrb[0].mxu0
        %v445 = vadd.f32 %v273, %v444
        %v446 = vpop.f32.mrb[0].mxu0
        %v447 = vadd.f32 %v273, %v446
        %448 = vmatprep.mubr.f32.mxu0 0.0
        %449 = vmatmul.mubr.f32.gmra.mrb[0].mxu0 %v290
        %v450 = vpop.f32.mrb[0].mxu0
        %v451 = vadd.f32 %v278, %v450
        %v452 = vpop.f32.mrb[0].mxu0
        %v453 = vadd.f32 %v278, %v452
        %454 = vmatprep.mubr.f32.mxu0 0.0
        %455 = vmatmul.mubr.f32.gmra.mrb[0].mxu0 %v293
        %v456 = vpop.f32.mrb[0].mxu0
        %v457 = vadd.f32 %v283, %v456
        %v458 = vpop.f32.mrb[0].mxu0
        %v459 = vadd.f32 %v283, %v458
        %460 = vdwg.mxu0
        %461 = vst [vmem:[#allocation2] sm:$0xff] %v362
        %462 = vst [vmem:[#allocation2 + $0x8] sm:$0xff] %v364
        %463 = vst [vmem:[#allocation2 + $0x10] sm:$0xff] %v445
        %464 = vst [vmem:[#allocation2 + $0x18] sm:$0xff] %v447
        %465 = vst [vmem:[#allocation2 + $0x20] sm:$0xff] %v368
        %466 = vst [vmem:[#allocation2 + $0x28] sm:$0xff] %v370
        %467 = vst [vmem:[#allocation2 + $0x30] sm:$0xff] %v451
        %468 = vst [vmem:[#allocation2 + $0x38] sm:$0xff] %v453
        %469 = vst [vmem:[#allocation2 + $0x40] sm:$0xff] %v374
        %470 = vst [vmem:[#allocation2 + $0x48] sm:$0xff] %v376
        %471 = vst [vmem:[#allocation2 + $0x50] sm:$0xff] %v457
        %472 = vst [vmem:[#allocation2 + $0x58] sm:$0xff] %v459
      $region36: #{top_model_forward.2} parent=27 // pred_fallthru
        _
      %p473 = scmp.ge.s32.totalorder %s19, 2
      // Predicated region
      $region37: #{top_model_forward.2} parent=27 // pred_check
        %p474 = pneg %p473
      $region38: #{top_model_forward.2} parent=27 // pred_check_branch
        %476 = sbr.rel (%p474) target = $region40
      $region39: #{top_model_forward.2} parent=27 // pred_region
        %v477 = vld [vmem:[#allocation2] sm:$0xff]
        %v478 = vld [vmem:[#allocation2 + $0x8] sm:$0xff]
        %v479 = vld [vmem:[#allocation2 + $0x10] sm:$0xff]
        %v480 = vld [vmem:[#allocation2 + $0x18] sm:$0xff]
        %v481 = vld [vmem:[#allocation2 + $0x20] sm:$0xff]
        %v482 = vld [vmem:[#allocation2 + $0x28] sm:$0xff]
        %v483 = vld [vmem:[#allocation2 + $0x30] sm:$0xff]
        %v484 = vld [vmem:[#allocation2 + $0x38] sm:$0xff]
        %v485 = vld [vmem:[#allocation2 + $0x40] sm:$0xff]
        %v486 = vld [vmem:[#allocation2 + $0x48] sm:$0xff]
        %v487 = vld [vmem:[#allocation2 + $0x50] sm:$0xff]
        %v488 = vld [vmem:[#allocation2 + $0x58] sm:$0xff]
        %490 = vset.pattern.permute.xlu0 1
        %491 = vperm.xlu0 %490, %v185
        %v492 = vpop.permute.xlu0 %491
        %495 = vset.pattern.permute.xlu0 1
        %496 = vperm.xlu0 %495, %v186
        %v497 = vpop.permute.xlu0 %496
        %500 = vset.pattern.permute.xlu0 1
        %501 = vperm.xlu0 %500, %v187
        %v502 = vpop.permute.xlu0 %501
        %v504 = vmul.f32 %v477, %v492
        %v505 = vmul.f32 %v478, %v492
        %v506 = vmul.f32 %v479, %v492
        %v507 = vmul.f32 %v480, %v492
        %v508 = vmul.f32 %v481, %v497
        %v509 = vmul.f32 %v482, %v497
        %v510 = vmul.f32 %v483, %v497
        %v511 = vmul.f32 %v484, %v497
        %v512 = vmul.f32 %v485, %v502
        %v513 = vmul.f32 %v486, %v502
        %v514 = vmul.f32 %v487, %v502
        %v515 = vmul.f32 %v488, %v502
        %516 = vset.pattern.permute.xlu0 5
        %517 = vperm.xlu0 %516, %v185
        %v518 = vpop.permute.xlu0 %517
        %520 = vset.pattern.permute.xlu0 5
        %521 = vperm.xlu0 %520, %v186
        %v522 = vpop.permute.xlu0 %521
        %524 = vset.pattern.permute.xlu0 5
        %525 = vperm.xlu0 %524, %v187
        %v526 = vpop.permute.xlu0 %525
        %v528 = vadd.f32 %v504, %v518
        %v529 = vadd.f32 %v505, %v518
        %v530 = vadd.f32 %v506, %v518
        %v531 = vadd.f32 %v507, %v518
        %v532 = vadd.f32 %v508, %v522
        %v533 = vadd.f32 %v509, %v522
        %v534 = vadd.f32 %v510, %v522
        %v535 = vadd.f32 %v511, %v522
        %v536 = vadd.f32 %v512, %v526
        %v537 = vadd.f32 %v513, %v526
        %v538 = vadd.f32 %v514, %v526
        %v539 = vadd.f32 %v515, %v526
        %v540 = vmax.f32 %v528, 0.0
        %v541 = vmax.f32 %v529, 0.0
        %v542 = vmax.f32 %v530, 0.0
        %v543 = vmax.f32 %v531, 0.0
        %v544 = vmax.f32 %v532, 0.0
        %v545 = vmax.f32 %v533, 0.0
        %v546 = vmax.f32 %v534, 0.0
        %v547 = vmax.f32 %v535, 0.0
        %v548 = vmax.f32 %v536, 0.0
        %v549 = vmax.f32 %v537, 0.0
        %v550 = vmax.f32 %v538, 0.0
        %v551 = vmax.f32 %v539, 0.0
        %s552 = scalar_lea.vmem %s2, 32
        %v553 = vld [vmem:[%s552] sm:$0xff]
        %v554 = vld [vmem:[%s552 + $0x8] sm:$0xff]
        %v555 = vld [vmem:[%s552 + $0x10] sm:$0xff]
        %557 = vset.pattern.permute.xlu0 1
        %558 = vperm.xlu0 %557, %v147
        %v559 = vpop.permute.xlu0 %558
        %562 = vset.pattern.permute.xlu0 1
        %563 = vperm.xlu0 %562, %v148
        %v564 = vpop.permute.xlu0 %563
        %567 = vset.pattern.permute.xlu0 1
        %568 = vperm.xlu0 %567, %v149
        %v569 = vpop.permute.xlu0 %568
        %vm571 = vcmask 195584
        %v573 = vsel %vm571, %v553, 0
        %v576 = vsel %vm571, %v554, 0
        %v579 = vsel %vm571, %v555, 0
        %581 = vmatprep.subr.mxu0 %v541
        %582 = vmatpush1.msra.mxu0 %v540
        %583 = vmatprep.subr.mxu0 %v545
        %584 = vmatpush1.msra.mxu0 %v544
        %585 = vmatprep.subr.mxu0 %v549
        %586 = vmatpush1.msra.mxu0 %v548
        %587 = vmatprep.subr.mxu0 0.0
        %588 = vmatpush1.msra.mxu0 0.0
        %589 = vmatprep.subr.mxu0 0.0
        %590 = vmatpush1.msra.mxu0 0.0
        %591 = vmatprep.subr.mxu0 0.0
        %592 = vmatpush1.msra.mxu0 0.0
        %593 = vmatprep.subr.mxu0 0.0
        %594 = vmatpush1.msra.mxu0 0.0
        %595 = vmatprep.subr.mxu0 0.0
        %596 = vmatpush1.msra.mxu0 0.0
        %597 = vmatprep.subr.mxu0 0.0
        %598 = vmatpush1.msra.mxu0 0.0
        %599 = vmatprep.subr.mxu0 0.0
        %600 = vmatpush1.msra.mxu0 0.0
        %601 = vmatprep.subr.mxu0 0.0
        %602 = vmatpush1.msra.mxu0 0.0
        %603 = vmatprep.subr.mxu0 0.0
        %604 = vmatpush1.msra.mxu0 0.0
        %605 = vmatprep.subr.mxu0 0.0
        %606 = vmatpush1.msra.mxu0 0.0
        %607 = vmatprep.subr.mxu0 0.0
        %608 = vmatpush1.msra.mxu0 0.0
        %609 = vmatprep.subr.mxu0 0.0
        %610 = vmatpush1.msra.mxu0 0.0
        %611 = vmatprep.subr.mxu0 0.0
        %612 = vmatpush1.msra.mxu0 0.0
        %613 = vmatprep.subr.mxu0 0.0
        %614 = vmatpush1.msra.mxu0 0.0
        %615 = vmatprep.subr.mxu0 0.0
        %616 = vmatpush1.msra.mxu0 0.0
        %617 = vmatprep.subr.mxu0 0.0
        %618 = vmatpush1.msra.mxu0 0.0
        %619 = vmatprep.subr.mxu0 0.0
        %620 = vmatpush1.msra.mxu0 0.0
        %621 = vmatprep.subr.mxu0 0.0
        %622 = vmatpush1.msra.mxu0 0.0
        %623 = vmatprep.subr.mxu0 0.0
        %624 = vmatpush1.msra.mxu0 0.0
        %625 = vmatprep.subr.mxu0 0.0
        %626 = vmatpush1.msra.mxu0 0.0
        %627 = vmatprep.subr.mxu0 0.0
        %628 = vmatpush1.msra.mxu0 0.0
        %629 = vmatprep.subr.mxu0 0.0
        %630 = vmatpush1.msra.mxu0 0.0
        %631 = vmatprep.subr.mxu0 0.0
        %632 = vmatpush1.msra.mxu0 0.0
        %633 = vmatprep.subr.mxu0 0.0
        %634 = vmatpush1.msra.mxu0 0.0
        %635 = vmatprep.subr.mxu0 0.0
        %636 = vmatpush1.msra.mxu0 0.0
        %637 = vmatprep.subr.mxu0 0.0
        %638 = vmatpush1.msra.mxu0 0.0
        %639 = vmatprep.subr.mxu0 0.0
        %640 = vmatpush1.msra.mxu0 0.0
        %641 = vmatprep.subr.mxu0 0.0
        %642 = vmatpush1.msra.mxu0 0.0
        %643 = vmatprep.subr.mxu0 0.0
        %644 = vmatpush1.msra.mxu0 0.0
        %645 = vmatprep.mubr.f32.mxu0 0.0
        %646 = vmatmul.mubr.f32.gmra.mrb[0].mxu0 %v573
        %v647 = vpop.f32.mrb[0].mxu0
        %v648 = vadd.f32 %v559, %v647
        %v649 = vpop.f32.mrb[0].mxu0
        %v650 = vadd.f32 %v559, %v649
        %651 = vmatprep.mubr.f32.mxu0 0.0
        %652 = vmatmul.mubr.f32.gmra.mrb[0].mxu0 %v576
        %v653 = vpop.f32.mrb[0].mxu0
        %v654 = vadd.f32 %v564, %v653
        %v655 = vpop.f32.mrb[0].mxu0
        %v656 = vadd.f32 %v564, %v655
        %657 = vmatprep.mubr.f32.mxu0 0.0
        %658 = vmatmul.mubr.f32.gmra.mrb[0].mxu0 %v579
        %v659 = vpop.f32.mrb[0].mxu0
        %v660 = vadd.f32 %v569, %v659
        %v661 = vpop.f32.mrb[0].mxu0
        %v662 = vadd.f32 %v569, %v661
        %663 = vdwg.mxu0
        %664 = vmatprep.subr.mxu0 %v543
        %665 = vmatpush1.msra.mxu0 %v542
        %666 = vmatprep.subr.mxu0 %v547
        %667 = vmatpush1.msra.mxu0 %v546
        %668 = vmatprep.subr.mxu0 %v551
        %669 = vmatpush1.msra.mxu0 %v550
        %670 = vmatprep.subr.mxu0 0.0
        %671 = vmatpush1.msra.mxu0 0.0
        %672 = vmatprep.subr.mxu0 0.0
        %673 = vmatpush1.msra.mxu0 0.0
        %674 = vmatprep.subr.mxu0 0.0
        %675 = vmatpush1.msra.mxu0 0.0
        %676 = vmatprep.subr.mxu0 0.0
        %677 = vmatpush1.msra.mxu0 0.0
        %678 = vmatprep.subr.mxu0 0.0
        %679 = vmatpush1.msra.mxu0 0.0
        %680 = vmatprep.subr.mxu0 0.0
        %681 = vmatpush1.msra.mxu0 0.0
        %682 = vmatprep.subr.mxu0 0.0
        %683 = vmatpush1.msra.mxu0 0.0
        %684 = vmatprep.subr.mxu0 0.0
        %685 = vmatpush1.msra.mxu0 0.0
        %686 = vmatprep.subr.mxu0 0.0
        %687 = vmatpush1.msra.mxu0 0.0
        %688 = vmatprep.subr.mxu0 0.0
        %689 = vmatpush1.msra.mxu0 0.0
        %690 = vmatprep.subr.mxu0 0.0
        %691 = vmatpush1.msra.mxu0 0.0
        %692 = vmatprep.subr.mxu0 0.0
        %693 = vmatpush1.msra.mxu0 0.0
        %694 = vmatprep.subr.mxu0 0.0
        %695 = vmatpush1.msra.mxu0 0.0
        %696 = vmatprep.subr.mxu0 0.0
        %697 = vmatpush1.msra.mxu0 0.0
        %698 = vmatprep.subr.mxu0 0.0
        %699 = vmatpush1.msra.mxu0 0.0
        %700 = vmatprep.subr.mxu0 0.0
        %701 = vmatpush1.msra.mxu0 0.0
        %702 = vmatprep.subr.mxu0 0.0
        %703 = vmatpush1.msra.mxu0 0.0
        %704 = vmatprep.subr.mxu0 0.0
        %705 = vmatpush1.msra.mxu0 0.0
        %706 = vmatprep.subr.mxu0 0.0
        %707 = vmatpush1.msra.mxu0 0.0
        %708 = vmatprep.subr.mxu0 0.0
        %709 = vmatpush1.msra.mxu0 0.0
        %710 = vmatprep.subr.mxu0 0.0
        %711 = vmatpush1.msra.mxu0 0.0
        %712 = vmatprep.subr.mxu0 0.0
        %713 = vmatpush1.msra.mxu0 0.0
        %714 = vmatprep.subr.mxu0 0.0
        %715 = vmatpush1.msra.mxu0 0.0
        %716 = vmatprep.subr.mxu0 0.0
        %717 = vmatpush1.msra.mxu0 0.0
        %718 = vmatprep.subr.mxu0 0.0
        %719 = vmatpush1.msra.mxu0 0.0
        %720 = vmatprep.subr.mxu0 0.0
        %721 = vmatpush1.msra.mxu0 0.0
        %722 = vmatprep.subr.mxu0 0.0
        %723 = vmatpush1.msra.mxu0 0.0
        %724 = vmatprep.subr.mxu0 0.0
        %725 = vmatpush1.msra.mxu0 0.0
        %726 = vmatprep.subr.mxu0 0.0
        %727 = vmatpush1.msra.mxu0 0.0
        %728 = vmatprep.mubr.f32.mxu0 0.0
        %729 = vmatmul.mubr.f32.gmra.mrb[0].mxu0 %v573
        %v730 = vpop.f32.mrb[0].mxu0
        %v731 = vadd.f32 %v559, %v730
        %v732 = vpop.f32.mrb[0].mxu0
        %v733 = vadd.f32 %v559, %v732
        %734 = vmatprep.mubr.f32.mxu0 0.0
        %735 = vmatmul.mubr.f32.gmra.mrb[0].mxu0 %v576
        %v736 = vpop.f32.mrb[0].mxu0
        %v737 = vadd.f32 %v564, %v736
        %v738 = vpop.f32.mrb[0].mxu0
        %v739 = vadd.f32 %v564, %v738
        %740 = vmatprep.mubr.f32.mxu0 0.0
        %741 = vmatmul.mubr.f32.gmra.mrb[0].mxu0 %v579
        %v742 = vpop.f32.mrb[0].mxu0
        %v743 = vadd.f32 %v569, %v742
        %v744 = vpop.f32.mrb[0].mxu0
        %v745 = vadd.f32 %v569, %v744
        %746 = vdwg.mxu0
        %747 = vst [vmem:[#allocation2] sm:$0xff] %v648
        %748 = vst [vmem:[#allocation2 + $0x8] sm:$0xff] %v650
        %749 = vst [vmem:[#allocation2 + $0x10] sm:$0xff] %v731
        %750 = vst [vmem:[#allocation2 + $0x18] sm:$0xff] %v733
        %751 = vst [vmem:[#allocation2 + $0x20] sm:$0xff] %v654
        %752 = vst [vmem:[#allocation2 + $0x28] sm:$0xff] %v656
        %753 = vst [vmem:[#allocation2 + $0x30] sm:$0xff] %v737
        %754 = vst [vmem:[#allocation2 + $0x38] sm:$0xff] %v739
        %755 = vst [vmem:[#allocation2 + $0x40] sm:$0xff] %v660
        %756 = vst [vmem:[#allocation2 + $0x48] sm:$0xff] %v662
        %757 = vst [vmem:[#allocation2 + $0x50] sm:$0xff] %v743
        %758 = vst [vmem:[#allocation2 + $0x58] sm:$0xff] %v745
      $region40: #{top_model_forward.2} parent=27 // pred_fallthru
        _
      %p759 = scmp.ge.s32.totalorder %s19, 3
      // Predicated region
      $region41: #{top_model_forward.2} parent=27 // pred_check
        %p760 = pneg %p759
      $region42: #{top_model_forward.2} parent=27 // pred_check_branch
        %762 = sbr.rel (%p760) target = $region44
      $region43: #{top_model_forward.2} parent=27 // pred_region
        %v763 = vld [vmem:[#allocation2] sm:$0xff]
        %v764 = vld [vmem:[#allocation2 + $0x8] sm:$0xff]
        %v765 = vld [vmem:[#allocation2 + $0x10] sm:$0xff]
        %v766 = vld [vmem:[#allocation2 + $0x18] sm:$0xff]
        %v767 = vld [vmem:[#allocation2 + $0x20] sm:$0xff]
        %v768 = vld [vmem:[#allocation2 + $0x28] sm:$0xff]
        %v769 = vld [vmem:[#allocation2 + $0x30] sm:$0xff]
        %v770 = vld [vmem:[#allocation2 + $0x38] sm:$0xff]
        %v771 = vld [vmem:[#allocation2 + $0x40] sm:$0xff]
        %v772 = vld [vmem:[#allocation2 + $0x48] sm:$0xff]
        %v773 = vld [vmem:[#allocation2 + $0x50] sm:$0xff]
        %v774 = vld [vmem:[#allocation2 + $0x58] sm:$0xff]
        %776 = vset.pattern.permute.xlu0 2
        %777 = vperm.xlu0 %776, %v185
        %v778 = vpop.permute.xlu0 %777
        %781 = vset.pattern.permute.xlu0 2
        %782 = vperm.xlu0 %781, %v186
        %v783 = vpop.permute.xlu0 %782
        %786 = vset.pattern.permute.xlu0 2
        %787 = vperm.xlu0 %786, %v187
        %v788 = vpop.permute.xlu0 %787
        %v790 = vmul.f32 %v763, %v778
        %v791 = vmul.f32 %v764, %v778
        %v792 = vmul.f32 %v765, %v778
        %v793 = vmul.f32 %v766, %v778
        %v794 = vmul.f32 %v767, %v783
        %v795 = vmul.f32 %v768, %v783
        %v796 = vmul.f32 %v769, %v783
        %v797 = vmul.f32 %v770, %v783
        %v798 = vmul.f32 %v771, %v788
        %v799 = vmul.f32 %v772, %v788
        %v800 = vmul.f32 %v773, %v788
        %v801 = vmul.f32 %v774, %v788
        %802 = vset.pattern.permute.xlu0 6
        %803 = vperm.xlu0 %802, %v185
        %v804 = vpop.permute.xlu0 %803
        %806 = vset.pattern.permute.xlu0 6
        %807 = vperm.xlu0 %806, %v186
        %v808 = vpop.permute.xlu0 %807
        %810 = vset.pattern.permute.xlu0 6
        %811 = vperm.xlu0 %810, %v187
        %v812 = vpop.permute.xlu0 %811
        %v814 = vadd.f32 %v790, %v804
        %v815 = vadd.f32 %v791, %v804
        %v816 = vadd.f32 %v792, %v804
        %v817 = vadd.f32 %v793, %v804
        %v818 = vadd.f32 %v794, %v808
        %v819 = vadd.f32 %v795, %v808
        %v820 = vadd.f32 %v796, %v808
        %v821 = vadd.f32 %v797, %v808
        %v822 = vadd.f32 %v798, %v812
        %v823 = vadd.f32 %v799, %v812
        %v824 = vadd.f32 %v800, %v812
        %v825 = vadd.f32 %v801, %v812
        %v826 = vmax.f32 %v814, 0.0
        %v827 = vmax.f32 %v815, 0.0
        %v828 = vmax.f32 %v816, 0.0
        %v829 = vmax.f32 %v817, 0.0
        %v830 = vmax.f32 %v818, 0.0
        %v831 = vmax.f32 %v819, 0.0
        %v832 = vmax.f32 %v820, 0.0
        %v833 = vmax.f32 %v821, 0.0
        %v834 = vmax.f32 %v822, 0.0
        %v835 = vmax.f32 %v823, 0.0
        %v836 = vmax.f32 %v824, 0.0
        %v837 = vmax.f32 %v825, 0.0
        %s838 = scalar_lea.vmem %s2, 64
        %v839 = vld [vmem:[%s838] sm:$0xff]
        %v840 = vld [vmem:[%s838 + $0x8] sm:$0xff]
        %v841 = vld [vmem:[%s838 + $0x10] sm:$0xff]
        %843 = vset.pattern.permute.xlu0 2
        %844 = vperm.xlu0 %843, %v147
        %v845 = vpop.permute.xlu0 %844
        %848 = vset.pattern.permute.xlu0 2
        %849 = vperm.xlu0 %848, %v148
        %v850 = vpop.permute.xlu0 %849
        %853 = vset.pattern.permute.xlu0 2
        %854 = vperm.xlu0 %853, %v149
        %v855 = vpop.permute.xlu0 %854
        %vm857 = vcmask 195584
        %v859 = vsel %vm857, %v839, 0
        %v862 = vsel %vm857, %v840, 0
        %v865 = vsel %vm857, %v841, 0
        %867 = vmatprep.subr.mxu0 %v827
        %868 = vmatpush1.msra.mxu0 %v826
        %869 = vmatprep.subr.mxu0 %v831
        %870 = vmatpush1.msra.mxu0 %v830
        %871 = vmatprep.subr.mxu0 %v835
        %872 = vmatpush1.msra.mxu0 %v834
        %873 = vmatprep.subr.mxu0 0.0
        %874 = vmatpush1.msra.mxu0 0.0
        %875 = vmatprep.subr.mxu0 0.0
        %876 = vmatpush1.msra.mxu0 0.0
        %877 = vmatprep.subr.mxu0 0.0
        %878 = vmatpush1.msra.mxu0 0.0
        %879 = vmatprep.subr.mxu0 0.0
        %880 = vmatpush1.msra.mxu0 0.0
        %881 = vmatprep.subr.mxu0 0.0
        %882 = vmatpush1.msra.mxu0 0.0
        %883 = vmatprep.subr.mxu0 0.0
        %884 = vmatpush1.msra.mxu0 0.0
        %885 = vmatprep.subr.mxu0 0.0
        %886 = vmatpush1.msra.mxu0 0.0
        %887 = vmatprep.subr.mxu0 0.0
        %888 = vmatpush1.msra.mxu0 0.0
        %889 = vmatprep.subr.mxu0 0.0
        %890 = vmatpush1.msra.mxu0 0.0
        %891 = vmatprep.subr.mxu0 0.0
        %892 = vmatpush1.msra.mxu0 0.0
        %893 = vmatprep.subr.mxu0 0.0
        %894 = vmatpush1.msra.mxu0 0.0
        %895 = vmatprep.subr.mxu0 0.0
        %896 = vmatpush1.msra.mxu0 0.0
        %897 = vmatprep.subr.mxu0 0.0
        %898 = vmatpush1.msra.mxu0 0.0
        %899 = vmatprep.subr.mxu0 0.0
        %900 = vmatpush1.msra.mxu0 0.0
        %901 = vmatprep.subr.mxu0 0.0
        %902 = vmatpush1.msra.mxu0 0.0
        %903 = vmatprep.subr.mxu0 0.0
        %904 = vmatpush1.msra.mxu0 0.0
        %905 = vmatprep.subr.mxu0 0.0
        %906 = vmatpush1.msra.mxu0 0.0
        %907 = vmatprep.subr.mxu0 0.0
        %908 = vmatpush1.msra.mxu0 0.0
        %909 = vmatprep.subr.mxu0 0.0
        %910 = vmatpush1.msra.mxu0 0.0
        %911 = vmatprep.subr.mxu0 0.0
        %912 = vmatpush1.msra.mxu0 0.0
        %913 = vmatprep.subr.mxu0 0.0
        %914 = vmatpush1.msra.mxu0 0.0
        %915 = vmatprep.subr.mxu0 0.0
        %916 = vmatpush1.msra.mxu0 0.0
        %917 = vmatprep.subr.mxu0 0.0
        %918 = vmatpush1.msra.mxu0 0.0
        %919 = vmatprep.subr.mxu0 0.0
        %920 = vmatpush1.msra.mxu0 0.0
        %921 = vmatprep.subr.mxu0 0.0
        %922 = vmatpush1.msra.mxu0 0.0
        %923 = vmatprep.subr.mxu0 0.0
        %924 = vmatpush1.msra.mxu0 0.0
        %925 = vmatprep.subr.mxu0 0.0
        %926 = vmatpush1.msra.mxu0 0.0
        %927 = vmatprep.subr.mxu0 0.0
        %928 = vmatpush1.msra.mxu0 0.0
        %929 = vmatprep.subr.mxu0 0.0
        %930 = vmatpush1.msra.mxu0 0.0
        %931 = vmatprep.mubr.f32.mxu0 0.0
        %932 = vmatmul.mubr.f32.gmra.mrb[0].mxu0 %v859
        %v933 = vpop.f32.mrb[0].mxu0
        %v934 = vadd.f32 %v845, %v933
        %v935 = vpop.f32.mrb[0].mxu0
        %v936 = vadd.f32 %v845, %v935
        %937 = vmatprep.mubr.f32.mxu0 0.0
        %938 = vmatmul.mubr.f32.gmra.mrb[0].mxu0 %v862
        %v939 = vpop.f32.mrb[0].mxu0
        %v940 = vadd.f32 %v850, %v939
        %v941 = vpop.f32.mrb[0].mxu0
        %v942 = vadd.f32 %v850, %v941
        %943 = vmatprep.mubr.f32.mxu0 0.0
        %944 = vmatmul.mubr.f32.gmra.mrb[0].mxu0 %v865
        %v945 = vpop.f32.mrb[0].mxu0
        %v946 = vadd.f32 %v855, %v945
        %v947 = vpop.f32.mrb[0].mxu0
        %v948 = vadd.f32 %v855, %v947
        %949 = vdwg.mxu0
        %950 = vmatprep.subr.mxu0 %v829
        %951 = vmatpush1.msra.mxu0 %v828
        %952 = vmatprep.subr.mxu0 %v833
        %953 = vmatpush1.msra.mxu0 %v832
        %954 = vmatprep.subr.mxu0 %v837
        %955 = vmatpush1.msra.mxu0 %v836
        %956 = vmatprep.subr.mxu0 0.0
        %957 = vmatpush1.msra.mxu0 0.0
        %958 = vmatprep.subr.mxu0 0.0
        %959 = vmatpush1.msra.mxu0 0.0
        %960 = vmatprep.subr.mxu0 0.0
        %961 = vmatpush1.msra.mxu0 0.0
        %962 = vmatprep.subr.mxu0 0.0
        %963 = vmatpush1.msra.mxu0 0.0
        %964 = vmatprep.subr.mxu0 0.0
        %965 = vmatpush1.msra.mxu0 0.0
        %966 = vmatprep.subr.mxu0 0.0
        %967 = vmatpush1.msra.mxu0 0.0
        %968 = vmatprep.subr.mxu0 0.0
        %969 = vmatpush1.msra.mxu0 0.0
        %970 = vmatprep.subr.mxu0 0.0
        %971 = vmatpush1.msra.mxu0 0.0
        %972 = vmatprep.subr.mxu0 0.0
        %973 = vmatpush1.msra.mxu0 0.0
        %974 = vmatprep.subr.mxu0 0.0
        %975 = vmatpush1.msra.mxu0 0.0
        %976 = vmatprep.subr.mxu0 0.0
        %977 = vmatpush1.msra.mxu0 0.0
        %978 = vmatprep.subr.mxu0 0.0
        %979 = vmatpush1.msra.mxu0 0.0
        %980 = vmatprep.subr.mxu0 0.0
        %981 = vmatpush1.msra.mxu0 0.0
        %982 = vmatprep.subr.mxu0 0.0
        %983 = vmatpush1.msra.mxu0 0.0
        %984 = vmatprep.subr.mxu0 0.0
        %985 = vmatpush1.msra.mxu0 0.0
        %986 = vmatprep.subr.mxu0 0.0
        %987 = vmatpush1.msra.mxu0 0.0
        %988 = vmatprep.subr.mxu0 0.0
        %989 = vmatpush1.msra.mxu0 0.0
        %990 = vmatprep.subr.mxu0 0.0
        %991 = vmatpush1.msra.mxu0 0.0
        %992 = vmatprep.subr.mxu0 0.0
        %993 = vmatpush1.msra.mxu0 0.0
        %994 = vmatprep.subr.mxu0 0.0
        %995 = vmatpush1.msra.mxu0 0.0
        %996 = vmatprep.subr.mxu0 0.0
        %997 = vmatpush1.msra.mxu0 0.0
        %998 = vmatprep.subr.mxu0 0.0
        %999 = vmatpush1.msra.mxu0 0.0
        %1000 = vmatprep.subr.mxu0 0.0
        %1001 = vmatpush1.msra.mxu0 0.0
        %1002 = vmatprep.subr.mxu0 0.0
        %1003 = vmatpush1.msra.mxu0 0.0
        %1004 = vmatprep.subr.mxu0 0.0
        %1005 = vmatpush1.msra.mxu0 0.0
        %1006 = vmatprep.subr.mxu0 0.0
        %1007 = vmatpush1.msra.mxu0 0.0
        %1008 = vmatprep.subr.mxu0 0.0
        %1009 = vmatpush1.msra.mxu0 0.0
        %1010 = vmatprep.subr.mxu0 0.0
        %1011 = vmatpush1.msra.mxu0 0.0
        %1012 = vmatprep.subr.mxu0 0.0
        %1013 = vmatpush1.msra.mxu0 0.0
        %1014 = vmatprep.mubr.f32.mxu0 0.0
        %1015 = vmatmul.mubr.f32.gmra.mrb[0].mxu0 %v859
        %v1016 = vpop.f32.mrb[0].mxu0
        %v1017 = vadd.f32 %v845, %v1016
        %v1018 = vpop.f32.mrb[0].mxu0
        %v1019 = vadd.f32 %v845, %v1018
        %1020 = vmatprep.mubr.f32.mxu0 0.0
        %1021 = vmatmul.mubr.f32.gmra.mrb[0].mxu0 %v862
        %v1022 = vpop.f32.mrb[0].mxu0
        %v1023 = vadd.f32 %v850, %v1022
        %v1024 = vpop.f32.mrb[0].mxu0
        %v1025 = vadd.f32 %v850, %v1024
        %1026 = vmatprep.mubr.f32.mxu0 0.0
        %1027 = vmatmul.mubr.f32.gmra.mrb[0].mxu0 %v865
        %v1028 = vpop.f32.mrb[0].mxu0
        %v1029 = vadd.f32 %v855, %v1028
        %v1030 = vpop.f32.mrb[0].mxu0
        %v1031 = vadd.f32 %v855, %v1030
        %1032 = vdwg.mxu0
        %1033 = vst [vmem:[#allocation2] sm:$0xff] %v934
        %1034 = vst [vmem:[#allocation2 + $0x8] sm:$0xff] %v936
        %1035 = vst [vmem:[#allocation2 + $0x10] sm:$0xff] %v1017
        %1036 = vst [vmem:[#allocation2 + $0x18] sm:$0xff] %v1019
        %1037 = vst [vmem:[#allocation2 + $0x20] sm:$0xff] %v940
        %1038 = vst [vmem:[#allocation2 + $0x28] sm:$0xff] %v942
        %1039 = vst [vmem:[#allocation2 + $0x30] sm:$0xff] %v1023
        %1040 = vst [vmem:[#allocation2 + $0x38] sm:$0xff] %v1025
        %1041 = vst [vmem:[#allocation2 + $0x40] sm:$0xff] %v946
        %1042 = vst [vmem:[#allocation2 + $0x48] sm:$0xff] %v948
        %1043 = vst [vmem:[#allocation2 + $0x50] sm:$0xff] %v1029
        %1044 = vst [vmem:[#allocation2 + $0x58] sm:$0xff] %v1031
      $region44: #{top_model_forward.2} parent=27 // pred_fallthru
        _
      %v1045 = vld [vmem:[#allocation2] sm:$0xff]
      %v1046 = vld [vmem:[#allocation2 + $0x8] sm:$0xff]
      %v1047 = vld [vmem:[#allocation2 + $0x10] sm:$0xff]
      %v1048 = vld [vmem:[#allocation2 + $0x18] sm:$0xff]
      %v1049 = vld [vmem:[#allocation2 + $0x20] sm:$0xff]
      %v1050 = vld [vmem:[#allocation2 + $0x28] sm:$0xff]
      %v1051 = vld [vmem:[#allocation2 + $0x30] sm:$0xff]
      %v1052 = vld [vmem:[#allocation2 + $0x38] sm:$0xff]
      %v1053 = vld [vmem:[#allocation2 + $0x40] sm:$0xff]
      %v1054 = vld [vmem:[#allocation2 + $0x48] sm:$0xff]
      %v1055 = vld [vmem:[#allocation2 + $0x50] sm:$0xff]
      %v1056 = vld [vmem:[#allocation2 + $0x58] sm:$0xff]
      // Predicated region
      $region45: #{top_model_forward.2} parent=27 // pred_check
        %p1057 = pneg %p150
      $region46: #{top_model_forward.2} parent=27 // pred_check_branch
        %1059 = sbr.rel (%p1057) target = $region48
      $region47: #{top_model_forward.2} parent=27 // pred_region
        %vm1060 = vcmask 7168
        %1061 = vst.msk [vmem:[#allocation5] sm:$0xff] %vm1060, %v1045
        %1062 = vst.msk [vmem:[#allocation5 + $0x8] sm:$0xff] %vm1060, %v1049
        %1063 = vst.msk [vmem:[#allocation5 + $0x10] sm:$0xff] %vm1060, %v1053
      $region48: #{top_model_forward.2} parent=27 // pred_fallthru
        _
      %v1064 = vld [vmem:[#allocation5] sm:$0xff]
      %v1065 = vld [vmem:[#allocation5 + $0x8] sm:$0xff]
      %v1066 = vld [vmem:[#allocation5 + $0x10] sm:$0xff]
      %s1067 = smul.u32 %s20, 512
      %v1068 = vlaneseq
      %v1069 = vand.u32 %v1068, 127
      %v1070 = vadd.s32 %v1069, 128
      %v1071 = vadd.s32 %v1069, 256
      %v1072 = vadd.s32 %v1069, 384
      %v1073 = vstv %s1067
      %v1074 = vadd.s32 %v1073, %v1069
      %v1075 = vadd.s32 %v1073, %v1070
      %v1076 = vadd.s32 %v1073, %v1071
      %v1077 = vadd.s32 %v1073, %v1072
      %v1078 = vstv %s145
      %vm1079 = vcmp.lt.s32.totalorder %v1074, %v1078
      %vm1080 = vcmp.lt.s32.totalorder %v1075, %v1078
      %vm1081 = vcmp.lt.s32.totalorder %v1076, %v1078
      %vm1082 = vcmp.lt.s32.totalorder %v1077, %v1078
      %1084 = vset.pattern.permute.xlu0 0
      %1085 = vperm.xlu0 %1084, %v1064
      %v1086 = vpop.permute.xlu0 %1085
      %1089 = vset.pattern.permute.xlu0 0
      %1090 = vperm.xlu0 %1089, %v1065
      %v1091 = vpop.permute.xlu0 %1090
      %1094 = vset.pattern.permute.xlu0 0
      %1095 = vperm.xlu0 %1094, %v1066
      %v1096 = vpop.permute.xlu0 %1095
      %v1098 = vsub.f32 %v1045, %v1086
      %v1099 = vsub.f32 %v1046, %v1086
      %v1100 = vsub.f32 %v1047, %v1086
      %v1101 = vsub.f32 %v1048, %v1086
      %v1102 = vsub.f32 %v1049, %v1091
      %v1103 = vsub.f32 %v1050, %v1091
      %v1104 = vsub.f32 %v1051, %v1091
      %v1105 = vsub.f32 %v1052, %v1091
      %v1106 = vsub.f32 %v1053, %v1096
      %v1107 = vsub.f32 %v1054, %v1096
      %v1108 = vsub.f32 %v1055, %v1096
      %v1109 = vsub.f32 %v1056, %v1096
      %v1110 = vsel %vm1079, 1, 0
      %v1111 = vsel %vm1080, 1, 0
      %v1112 = vsel %vm1081, 1, 0
      %v1113 = vsel %vm1082, 1, 0
      %vm1114 = vcmp.eq.s32.totalorder %v1110, 1
      %vm1115 = vcmp.eq.s32.totalorder %v1111, 1
      %vm1116 = vcmp.eq.s32.totalorder %v1112, 1
      %vm1117 = vcmp.eq.s32.totalorder %v1113, 1
      %v1118 = vsel %vm1114, %v1098, 0.0
      %v1119 = vsel %vm1115, %v1099, 0.0
      %v1120 = vsel %vm1116, %v1100, 0.0
      %v1121 = vsel %vm1117, %v1101, 0.0
      %v1122 = vsel %vm1114, %v1102, 0.0
      %v1123 = vsel %vm1115, %v1103, 0.0
      %v1124 = vsel %vm1116, %v1104, 0.0
      %v1125 = vsel %vm1117, %v1105, 0.0
      %v1126 = vsel %vm1114, %v1106, 0.0
      %v1127 = vsel %vm1115, %v1107, 0.0
      %v1128 = vsel %vm1116, %v1108, 0.0
      %v1129 = vsel %vm1117, %v1109, 0.0
      %v1130 = vld [vmem:[#allocation3] sm:$0xff]
      %v1131 = vld [vmem:[#allocation3 + $0x8] sm:$0xff]
      %v1132 = vld [vmem:[#allocation3 + $0x10] sm:$0xff]
      %v1133 = vadd.f32 %v1118, %v1119
      %v1134 = vadd.f32 %v1133, %v1120
      %v1135 = vadd.f32 %v1134, %v1121
      %1136 = vadd.xlane.f32.xlu0 %v1135
      %v1137 = vpop.xlane.xlu0 %1136
      %v1138 = vadd.f32 %v1122, %v1123
      %v1139 = vadd.f32 %v1138, %v1124
      %v1140 = vadd.f32 %v1139, %v1125
      %1141 = vadd.xlane.f32.xlu0 %v1140
      %v1142 = vpop.xlane.xlu0 %1141
      %v1143 = vadd.f32 %v1126, %v1127
      %v1144 = vadd.f32 %v1143, %v1128
      %v1145 = vadd.f32 %v1144, %v1129
      %1146 = vadd.xlane.f32.xlu0 %v1145
      %v1147 = vpop.xlane.xlu0 %1146
      %v1148 = vadd.f32 %v1130, %v1137
      %v1149 = vadd.f32 %v1131, %v1142
      %v1150 = vadd.f32 %v1132, %v1147
      %vm1151 = vcmask 7168
      %1152 = vst.msk [vmem:[#allocation3] sm:$0xff] %vm1151, %v1148
      %1153 = vst.msk [vmem:[#allocation3 + $0x8] sm:$0xff] %vm1151, %v1149
      %1154 = vst.msk [vmem:[#allocation3 + $0x10] sm:$0xff] %vm1151, %v1150
      %v1155 = vld [vmem:[#allocation4] sm:$0xff]
      %v1156 = vld [vmem:[#allocation4 + $0x8] sm:$0xff]
      %v1157 = vld [vmem:[#allocation4 + $0x10] sm:$0xff]
      %v1158 = vmul.f32 %v1118, %v1118
      %v1159 = vmul.f32 %v1119, %v1119
      %v1160 = vmul.f32 %v1120, %v1120
      %v1161 = vmul.f32 %v1121, %v1121
      %v1162 = vmul.f32 %v1122, %v1122
      %v1163 = vmul.f32 %v1123, %v1123
      %v1164 = vmul.f32 %v1124, %v1124
      %v1165 = vmul.f32 %v1125, %v1125
      %v1166 = vmul.f32 %v1126, %v1126
      %v1167 = vmul.f32 %v1127, %v1127
      %v1168 = vmul.f32 %v1128, %v1128
      %v1169 = vmul.f32 %v1129, %v1129
      %v1170 = vadd.f32 %v1158, %v1159
      %v1171 = vadd.f32 %v1170, %v1160
      %v1172 = vadd.f32 %v1171, %v1161
      %1173 = vadd.xlane.f32.xlu0 %v1172
      %v1174 = vpop.xlane.xlu0 %1173
      %v1175 = vadd.f32 %v1162, %v1163
      %v1176 = vadd.f32 %v1175, %v1164
      %v1177 = vadd.f32 %v1176, %v1165
      %1178 = vadd.xlane.f32.xlu0 %v1177
      %v1179 = vpop.xlane.xlu0 %1178
      %v1180 = vadd.f32 %v1166, %v1167
      %v1181 = vadd.f32 %v1180, %v1168
      %v1182 = vadd.f32 %v1181, %v1169
      %1183 = vadd.xlane.f32.xlu0 %v1182
      %v1184 = vpop.xlane.xlu0 %1183
      %v1185 = vadd.f32 %v1155, %v1174
      %v1186 = vadd.f32 %v1156, %v1179
      %v1187 = vadd.f32 %v1157, %v1184
      %1188 = vst.msk [vmem:[#allocation4] sm:$0xff] %vm1151, %v1185
      %1189 = vst.msk [vmem:[#allocation4 + $0x8] sm:$0xff] %vm1151, %v1186
      %1190 = vst.msk [vmem:[#allocation4 + $0x10] sm:$0xff] %vm1151, %v1187
      // Predicated region
      $region49: #{top_model_forward.2} parent=27 // pred_check
        %p1191 = pneg %p150
      $region50: #{top_model_forward.2} parent=27 // pred_check_branch
        %1193 = sbr.rel (%p1191) target = $region52
      $region51: #{top_model_forward.2} parent=27 // pred_region
        %s1194 = scvt.s32.f32 %s145
        %v1195 = vstv %s1194
        %v1196 = vrcp.pop %v1195
        %s1197 = vtos %v1196
        %v1198 = vld [vmem:[#allocation3] sm:$0xff]
        %v1199 = vld [vmem:[#allocation3 + $0x8] sm:$0xff]
        %v1200 = vld [vmem:[#allocation3 + $0x10] sm:$0xff]
        %v1201 = vstv %s1197
        %v1202 = vmul.f32 %v1198, %v1201
        %v1203 = vmul.f32 %v1199, %v1201
        %v1204 = vmul.f32 %v1200, %v1201
        %v1205 = vld [vmem:[#allocation5] sm:$0xff]
        %v1206 = vld [vmem:[#allocation5 + $0x8] sm:$0xff]
        %v1207 = vld [vmem:[#allocation5 + $0x10] sm:$0xff]
        %v1208 = vadd.f32 %v1205, %v1202
        %v1209 = vadd.f32 %v1206, %v1203
        %v1210 = vadd.f32 %v1207, %v1204
        %v1211 = vld [vmem:[#allocation4] sm:$0xff]
        %v1212 = vld [vmem:[#allocation4 + $0x8] sm:$0xff]
        %v1213 = vld [vmem:[#allocation4 + $0x10] sm:$0xff]
        %v1214 = vmul.f32 %v1211, %v1201
        %v1215 = vmul.f32 %v1212, %v1201
        %v1216 = vmul.f32 %v1213, %v1201
        %v1217 = vmul.f32 %v1202, %v1202
        %v1218 = vmul.f32 %v1203, %v1203
        %v1219 = vmul.f32 %v1204, %v1204
        %v1220 = vsub.f32 %v1214, %v1217
        %v1221 = vsub.f32 %v1215, %v1218
        %v1222 = vsub.f32 %v1216, %v1219
        %v1223 = vmax.f32 %v1220, 0.0
        %v1224 = vmax.f32 %v1221, 0.0
        %v1225 = vmax.f32 %v1222, 0.0
        %v1226 = vadd.f32 %v1223, 1e-05
        %v1227 = vadd.f32 %v1224, 1e-05
        %v1228 = vadd.f32 %v1225, 1e-05
        %v1229 = vrsqrt.pop %v1226
        %v1230 = vrsqrt.pop %v1227
        %v1231 = vrsqrt.pop %v1228
        %p1232 = scmp.eq.s32.totalorder %s19, 0
        // Predicated region
        $region53: #{top_model_forward.2} parent=51 // pred_check
          %p1233 = pneg %p1232
        $region54: #{top_model_forward.2} parent=51 // pred_check_branch
          %1235 = sbr.rel (%p1233) target = $region56
        $region55: #{top_model_forward.2} parent=51 // pred_region
          %1239 = vrot.lane.b32.xlu0 %v1229, 4
          %v1240 = vpop.permute.xlu0 %1239
          %1241 = vrot.lane.b32.xlu0 %v1230, 4
          %v1242 = vpop.permute.xlu0 %1241
          %1243 = vrot.lane.b32.xlu0 %v1231, 4
          %v1244 = vpop.permute.xlu0 %1243
          %v1248 = vmul.f32 %v147, %v1240
          %v1249 = vmul.f32 %v148, %v1242
          %v1250 = vmul.f32 %v149, %v1244
          %1254 = vrot.lane.b32.xlu0 %v1248, 124
          %v1255 = vpop.permute.xlu0 %1254
          %1256 = vrot.lane.b32.xlu0 %v1249, 124
          %v1257 = vpop.permute.xlu0 %1256
          %1258 = vrot.lane.b32.xlu0 %v1250, 124
          %v1259 = vpop.permute.xlu0 %1258
          %1263 = vst.msk [vmem:[%s3] sm:$0xff] %vm1151, %v1255
          %1264 = vst.msk [vmem:[%s3 + $0x8] sm:$0xff] %vm1151, %v1257
          %1265 = vst.msk [vmem:[%s3 + $0x10] sm:$0xff] %vm1151, %v1259
          %v1266 = vmul.f32 %v1208, %v1255
          %v1267 = vmul.f32 %v1209, %v1257
          %v1268 = vmul.f32 %v1210, %v1259
          %1272 = vrot.lane.b32.xlu0 %v1266, 8
          %v1273 = vpop.permute.xlu0 %1272
          %1274 = vrot.lane.b32.xlu0 %v1267, 8
          %v1275 = vpop.permute.xlu0 %1274
          %1276 = vrot.lane.b32.xlu0 %v1268, 8
          %v1277 = vpop.permute.xlu0 %1276
          %v1281 = vsub.f32 %v147, %v1273
          %v1282 = vsub.f32 %v148, %v1275
          %v1283 = vsub.f32 %v149, %v1277
          %1287 = vrot.lane.b32.xlu0 %v1281, 124
          %v1288 = vpop.permute.xlu0 %1287
          %1289 = vrot.lane.b32.xlu0 %v1282, 124
          %v1290 = vpop.permute.xlu0 %1289
          %1291 = vrot.lane.b32.xlu0 %v1283, 124
          %v1292 = vpop.permute.xlu0 %1291
          %vm1296 = vcmask 39968
          %1297 = vst.msk [vmem:[%s3] sm:$0xff] %vm1296, %v1288
          %1298 = vst.msk [vmem:[%s3 + $0x8] sm:$0xff] %vm1296, %v1290
          %1299 = vst.msk [vmem:[%s3 + $0x10] sm:$0xff] %vm1296, %v1292
        $region56: #{top_model_forward.2} parent=51 // pred_fallthru
          _
        %p1300 = scmp.eq.s32.totalorder %s19, 1
        // Predicated region
        $region57: #{top_model_forward.2} parent=51 // pred_check
          %p1301 = pneg %p1300
        $region58: #{top_model_forward.2} parent=51 // pred_check_branch
          %1303 = sbr.rel (%p1301) target = $region60
        $region59: #{top_model_forward.2} parent=51 // pred_region
          %1307 = vrot.lane.b32.xlu0 %v1229, 5
          %v1308 = vpop.permute.xlu0 %1307
          %1309 = vrot.lane.b32.xlu0 %v1230, 5
          %v1310 = vpop.permute.xlu0 %1309
          %1311 = vrot.lane.b32.xlu0 %v1231, 5
          %v1312 = vpop.permute.xlu0 %1311
          %v1316 = vmul.f32 %v147, %v1308
          %v1317 = vmul.f32 %v148, %v1310
          %v1318 = vmul.f32 %v149, %v1312
          %1322 = vrot.lane.b32.xlu0 %v1316, 124
          %v1323 = vpop.permute.xlu0 %1322
          %1324 = vrot.lane.b32.xlu0 %v1317, 124
          %v1325 = vpop.permute.xlu0 %1324
          %1326 = vrot.lane.b32.xlu0 %v1318, 124
          %v1327 = vpop.permute.xlu0 %1326
          %vm1331 = vcmask 15368
          %1332 = vst.msk [vmem:[%s3] sm:$0xff] %vm1331, %v1323
          %1333 = vst.msk [vmem:[%s3 + $0x8] sm:$0xff] %vm1331, %v1325
          %1334 = vst.msk [vmem:[%s3 + $0x10] sm:$0xff] %vm1331, %v1327
          %1335 = vrot.lane.b32.xlu0 %v1316, 123
          %v1336 = vpop.permute.xlu0 %1335
          %1337 = vrot.lane.b32.xlu0 %v1317, 123
          %v1338 = vpop.permute.xlu0 %1337
          %1339 = vrot.lane.b32.xlu0 %v1318, 123
          %v1340 = vpop.permute.xlu0 %1339
          %v1344 = vmul.f32 %v1208, %v1336
          %v1345 = vmul.f32 %v1209, %v1338
          %v1346 = vmul.f32 %v1210, %v1340
          %1350 = vrot.lane.b32.xlu0 %v1344, 9
          %v1351 = vpop.permute.xlu0 %1350
          %1352 = vrot.lane.b32.xlu0 %v1345, 9
          %v1353 = vpop.permute.xlu0 %1352
          %1354 = vrot.lane.b32.xlu0 %v1346, 9
          %v1355 = vpop.permute.xlu0 %1354
          %v1359 = vsub.f32 %v147, %v1351
          %v1360 = vsub.f32 %v148, %v1353
          %v1361 = vsub.f32 %v149, %v1355
          %1365 = vrot.lane.b32.xlu0 %v1359, 124
          %v1366 = vpop.permute.xlu0 %1365
          %1367 = vrot.lane.b32.xlu0 %v1360, 124
          %v1368 = vpop.permute.xlu0 %1367
          %1369 = vrot.lane.b32.xlu0 %v1361, 124
          %v1370 = vpop.permute.xlu0 %1369
          %vm1374 = vcmask 48168
          %1375 = vst.msk [vmem:[%s3] sm:$0xff] %vm1374, %v1366
          %1376 = vst.msk [vmem:[%s3 + $0x8] sm:$0xff] %vm1374, %v1368
          %1377 = vst.msk [vmem:[%s3 + $0x10] sm:$0xff] %vm1374, %v1370
        $region60: #{top_model_forward.2} parent=51 // pred_fallthru
          _
        %p1378 = scmp.eq.s32.totalorder %s19, 2
        // Predicated region
        $region61: #{top_model_forward.2} parent=51 // pred_check
          %p1379 = pneg %p1378
        $region62: #{top_model_forward.2} parent=51 // pred_check_branch
          %1381 = sbr.rel (%p1379) target = $region64
        $region63: #{top_model_forward.2} parent=51 // pred_region
          %1385 = vrot.lane.b32.xlu0 %v1229, 6
          %v1386 = vpop.permute.xlu0 %1385
          %1387 = vrot.lane.b32.xlu0 %v1230, 6
          %v1388 = vpop.permute.xlu0 %1387
          %1389 = vrot.lane.b32.xlu0 %v1231, 6
          %v1390 = vpop.permute.xlu0 %1389
          %v1394 = vmul.f32 %v147, %v1386
          %v1395 = vmul.f32 %v148, %v1388
          %v1396 = vmul.f32 %v149, %v1390
          %1400 = vrot.lane.b32.xlu0 %v1394, 124
          %v1401 = vpop.permute.xlu0 %1400
          %1402 = vrot.lane.b32.xlu0 %v1395, 124
          %v1403 = vpop.permute.xlu0 %1402
          %1404 = vrot.lane.b32.xlu0 %v1396, 124
          %v1405 = vpop.permute.xlu0 %1404
          %vm1409 = vcmask 23568
          %1410 = vst.msk [vmem:[%s3] sm:$0xff] %vm1409, %v1401
          %1411 = vst.msk [vmem:[%s3 + $0x8] sm:$0xff] %vm1409, %v1403
          %1412 = vst.msk [vmem:[%s3 + $0x10] sm:$0xff] %vm1409, %v1405
          %1413 = vrot.lane.b32.xlu0 %v1394, 122
          %v1414 = vpop.permute.xlu0 %1413
          %1415 = vrot.lane.b32.xlu0 %v1395, 122
          %v1416 = vpop.permute.xlu0 %1415
          %1417 = vrot.lane.b32.xlu0 %v1396, 122
          %v1418 = vpop.permute.xlu0 %1417
          %v1422 = vmul.f32 %v1208, %v1414
          %v1423 = vmul.f32 %v1209, %v1416
          %v1424 = vmul.f32 %v1210, %v1418
          %1428 = vrot.lane.b32.xlu0 %v1422, 10
          %v1429 = vpop.permute.xlu0 %1428
          %1430 = vrot.lane.b32.xlu0 %v1423, 10
          %v1431 = vpop.permute.xlu0 %1430
          %1432 = vrot.lane.b32.xlu0 %v1424, 10
          %v1433 = vpop.permute.xlu0 %1432
          %v1437 = vsub.f32 %v147, %v1429
          %v1438 = vsub.f32 %v148, %v1431
          %v1439 = vsub.f32 %v149, %v1433
          %1443 = vrot.lane.b32.xlu0 %v1437, 124
          %v1444 = vpop.permute.xlu0 %1443
          %1445 = vrot.lane.b32.xlu0 %v1438, 124
          %v1446 = vpop.permute.xlu0 %1445
          %1447 = vrot.lane.b32.xlu0 %v1439, 124
          %v1448 = vpop.permute.xlu0 %1447
          %vm1452 = vcmask 56368
          %1453 = vst.msk [vmem:[%s3] sm:$0xff] %vm1452, %v1444
          %1454 = vst.msk [vmem:[%s3 + $0x8] sm:$0xff] %vm1452, %v1446
          %1455 = vst.msk [vmem:[%s3 + $0x10] sm:$0xff] %vm1452, %v1448
        $region64: #{top_model_forward.2} parent=51 // pred_fallthru
          _
        %p1456 = scmp.eq.s32.totalorder %s19, 3
        // Predicated region
        $region65: #{top_model_forward.2} parent=51 // pred_check
          %p1457 = pneg %p1456
        $region66: #{top_model_forward.2} parent=51 // pred_check_branch
          %1459 = sbr.rel (%p1457) target = $region68
        $region67: #{top_model_forward.2} parent=51 // pred_region
          %1463 = vrot.lane.b32.xlu0 %v1229, 7
          %v1464 = vpop.permute.xlu0 %1463
          %1465 = vrot.lane.b32.xlu0 %v1230, 7
          %v1466 = vpop.permute.xlu0 %1465
          %1467 = vrot.lane.b32.xlu0 %v1231, 7
          %v1468 = vpop.permute.xlu0 %1467
          %v1472 = vmul.f32 %v147, %v1464
          %v1473 = vmul.f32 %v148, %v1466
          %v1474 = vmul.f32 %v149, %v1468
          %1478 = vrot.lane.b32.xlu0 %v1472, 124
          %v1479 = vpop.permute.xlu0 %1478
          %1480 = vrot.lane.b32.xlu0 %v1473, 124
          %v1481 = vpop.permute.xlu0 %1480
          %1482 = vrot.lane.b32.xlu0 %v1474, 124
          %v1483 = vpop.permute.xlu0 %1482
          %vm1487 = vcmask 31768
          %1488 = vst.msk [vmem:[%s3] sm:$0xff] %vm1487, %v1479
          %1489 = vst.msk [vmem:[%s3 + $0x8] sm:$0xff] %vm1487, %v1481
          %1490 = vst.msk [vmem:[%s3 + $0x10] sm:$0xff] %vm1487, %v1483
          %1491 = vrot.lane.b32.xlu0 %v1472, 121
          %v1492 = vpop.permute.xlu0 %1491
          %1493 = vrot.lane.b32.xlu0 %v1473, 121
          %v1494 = vpop.permute.xlu0 %1493
          %1495 = vrot.lane.b32.xlu0 %v1474, 121
          %v1496 = vpop.permute.xlu0 %1495
          %v1500 = vmul.f32 %v1208, %v1492
          %v1501 = vmul.f32 %v1209, %v1494
          %v1502 = vmul.f32 %v1210, %v1496
          %1506 = vrot.lane.b32.xlu0 %v1500, 11
          %v1507 = vpop.permute.xlu0 %1506
          %1508 = vrot.lane.b32.xlu0 %v1501, 11
          %v1509 = vpop.permute.xlu0 %1508
          %1510 = vrot.lane.b32.xlu0 %v1502, 11
          %v1511 = vpop.permute.xlu0 %1510
          %v1515 = vsub.f32 %v147, %v1507
          %v1516 = vsub.f32 %v148, %v1509
          %v1517 = vsub.f32 %v149, %v1511
          %1521 = vrot.lane.b32.xlu0 %v1515, 124
          %v1522 = vpop.permute.xlu0 %1521
          %1523 = vrot.lane.b32.xlu0 %v1516, 124
          %v1524 = vpop.permute.xlu0 %1523
          %1525 = vrot.lane.b32.xlu0 %v1517, 124
          %v1526 = vpop.permute.xlu0 %1525
          %vm1530 = vcmask 64568
          %1531 = vst.msk [vmem:[%s3] sm:$0xff] %vm1530, %v1522
          %1532 = vst.msk [vmem:[%s3 + $0x8] sm:$0xff] %vm1530, %v1524
          %1533 = vst.msk [vmem:[%s3 + $0x10] sm:$0xff] %vm1530, %v1526
        $region68: #{top_model_forward.2} parent=51 // pred_fallthru
          _
      $region52: #{top_model_forward.2} parent=27 // pred_fallthru
        _
      // Predicated region
      $region69: #{top_model_forward.2} parent=27 // pred_check
        %p1534 = pneg %p87
      $region70: #{top_model_forward.2} parent=27 // pred_check_branch
        %1536 = sbr.rel (%p1534) target = $region72
      $region71: #{top_model_forward.2} parent=27 // pred_region
        _
      $region72: #{top_model_forward.2} parent=27 // pred_fallthru
        _
      // Predicated region
      $region73: #{top_model_forward.2} parent=27 // pred_check
        %p1537 = pneg %p87
      $region74: #{top_model_forward.2} parent=27 // pred_check_branch
        %1539 = sbr.rel (%p1537) target = $region76
      $region75: #{top_model_forward.2} parent=27 // pred_region
        _
      $region76: #{top_model_forward.2} parent=27 // pred_fallthru
        _
    $region28: #{top_model_forward.2} parent=5 // pred_fallthru
      _
    %p1540 = scmp.le.s32.totalorder 2, %s10
    // Predicated region
    $region77: #{top_model_forward.2} parent=5 // pred_check
      %p1541 = pneg %p1540
    $region78: #{top_model_forward.2} parent=5 // pred_check_branch
      %1543 = sbr.rel (%p1541) target = $region80
    $region79: #{top_model_forward.2} parent=5 // pred_region
      %s1544 = ssub.s32 %s10, 2
    $region80: #{top_model_forward.2} parent=5 // pred_fallthru
      _
  $region6: #{top_model_forward.2} parent=0 // loop_footer
    %s14 = sadd.s32 1, %s10
  $region7: #{top_model_forward.2} parent=0 // loop_footer_branch
    %9 = sbr.rel target = $region3
  $region8: #{top_model_forward.2} parent=0 // loop_exit
    _

</llo_original>
